<compile_context>
chip_gen: v5e
topology: v5e:2x2
jax: 0.10.0
libtpu: 0.0.40
codegen_flags: <defaults>
</compile_context>

<pallas_src>
import functools

import jax
import jax.numpy as jnp
from jax import lax
from jax.experimental import pallas as pl
from jax.experimental.pallas import tpu as pltpu

# ---- sizes (small, consistent with the forward semantics) ----
B = 2              # batch
C_IN = 3           # input channels (RGB)
C_PAD = 8          # channel-padded input (RGB + valid-indicator + zeros)
H_IN = W_IN = 30   # raw spatial extent; padded up to 32 (size_divisible=32)
C_FEAT = 32        # synthetic backbone channels
N_BOX = 16         # proposals per image
D_FC6 = 64         # fc6 feature dim
N_CLS = 8          # classes incl. background (class 0)
NMS_THRESH = 0.5   # conf_thresh in the reference is the NMS IoU threshold
TOP_K = min(100, N_BOX)


def fused_kernel(x_ref, prop_t_ref, scale_ref, wconv_ref, emb_ref,
                 wf_ref, bf_ref, wcl_ref, bcl_ref, out_ref,
                 *, inv_n_valid, n_box, n_cls, nms_thresh, top_k):
    f32 = jnp.float32

    # ---------------- synthetic backbone + valid-pixel mean pool ----------------
    # x is channel-major (C_PAD, NPIX); channel C_IN is the valid-pixel indicator
    # with the conv bias folded into the matching weight column, so padded pixels
    # give relu(0) = 0 and drop out of the pooled sum exactly.
    x_t = x_ref[0]                                                  # (C_PAD, NPIX)
    feat_t = jnp.maximum(
        jnp.dot(wconv_ref[...], x_t, preferred_element_type=f32), 0.0)  # (C_FEAT, NPIX)
    ones_pix = jnp.ones((1, feat_t.shape[1]), f32)
    # pixel sum produced directly in row layout: (1,NPIX) contracted with (C_FEAT,NPIX)
    sum_row = lax.dot_general(ones_pix, feat_t, (((1,), (1,)), ((), ())),
                              preferred_element_type=f32)           # (1, C_FEAT)
    pooled = sum_row * inv_n_valid                                  # (1, C_FEAT)

    # ------------------------------- ROI head -----------------------------------
    roi = pooled + emb_ref[...]                                     # (N, C_FEAT)
    fc6 = jnp.maximum(
        jnp.dot(roi, wf_ref[...], preferred_element_type=f32) + bf_ref[...], 0.0)
    logits = (jnp.dot(fc6, wcl_ref[...], preferred_element_type=f32)
              + bcl_ref[...])                                       # (N, N_CLS)
    m = jnp.max(logits, axis=-1, keepdims=True)
    e = jnp.exp(logits - m)
    probs = e / jnp.sum(e, axis=-1, keepdims=True)                  # softmax (N, N_CLS)

    # class-major scores without background, via a selector matmul (no transpose):
    # sel[r, k] = [k == r+1]  ->  cls_scores[r, i] = probs[i, r+1]
    sel = (lax.broadcasted_iota(jnp.int32, (n_cls - 1, n_cls), 1)
           == lax.broadcasted_iota(jnp.int32, (n_cls - 1, n_cls), 0) + 1).astype(f32)
    cls_scores = lax.dot_general(sel, probs, (((1,), (1,)), ((), ())),
                                 preferred_element_type=f32)        # (N_CLS-1, N)

    # ----------------------- boxes, IoU, suppression mask -----------------------
    dets_t = prop_t_ref[0] / scale_ref[0]                           # (4, N) original frame
    eye_n = (lax.broadcasted_iota(jnp.int32, (n_box, n_box), 0)
             == lax.broadcasted_iota(jnp.int32, (n_box, n_box), 1)).astype(f32)
    sub_lt_lane = (lax.broadcasted_iota(jnp.int32, (n_box, n_box), 0)
                   < lax.broadcasted_iota(jnp.int32, (n_box, n_box), 1))

    def to_col(row):                                                # (1,N) -> (N,1)
        return jnp.sum(row * eye_n, axis=-1, keepdims=True)

    x1r, y1r, x2r, y2r = (dets_t[0:1, :], dets_t[1:2, :],
                          dets_t[2:3, :], dets_t[3:4, :])           # (1, N)
    x1c, y1c, x2c, y2c = to_col(x1r), to_col(y1r), to_col(x2r), to_col(y2r)
    area_r = (x2r - x1r + 1.0) * (y2r - y1r + 1.0)                  # (1, N)
    area_c = (x2c - x1c + 1.0) * (y2c - y1c + 1.0)                  # (N, 1)
    ww = jnp.maximum(jnp.minimum(x2c, x2r) - jnp.maximum(x1c, x1r) + 1.0, 0.0)
    hh = jnp.maximum(jnp.minimum(y2c, y2r) - jnp.maximum(y1c, y1r) + 1.0, 0.0)
    inter = ww * hh
    iou = inter / (area_c + area_r - inter)                         # (N, N), symmetric
    supp_mask = (iou > nms_thresh).astype(f32)                      # hoisted out of the loop

    # ---------- per-class descending-score ranks (argsort replacement) ----------
    # rank[c, i] = #{ j : s[c,j] > s[c,i]  or  (s[c,j] == s[c,i] and j < i) }
    # Built per class with 2-D ops (independent work, not in the serial chain).
    rank = jnp.zeros((n_cls - 1, n_box), jnp.int32)
    cls_iota = lax.broadcasted_iota(jnp.int32, (n_cls - 1, 1), 0)
    for c in range(n_cls - 1):
        s_row = cls_scores[c:c + 1, :]                              # (1, N)
        s_col = to_col(s_row)                                       # (N, 1)
        before = (s_col > s_row) | ((s_col == s_row) & sub_lt_lane)  # [j, i]
        rank_c = jnp.sum(before.astype(jnp.int32), axis=0, keepdims=True)  # (1, N)
        rank = rank + (cls_iota == c).astype(jnp.int32) * rank_c

    # -------------- greedy NMS: 7 classes in parallel, N serial steps -----------
    def greedy_step(t, carry):
        keep, supp = carry
        onehot = (rank == t).astype(f32)                            # box of rank t per class
        is_supp = jnp.sum(supp * onehot, axis=-1, keepdims=True)    # (N_CLS-1, 1)
        not_s = jnp.where(is_supp > 0.0, 0.0, 1.0)
        keep = keep + not_s * onehot
        rows = jnp.dot(onehot, supp_mask, preferred_element_type=f32)  # picked IoU>th rows
        supp = jnp.maximum(supp, not_s * rows)
        return keep, supp

    zeros_cn = jnp.zeros((n_cls - 1, n_box), f32)
    keep, _ = lax.fori_loop(0, n_box, greedy_step, (zeros_cn, zeros_cn),
                            unroll=True)

    # max_conf[i] = max over classes of kept class scores (softmax scores >= 0)
    max_conf = jnp.max(jnp.where(keep > 0.0, cls_scores, 0.0),
                       axis=0, keepdims=True)                       # (1, N)

    # --------- keep_boxes = argsort(max_conf, desc)[:top_k]; gather fc6 ---------
    mc_col = to_col(max_conf)                                       # (N, 1)
    before = (mc_col > max_conf) | ((mc_col == max_conf) & sub_lt_lane)
    rank_mc = jnp.sum(before.astype(jnp.int32), axis=0, keepdims=True)   # (1, N)
    # perm[r, i] = 1 iff box i has rank r; feats = perm[:top_k] @ fc6 (MXU gather)
    perm = (jnp.broadcast_to(rank_mc, (n_box, n_box))
            == lax.broadcasted_iota(jnp.int32, (n_box, n_box), 0)).astype(f32)
    out_ref[0] = jnp.dot(perm[:top_k, :], fc6, preferred_element_type=f32)


def fused_detector_nms(x_t, prop_t, scales_b, w_conv_t, box_embed,
                       w_fc6, b_fc6, w_cls, b_cls, *, inv_n_valid):
    b, c_pad, npix = x_t.shape
    kern = functools.partial(
        fused_kernel, inv_n_valid=inv_n_valid, n_box=N_BOX, n_cls=N_CLS,
        nms_thresh=NMS_THRESH, top_k=TOP_K)
    return pl.pallas_call(
        kern,
        out_shape=jax.ShapeDtypeStruct((b, TOP_K, D_FC6), jnp.float32),
        grid=(b,),
        in_specs=[
            pl.BlockSpec((1, c_pad, npix), lambda i: (i, 0, 0)),   # image, lane-dense (8,1024)
            pl.BlockSpec((1, 4, N_BOX), lambda i: (i, 0, 0)),      # proposals (4, N)
            pl.BlockSpec((1, 1, N_BOX), lambda i: (i, 0, 0)),      # per-image scale (bcast)
            pl.BlockSpec((C_FEAT, C_PAD), lambda i: (0, 0)),       # conv weight (bias folded)
            pl.BlockSpec((N_BOX, C_FEAT), lambda i: (0, 0)),       # box embedding
            pl.BlockSpec((C_FEAT, D_FC6), lambda i: (0, 0)),       # fc6 weight
            pl.BlockSpec((1, D_FC6), lambda i: (0, 0)),            # fc6 bias
            pl.BlockSpec((D_FC6, N_CLS), lambda i: (0, 0)),        # cls weight
            pl.BlockSpec((1, N_CLS), lambda i: (0, 0)),            # cls bias
        ],
        out_specs=pl.BlockSpec((1, TOP_K, D_FC6), lambda i: (i, 0, 0)),
        compiler_params=pltpu.CompilerParams(dimension_semantics=("parallel",)),
    )(x_t, prop_t, scales_b, w_conv_t, box_embed, w_fc6, b_fc6, w_cls, b_cls)


# ------------------------------ wrapper ------------------------------
def init_params(key):
    ks = jax.random.split(key, 8)
    w_rgb = 0.1 * jax.random.normal(ks[0], (C_FEAT, C_IN), jnp.float32)
    b_conv = 0.1 * jax.random.normal(ks[1], (C_FEAT, 1), jnp.float32)
    # conv bias folded into the valid-pixel indicator channel (channel C_IN)
    w_conv_t = jnp.concatenate(
        [w_rgb, b_conv, jnp.zeros((C_FEAT, C_PAD - C_IN - 1), jnp.float32)], axis=1)
    w_fc6 = 0.1 * jax.random.normal(ks[2], (C_FEAT, D_FC6), jnp.float32)
    b_fc6 = 0.1 * jax.random.normal(ks[3], (1, D_FC6), jnp.float32)
    w_cls = 0.1 * jax.random.normal(ks[4], (D_FC6, N_CLS), jnp.float32)
    b_cls = 0.1 * jax.random.normal(ks[5], (1, N_CLS), jnp.float32)
    box_embed = jax.random.normal(ks[6], (N_BOX, C_FEAT), jnp.float32)
    k7a, k7b = jax.random.split(ks[7])
    xy1 = jax.random.uniform(k7a, (B, N_BOX, 2), minval=0.0, maxval=300.0)
    wh = jax.random.uniform(k7b, (B, N_BOX, 2), minval=20.0, maxval=200.0)
    proposals = jnp.concatenate([xy1, xy1 + wh], axis=-1)           # (B, N, 4) xyxy
    proposals_t = jnp.transpose(proposals, (0, 2, 1))               # stored (B, 4, N)
    return dict(w_conv_t=w_conv_t, box_embed=box_embed, w_fc6=w_fc6, b_fc6=b_fc6,
                w_cls=w_cls, b_cls=b_cls, proposals_t=proposals_t)


def vqa_maskrcnn_forward(images_nchw, image_scales, params):
    b, c, h, w = images_nchw.shape
    # to_image_list(size_divisible=32): zero-pad spatial dims to multiples of 32.
    hp = ((h + 31) // 32) * 32
    wp = ((w + 31) // 32) * 32
    npix = hp * wp
    x = jnp.pad(images_nchw.astype(jnp.float32),
                ((0, 0), (0, 0), (0, hp - h), (0, wp - w))).reshape(b, c, npix)
    valid = jnp.pad(jnp.ones((h, w), jnp.float32), ((0, hp - h), (0, wp - w)))
    valid = jnp.broadcast_to(valid.reshape(1, 1, npix), (b, 1, npix))
    pad_ch = jnp.zeros((b, C_PAD - c - 1, npix), jnp.float32)
    x_t = jnp.concatenate([x, valid, pad_ch], axis=1)               # (B, C_PAD, NPIX)
    scales_b = jnp.broadcast_to(image_scales.reshape(b, 1, 1), (b, 1, N_BOX))
    # NOTE: assumes all images in the batch share (h, w), as the batched array
    # input implies; inv_n_valid is a trace-time constant.
    inv_n_valid = 1.0 / float(h * w)
    return fused_detector_nms(
        x_t, params["proposals_t"], scales_b, params["w_conv_t"],
        params["box_embed"], params["w_fc6"], params["b_fc6"],
        params["w_cls"], params["b_cls"], inv_n_valid=inv_n_valid)


if __name__ == "__main__":
    key = jax.random.PRNGKey(0)
    kp, ki = jax.random.split(key)
    params = init_params(kp)
    images = jax.random.normal(ki, (B, C_IN, H_IN, W_IN), jnp.float32)   # NCHW
    image_scales = jnp.array([1.5, 1.2], jnp.float32)

    feats = jax.jit(vqa_maskrcnn_forward)(images, image_scales, params)
    feats = jax.block_until_ready(feats)
    assert feats.shape == (B, TOP_K, D_FC6) and feats.dtype == jnp.float32
    print("KERNEL_OK")
</pallas_src>

<mosaic_0001>
module attributes {stable_mosaic.version = 11 : i64} {
  func.func @fused_kernel(%arg0: i32, %arg1: memref<1x8x1024xf32, #tpu.memory_space<vmem>>, %arg2: memref<1x4x16xf32, #tpu.memory_space<vmem>>, %arg3: memref<1x1x16xf32, #tpu.memory_space<vmem>>, %arg4: memref<32x8xf32, #tpu.memory_space<vmem>>, %arg5: memref<16x32xf32, #tpu.memory_space<vmem>>, %arg6: memref<32x64xf32, #tpu.memory_space<vmem>>, %arg7: memref<1x64xf32, #tpu.memory_space<vmem>>, %arg8: memref<64x8xf32, #tpu.memory_space<vmem>>, %arg9: memref<1x8xf32, #tpu.memory_space<vmem>>, %arg10: memref<1x16x64xf32, #tpu.memory_space<vmem>>) attributes {dimension_semantics = [#tpu.dimension_semantics<parallel>], iteration_bounds = array<i64: 2>, scalar_prefetch = 0 : i64, scratch_operands = 0 : i64, tpu.core_type = #tpu.core_type<tc>, window_params = [{transform_indices = @transform_0, window_bounds = array<i64: 1, 8, 1024>}, {transform_indices = @transform_1, window_bounds = array<i64: 1, 4, 16>}, {transform_indices = @transform_2, window_bounds = array<i64: 1, 1, 16>}, {pipeline_mode = #tpu.pipeline_mode<synchronous>, transform_indices = @transform_3, window_bounds = array<i64: 32, 8>}, {pipeline_mode = #tpu.pipeline_mode<synchronous>, transform_indices = @transform_4, window_bounds = array<i64: 16, 32>}, {pipeline_mode = #tpu.pipeline_mode<synchronous>, transform_indices = @transform_5, window_bounds = array<i64: 32, 64>}, {pipeline_mode = #tpu.pipeline_mode<synchronous>, transform_indices = @transform_6, window_bounds = array<i64: 1, 64>}, {pipeline_mode = #tpu.pipeline_mode<synchronous>, transform_indices = @transform_7, window_bounds = array<i64: 64, 8>}, {pipeline_mode = #tpu.pipeline_mode<synchronous>, transform_indices = @transform_8, window_bounds = array<i64: 1, 8>}, {transform_indices = @transform_9, window_bounds = array<i64: 1, 16, 64>}]} {
    %c0 = arith.constant 0 : index
    %c0_0 = arith.constant 0 : index
    %c0_1 = arith.constant 0 : index
    %0 = vector.load %arg1[%c0, %c0_0, %c0_1] : memref<1x8x1024xf32, #tpu.memory_space<vmem>>, vector<1x8x1024xf32>
    %1 = vector.shape_cast %0 : vector<1x8x1024xf32> to vector<8x1024xf32>
    %c0_2 = arith.constant 0 : index
    %c0_3 = arith.constant 0 : index
    %2 = vector.load %arg4[%c0_2, %c0_3] : memref<32x8xf32, #tpu.memory_space<vmem>>, vector<32x8xf32>
    %cst = arith.constant dense<0.000000e+00> : vector<32x1024xf32>
    %3 = tpu.matmul %2, %1, %cst {dimension_numbers = #tpu.dot_dimension_numbers<[1], [0], [0], [1], [0, 0, 1, 1], [], []>} : vector<32x8xf32>, vector<8x1024xf32>, vector<32x1024xf32> -> vector<32x1024xf32>
    %cst_4 = arith.constant 0.000000e+00 : f32
    %4 = vector.broadcast %cst_4 : f32 to vector<32x1024xf32>
    %5 = arith.maximumf %3, %4 : vector<32x1024xf32>
    %cst_5 = arith.constant 1.000000e+00 : f32
    %6 = vector.broadcast %cst_5 : f32 to vector<1x1024xf32>
    %cst_6 = arith.constant dense<0.000000e+00> : vector<1x32xf32>
    %7 = tpu.matmul %6, %5, %cst_6 {dimension_numbers = #tpu.dot_dimension_numbers<[1], [1], [0], [0], [0, 0, 1, 0], [], []>} : vector<1x1024xf32>, vector<32x1024xf32>, vector<1x32xf32> -> vector<1x32xf32>
    %cst_7 = arith.constant 0.00111111114 : f32
    %8 = vector.broadcast %cst_7 : f32 to vector<1x32xf32>
    %9 = arith.mulf %7, %8 : vector<1x32xf32>
    %c0_8 = arith.constant 0 : index
    %c0_9 = arith.constant 0 : index
    %10 = vector.load %arg5[%c0_8, %c0_9] : memref<16x32xf32, #tpu.memory_space<vmem>>, vector<16x32xf32>
    %11 = vector.broadcast %9 : vector<1x32xf32> to vector<16x32xf32>
    %12 = arith.addf %11, %10 : vector<16x32xf32>
    %c0_10 = arith.constant 0 : index
    %c0_11 = arith.constant 0 : index
    %13 = vector.load %arg6[%c0_10, %c0_11] : memref<32x64xf32, #tpu.memory_space<vmem>>, vector<32x64xf32>
    %cst_12 = arith.constant dense<0.000000e+00> : vector<16x64xf32>
    %14 = tpu.matmul %12, %13, %cst_12 {dimension_numbers = #tpu.dot_dimension_numbers<[1], [0], [0], [1], [0, 0, 1, 1], [], []>} : vector<16x32xf32>, vector<32x64xf32>, vector<16x64xf32> -> vector<16x64xf32>
    %c0_13 = arith.constant 0 : index
    %c0_14 = arith.constant 0 : index
    %15 = vector.load %arg7[%c0_13, %c0_14] : memref<1x64xf32, #tpu.memory_space<vmem>>, vector<1x64xf32>
    %16 = vector.broadcast %15 : vector<1x64xf32> to vector<16x64xf32>
    %17 = arith.addf %14, %16 : vector<16x64xf32>
    %cst_15 = arith.constant 0.000000e+00 : f32
    %18 = vector.broadcast %cst_15 : f32 to vector<16x64xf32>
    %19 = arith.maximumf %17, %18 : vector<16x64xf32>
    %c0_16 = arith.constant 0 : index
    %c0_17 = arith.constant 0 : index
    %20 = vector.load %arg8[%c0_16, %c0_17] : memref<64x8xf32, #tpu.memory_space<vmem>>, vector<64x8xf32>
    %cst_18 = arith.constant dense<0.000000e+00> : vector<16x8xf32>
    %21 = tpu.matmul %19, %20, %cst_18 {dimension_numbers = #tpu.dot_dimension_numbers<[1], [0], [0], [1], [0, 0, 1, 1], [], []>} : vector<16x64xf32>, vector<64x8xf32>, vector<16x8xf32> -> vector<16x8xf32>
    %c0_19 = arith.constant 0 : index
    %c0_20 = arith.constant 0 : index
    %22 = vector.load %arg9[%c0_19, %c0_20] : memref<1x8xf32, #tpu.memory_space<vmem>>, vector<1x8xf32>
    %23 = vector.broadcast %22 : vector<1x8xf32> to vector<16x8xf32>
    %24 = arith.addf %21, %23 : vector<16x8xf32>
    %cst_21 = arith.constant dense<0xFF800000> : vector<16xf32>
    %25 = vector.multi_reduction <maximumf>, %24, %cst_21 [1] : vector<16x8xf32> to vector<16xf32>
    %26 = vector.shape_cast %25 : vector<16xf32> to vector<16x1xf32>
    %27 = vector.broadcast %26 : vector<16x1xf32> to vector<16x8xf32>
    %28 = arith.subf %24, %27 : vector<16x8xf32>
    %29 = math.exp %28 : vector<16x8xf32>
    %cst_22 = arith.constant dense<0.000000e+00> : vector<16xf32>
    %30 = vector.multi_reduction <add>, %29, %cst_22 [1] : vector<16x8xf32> to vector<16xf32>
    %31 = vector.shape_cast %30 : vector<16xf32> to vector<16x1xf32>
    %32 = vector.broadcast %31 : vector<16x1xf32> to vector<16x8xf32>
    %33 = arith.divf %29, %32 : vector<16x8xf32>
    %34 = tpu.iota {dimensions = array<i32: 1>} : vector<7x8xi32>
    %35 = tpu.iota {dimensions = array<i32: 0>} : vector<7x8xi32>
    %c1_i32 = arith.constant 1 : i32
    %36 = vector.broadcast %c1_i32 : i32 to vector<7x8xi32>
    %37 = arith.addi %35, %36 : vector<7x8xi32>
    %38 = arith.cmpi eq, %34, %37 : vector<7x8xi32>
    %39 = arith.extui %38 : vector<7x8xi1> to vector<7x8xi32>
    %40 = arith.sitofp %39 : vector<7x8xi32> to vector<7x8xf32>
    %cst_23 = arith.constant dense<0.000000e+00> : vector<7x16xf32>
    %41 = tpu.matmul %40, %33, %cst_23 {dimension_numbers = #tpu.dot_dimension_numbers<[1], [1], [0], [0], [0, 0, 1, 0], [], []>} : vector<7x8xf32>, vector<16x8xf32>, vector<7x16xf32> -> vector<7x16xf32>
    %c0_24 = arith.constant 0 : index
    %c0_25 = arith.constant 0 : index
    %c0_26 = arith.constant 0 : index
    %42 = vector.load %arg2[%c0_24, %c0_25, %c0_26] : memref<1x4x16xf32, #tpu.memory_space<vmem>>, vector<1x4x16xf32>
    %43 = vector.shape_cast %42 : vector<1x4x16xf32> to vector<4x16xf32>
    %c0_27 = arith.constant 0 : index
    %c0_28 = arith.constant 0 : index
    %c0_29 = arith.constant 0 : index
    %44 = vector.load %arg3[%c0_27, %c0_28, %c0_29] : memref<1x1x16xf32, #tpu.memory_space<vmem>>, vector<1x1x16xf32>
    %45 = vector.shape_cast %44 : vector<1x1x16xf32> to vector<1x16xf32>
    %46 = vector.broadcast %45 : vector<1x16xf32> to vector<4x16xf32>
    %47 = arith.divf %43, %46 : vector<4x16xf32>
    %48 = tpu.iota {dimensions = array<i32: 0>} : vector<16x16xi32>
    %49 = tpu.iota {dimensions = array<i32: 1>} : vector<16x16xi32>
    %50 = arith.cmpi eq, %48, %49 : vector<16x16xi32>
    %51 = arith.extui %50 : vector<16x16xi1> to vector<16x16xi32>
    %52 = arith.sitofp %51 : vector<16x16xi32> to vector<16x16xf32>
    %53 = tpu.iota {dimensions = array<i32: 0>} : vector<16x16xi32>
    %54 = tpu.iota {dimensions = array<i32: 1>} : vector<16x16xi32>
    %55 = arith.cmpi slt, %53, %54 : vector<16x16xi32>
    %56 = vector.extract_strided_slice %47 {offsets = [0, 0], sizes = [1, 16], strides = [1, 1]} : vector<4x16xf32> to vector<1x16xf32>
    %57 = vector.extract_strided_slice %47 {offsets = [1, 0], sizes = [1, 16], strides = [1, 1]} : vector<4x16xf32> to vector<1x16xf32>
    %58 = vector.extract_strided_slice %47 {offsets = [2, 0], sizes = [1, 16], strides = [1, 1]} : vector<4x16xf32> to vector<1x16xf32>
    %59 = vector.extract_strided_slice %47 {offsets = [3, 0], sizes = [1, 16], strides = [1, 1]} : vector<4x16xf32> to vector<1x16xf32>
    %60 = vector.broadcast %56 : vector<1x16xf32> to vector<16x16xf32>
    %61 = arith.mulf %60, %52 : vector<16x16xf32>
    %cst_30 = arith.constant dense<0.000000e+00> : vector<16xf32>
    %62 = vector.multi_reduction <add>, %61, %cst_30 [1] : vector<16x16xf32> to vector<16xf32>
    %63 = vector.shape_cast %62 : vector<16xf32> to vector<16x1xf32>
    %64 = vector.broadcast %57 : vector<1x16xf32> to vector<16x16xf32>
    %65 = arith.mulf %64, %52 : vector<16x16xf32>
    %cst_31 = arith.constant dense<0.000000e+00> : vector<16xf32>
    %66 = vector.multi_reduction <add>, %65, %cst_31 [1] : vector<16x16xf32> to vector<16xf32>
    %67 = vector.shape_cast %66 : vector<16xf32> to vector<16x1xf32>
    %68 = vector.broadcast %58 : vector<1x16xf32> to vector<16x16xf32>
    %69 = arith.mulf %68, %52 : vector<16x16xf32>
    %cst_32 = arith.constant dense<0.000000e+00> : vector<16xf32>
    %70 = vector.multi_reduction <add>, %69, %cst_32 [1] : vector<16x16xf32> to vector<16xf32>
    %71 = vector.shape_cast %70 : vector<16xf32> to vector<16x1xf32>
    %72 = vector.broadcast %59 : vector<1x16xf32> to vector<16x16xf32>
    %73 = arith.mulf %72, %52 : vector<16x16xf32>
    %cst_33 = arith.constant dense<0.000000e+00> : vector<16xf32>
    %74 = vector.multi_reduction <add>, %73, %cst_33 [1] : vector<16x16xf32> to vector<16xf32>
    %75 = vector.shape_cast %74 : vector<16xf32> to vector<16x1xf32>
    %76 = arith.subf %58, %56 : vector<1x16xf32>
    %cst_34 = arith.constant 1.000000e+00 : f32
    %77 = vector.broadcast %cst_34 : f32 to vector<1x16xf32>
    %78 = arith.addf %76, %77 : vector<1x16xf32>
    %79 = arith.subf %59, %57 : vector<1x16xf32>
    %cst_35 = arith.constant 1.000000e+00 : f32
    %80 = vector.broadcast %cst_35 : f32 to vector<1x16xf32>
    %81 = arith.addf %79, %80 : vector<1x16xf32>
    %82 = arith.mulf %78, %81 : vector<1x16xf32>
    %83 = arith.subf %71, %63 : vector<16x1xf32>
    %cst_36 = arith.constant 1.000000e+00 : f32
    %84 = vector.broadcast %cst_36 : f32 to vector<16x1xf32>
    %85 = arith.addf %83, %84 : vector<16x1xf32>
    %86 = arith.subf %75, %67 : vector<16x1xf32>
    %cst_37 = arith.constant 1.000000e+00 : f32
    %87 = vector.broadcast %cst_37 : f32 to vector<16x1xf32>
    %88 = arith.addf %86, %87 : vector<16x1xf32>
    %89 = arith.mulf %85, %88 : vector<16x1xf32>
    %90 = vector.broadcast %71 : vector<16x1xf32> to vector<16x16xf32>
    %91 = vector.broadcast %58 : vector<1x16xf32> to vector<16x16xf32>
    %92 = arith.minimumf %90, %91 : vector<16x16xf32>
    %93 = vector.broadcast %63 : vector<16x1xf32> to vector<16x16xf32>
    %94 = vector.broadcast %56 : vector<1x16xf32> to vector<16x16xf32>
    %95 = arith.maximumf %93, %94 : vector<16x16xf32>
    %96 = arith.subf %92, %95 : vector<16x16xf32>
    %cst_38 = arith.constant 1.000000e+00 : f32
    %97 = vector.broadcast %cst_38 : f32 to vector<16x16xf32>
    %98 = arith.addf %96, %97 : vector<16x16xf32>
    %cst_39 = arith.constant 0.000000e+00 : f32
    %99 = vector.broadcast %cst_39 : f32 to vector<16x16xf32>
    %100 = arith.maximumf %98, %99 : vector<16x16xf32>
    %101 = vector.broadcast %75 : vector<16x1xf32> to vector<16x16xf32>
    %102 = vector.broadcast %59 : vector<1x16xf32> to vector<16x16xf32>
    %103 = arith.minimumf %101, %102 : vector<16x16xf32>
    %104 = vector.broadcast %67 : vector<16x1xf32> to vector<16x16xf32>
    %105 = vector.broadcast %57 : vector<1x16xf32> to vector<16x16xf32>
    %106 = arith.maximumf %104, %105 : vector<16x16xf32>
    %107 = arith.subf %103, %106 : vector<16x16xf32>
    %cst_40 = arith.constant 1.000000e+00 : f32
    %108 = vector.broadcast %cst_40 : f32 to vector<16x16xf32>
    %109 = arith.addf %107, %108 : vector<16x16xf32>
    %cst_41 = arith.constant 0.000000e+00 : f32
    %110 = vector.broadcast %cst_41 : f32 to vector<16x16xf32>
    %111 = arith.maximumf %109, %110 : vector<16x16xf32>
    %112 = arith.mulf %100, %111 : vector<16x16xf32>
    %113 = vector.broadcast %89 : vector<16x1xf32> to vector<16x16xf32>
    %114 = vector.broadcast %82 : vector<1x16xf32> to vector<16x16xf32>
    %115 = arith.addf %113, %114 : vector<16x16xf32>
    %116 = arith.subf %115, %112 : vector<16x16xf32>
    %117 = arith.divf %112, %116 : vector<16x16xf32>
    %cst_42 = arith.constant 5.000000e-01 : f32
    %118 = vector.broadcast %cst_42 : f32 to vector<16x16xf32>
    %119 = arith.cmpf ogt, %117, %118 : vector<16x16xf32>
    %120 = arith.extui %119 : vector<16x16xi1> to vector<16x16xi32>
    %121 = arith.sitofp %120 : vector<16x16xi32> to vector<16x16xf32>
    %c0_i32 = arith.constant 0 : i32
    %122 = vector.broadcast %c0_i32 : i32 to vector<7x16xi32>
    %123 = tpu.iota {dimensions = array<i32: 0>} : vector<7x1xi32>
    %124 = vector.extract_strided_slice %41 {offsets = [0, 0], sizes = [1, 16], strides = [1, 1]} : vector<7x16xf32> to vector<1x16xf32>
    %125 = vector.broadcast %124 : vector<1x16xf32> to vector<16x16xf32>
    %126 = arith.mulf %125, %52 : vector<16x16xf32>
    %cst_43 = arith.constant dense<0.000000e+00> : vector<16xf32>
    %127 = vector.multi_reduction <add>, %126, %cst_43 [1] : vector<16x16xf32> to vector<16xf32>
    %128 = vector.shape_cast %127 : vector<16xf32> to vector<16x1xf32>
    %129 = vector.broadcast %128 : vector<16x1xf32> to vector<16x16xf32>
    %130 = vector.broadcast %124 : vector<1x16xf32> to vector<16x16xf32>
    %131 = arith.cmpf ogt, %129, %130 : vector<16x16xf32>
    %132 = vector.broadcast %128 : vector<16x1xf32> to vector<16x16xf32>
    %133 = vector.broadcast %124 : vector<1x16xf32> to vector<16x16xf32>
    %134 = arith.cmpf oeq, %132, %133 : vector<16x16xf32>
    %135 = arith.andi %134, %55 : vector<16x16xi1>
    %136 = arith.ori %131, %135 : vector<16x16xi1>
    %137 = arith.extui %136 : vector<16x16xi1> to vector<16x16xi32>
    %cst_44 = arith.constant dense<0> : vector<16xi32>
    %138 = vector.multi_reduction <add>, %137, %cst_44 [0] : vector<16x16xi32> to vector<16xi32>
    %139 = vector.shape_cast %138 : vector<16xi32> to vector<1x16xi32>
    %c0_i32_45 = arith.constant 0 : i32
    %140 = vector.broadcast %c0_i32_45 : i32 to vector<7x1xi32>
    %141 = arith.cmpi eq, %123, %140 : vector<7x1xi32>
    %142 = arith.extui %141 : vector<7x1xi1> to vector<7x1xi32>
    %143 = vector.broadcast %142 : vector<7x1xi32> to vector<7x16xi32>
    %144 = vector.broadcast %139 : vector<1x16xi32> to vector<7x16xi32>
    %145 = arith.muli %143, %144 : vector<7x16xi32>
    %146 = arith.addi %122, %145 : vector<7x16xi32>
    %147 = vector.extract_strided_slice %41 {offsets = [1, 0], sizes = [1, 16], strides = [1, 1]} : vector<7x16xf32> to vector<1x16xf32>
    %148 = vector.broadcast %147 : vector<1x16xf32> to vector<16x16xf32>
    %149 = arith.mulf %148, %52 : vector<16x16xf32>
    %cst_46 = arith.constant dense<0.000000e+00> : vector<16xf32>
    %150 = vector.multi_reduction <add>, %149, %cst_46 [1] : vector<16x16xf32> to vector<16xf32>
    %151 = vector.shape_cast %150 : vector<16xf32> to vector<16x1xf32>
    %152 = vector.broadcast %151 : vector<16x1xf32> to vector<16x16xf32>
    %153 = vector.broadcast %147 : vector<1x16xf32> to vector<16x16xf32>
    %154 = arith.cmpf ogt, %152, %153 : vector<16x16xf32>
    %155 = vector.broadcast %151 : vector<16x1xf32> to vector<16x16xf32>
    %156 = vector.broadcast %147 : vector<1x16xf32> to vector<16x16xf32>
    %157 = arith.cmpf oeq, %155, %156 : vector<16x16xf32>
    %158 = arith.andi %157, %55 : vector<16x16xi1>
    %159 = arith.ori %154, %158 : vector<16x16xi1>
    %160 = arith.extui %159 : vector<16x16xi1> to vector<16x16xi32>
    %cst_47 = arith.constant dense<0> : vector<16xi32>
    %161 = vector.multi_reduction <add>, %160, %cst_47 [0] : vector<16x16xi32> to vector<16xi32>
    %162 = vector.shape_cast %161 : vector<16xi32> to vector<1x16xi32>
    %c1_i32_48 = arith.constant 1 : i32
    %163 = vector.broadcast %c1_i32_48 : i32 to vector<7x1xi32>
    %164 = arith.cmpi eq, %123, %163 : vector<7x1xi32>
    %165 = arith.extui %164 : vector<7x1xi1> to vector<7x1xi32>
    %166 = vector.broadcast %165 : vector<7x1xi32> to vector<7x16xi32>
    %167 = vector.broadcast %162 : vector<1x16xi32> to vector<7x16xi32>
    %168 = arith.muli %166, %167 : vector<7x16xi32>
    %169 = arith.addi %146, %168 : vector<7x16xi32>
    %170 = vector.extract_strided_slice %41 {offsets = [2, 0], sizes = [1, 16], strides = [1, 1]} : vector<7x16xf32> to vector<1x16xf32>
    %171 = vector.broadcast %170 : vector<1x16xf32> to vector<16x16xf32>
    %172 = arith.mulf %171, %52 : vector<16x16xf32>
    %cst_49 = arith.constant dense<0.000000e+00> : vector<16xf32>
    %173 = vector.multi_reduction <add>, %172, %cst_49 [1] : vector<16x16xf32> to vector<16xf32>
    %174 = vector.shape_cast %173 : vector<16xf32> to vector<16x1xf32>
    %175 = vector.broadcast %174 : vector<16x1xf32> to vector<16x16xf32>
    %176 = vector.broadcast %170 : vector<1x16xf32> to vector<16x16xf32>
    %177 = arith.cmpf ogt, %175, %176 : vector<16x16xf32>
    %178 = vector.broadcast %174 : vector<16x1xf32> to vector<16x16xf32>
    %179 = vector.broadcast %170 : vector<1x16xf32> to vector<16x16xf32>
    %180 = arith.cmpf oeq, %178, %179 : vector<16x16xf32>
    %181 = arith.andi %180, %55 : vector<16x16xi1>
    %182 = arith.ori %177, %181 : vector<16x16xi1>
    %183 = arith.extui %182 : vector<16x16xi1> to vector<16x16xi32>
    %cst_50 = arith.constant dense<0> : vector<16xi32>
    %184 = vector.multi_reduction <add>, %183, %cst_50 [0] : vector<16x16xi32> to vector<16xi32>
    %185 = vector.shape_cast %184 : vector<16xi32> to vector<1x16xi32>
    %c2_i32 = arith.constant 2 : i32
    %186 = vector.broadcast %c2_i32 : i32 to vector<7x1xi32>
    %187 = arith.cmpi eq, %123, %186 : vector<7x1xi32>
    %188 = arith.extui %187 : vector<7x1xi1> to vector<7x1xi32>
    %189 = vector.broadcast %188 : vector<7x1xi32> to vector<7x16xi32>
    %190 = vector.broadcast %185 : vector<1x16xi32> to vector<7x16xi32>
    %191 = arith.muli %189, %190 : vector<7x16xi32>
    %192 = arith.addi %169, %191 : vector<7x16xi32>
    %193 = vector.extract_strided_slice %41 {offsets = [3, 0], sizes = [1, 16], strides = [1, 1]} : vector<7x16xf32> to vector<1x16xf32>
    %194 = vector.broadcast %193 : vector<1x16xf32> to vector<16x16xf32>
    %195 = arith.mulf %194, %52 : vector<16x16xf32>
    %cst_51 = arith.constant dense<0.000000e+00> : vector<16xf32>
    %196 = vector.multi_reduction <add>, %195, %cst_51 [1] : vector<16x16xf32> to vector<16xf32>
    %197 = vector.shape_cast %196 : vector<16xf32> to vector<16x1xf32>
    %198 = vector.broadcast %197 : vector<16x1xf32> to vector<16x16xf32>
    %199 = vector.broadcast %193 : vector<1x16xf32> to vector<16x16xf32>
    %200 = arith.cmpf ogt, %198, %199 : vector<16x16xf32>
    %201 = vector.broadcast %197 : vector<16x1xf32> to vector<16x16xf32>
    %202 = vector.broadcast %193 : vector<1x16xf32> to vector<16x16xf32>
    %203 = arith.cmpf oeq, %201, %202 : vector<16x16xf32>
    %204 = arith.andi %203, %55 : vector<16x16xi1>
    %205 = arith.ori %200, %204 : vector<16x16xi1>
    %206 = arith.extui %205 : vector<16x16xi1> to vector<16x16xi32>
    %cst_52 = arith.constant dense<0> : vector<16xi32>
    %207 = vector.multi_reduction <add>, %206, %cst_52 [0] : vector<16x16xi32> to vector<16xi32>
    %208 = vector.shape_cast %207 : vector<16xi32> to vector<1x16xi32>
    %c3_i32 = arith.constant 3 : i32
    %209 = vector.broadcast %c3_i32 : i32 to vector<7x1xi32>
    %210 = arith.cmpi eq, %123, %209 : vector<7x1xi32>
    %211 = arith.extui %210 : vector<7x1xi1> to vector<7x1xi32>
    %212 = vector.broadcast %211 : vector<7x1xi32> to vector<7x16xi32>
    %213 = vector.broadcast %208 : vector<1x16xi32> to vector<7x16xi32>
    %214 = arith.muli %212, %213 : vector<7x16xi32>
    %215 = arith.addi %192, %214 : vector<7x16xi32>
    %216 = vector.extract_strided_slice %41 {offsets = [4, 0], sizes = [1, 16], strides = [1, 1]} : vector<7x16xf32> to vector<1x16xf32>
    %217 = vector.broadcast %216 : vector<1x16xf32> to vector<16x16xf32>
    %218 = arith.mulf %217, %52 : vector<16x16xf32>
    %cst_53 = arith.constant dense<0.000000e+00> : vector<16xf32>
    %219 = vector.multi_reduction <add>, %218, %cst_53 [1] : vector<16x16xf32> to vector<16xf32>
    %220 = vector.shape_cast %219 : vector<16xf32> to vector<16x1xf32>
    %221 = vector.broadcast %220 : vector<16x1xf32> to vector<16x16xf32>
    %222 = vector.broadcast %216 : vector<1x16xf32> to vector<16x16xf32>
    %223 = arith.cmpf ogt, %221, %222 : vector<16x16xf32>
    %224 = vector.broadcast %220 : vector<16x1xf32> to vector<16x16xf32>
    %225 = vector.broadcast %216 : vector<1x16xf32> to vector<16x16xf32>
    %226 = arith.cmpf oeq, %224, %225 : vector<16x16xf32>
    %227 = arith.andi %226, %55 : vector<16x16xi1>
    %228 = arith.ori %223, %227 : vector<16x16xi1>
    %229 = arith.extui %228 : vector<16x16xi1> to vector<16x16xi32>
    %cst_54 = arith.constant dense<0> : vector<16xi32>
    %230 = vector.multi_reduction <add>, %229, %cst_54 [0] : vector<16x16xi32> to vector<16xi32>
    %231 = vector.shape_cast %230 : vector<16xi32> to vector<1x16xi32>
    %c4_i32 = arith.constant 4 : i32
    %232 = vector.broadcast %c4_i32 : i32 to vector<7x1xi32>
    %233 = arith.cmpi eq, %123, %232 : vector<7x1xi32>
    %234 = arith.extui %233 : vector<7x1xi1> to vector<7x1xi32>
    %235 = vector.broadcast %234 : vector<7x1xi32> to vector<7x16xi32>
    %236 = vector.broadcast %231 : vector<1x16xi32> to vector<7x16xi32>
    %237 = arith.muli %235, %236 : vector<7x16xi32>
    %238 = arith.addi %215, %237 : vector<7x16xi32>
    %239 = vector.extract_strided_slice %41 {offsets = [5, 0], sizes = [1, 16], strides = [1, 1]} : vector<7x16xf32> to vector<1x16xf32>
    %240 = vector.broadcast %239 : vector<1x16xf32> to vector<16x16xf32>
    %241 = arith.mulf %240, %52 : vector<16x16xf32>
    %cst_55 = arith.constant dense<0.000000e+00> : vector<16xf32>
    %242 = vector.multi_reduction <add>, %241, %cst_55 [1] : vector<16x16xf32> to vector<16xf32>
    %243 = vector.shape_cast %242 : vector<16xf32> to vector<16x1xf32>
    %244 = vector.broadcast %243 : vector<16x1xf32> to vector<16x16xf32>
    %245 = vector.broadcast %239 : vector<1x16xf32> to vector<16x16xf32>
    %246 = arith.cmpf ogt, %244, %245 : vector<16x16xf32>
    %247 = vector.broadcast %243 : vector<16x1xf32> to vector<16x16xf32>
    %248 = vector.broadcast %239 : vector<1x16xf32> to vector<16x16xf32>
    %249 = arith.cmpf oeq, %247, %248 : vector<16x16xf32>
    %250 = arith.andi %249, %55 : vector<16x16xi1>
    %251 = arith.ori %246, %250 : vector<16x16xi1>
    %252 = arith.extui %251 : vector<16x16xi1> to vector<16x16xi32>
    %cst_56 = arith.constant dense<0> : vector<16xi32>
    %253 = vector.multi_reduction <add>, %252, %cst_56 [0] : vector<16x16xi32> to vector<16xi32>
    %254 = vector.shape_cast %253 : vector<16xi32> to vector<1x16xi32>
    %c5_i32 = arith.constant 5 : i32
    %255 = vector.broadcast %c5_i32 : i32 to vector<7x1xi32>
    %256 = arith.cmpi eq, %123, %255 : vector<7x1xi32>
    %257 = arith.extui %256 : vector<7x1xi1> to vector<7x1xi32>
    %258 = vector.broadcast %257 : vector<7x1xi32> to vector<7x16xi32>
    %259 = vector.broadcast %254 : vector<1x16xi32> to vector<7x16xi32>
    %260 = arith.muli %258, %259 : vector<7x16xi32>
    %261 = arith.addi %238, %260 : vector<7x16xi32>
    %262 = vector.extract_strided_slice %41 {offsets = [6, 0], sizes = [1, 16], strides = [1, 1]} : vector<7x16xf32> to vector<1x16xf32>
    %263 = vector.broadcast %262 : vector<1x16xf32> to vector<16x16xf32>
    %264 = arith.mulf %263, %52 : vector<16x16xf32>
    %cst_57 = arith.constant dense<0.000000e+00> : vector<16xf32>
    %265 = vector.multi_reduction <add>, %264, %cst_57 [1] : vector<16x16xf32> to vector<16xf32>
    %266 = vector.shape_cast %265 : vector<16xf32> to vector<16x1xf32>
    %267 = vector.broadcast %266 : vector<16x1xf32> to vector<16x16xf32>
    %268 = vector.broadcast %262 : vector<1x16xf32> to vector<16x16xf32>
    %269 = arith.cmpf ogt, %267, %268 : vector<16x16xf32>
    %270 = vector.broadcast %266 : vector<16x1xf32> to vector<16x16xf32>
    %271 = vector.broadcast %262 : vector<1x16xf32> to vector<16x16xf32>
    %272 = arith.cmpf oeq, %270, %271 : vector<16x16xf32>
    %273 = arith.andi %272, %55 : vector<16x16xi1>
    %274 = arith.ori %269, %273 : vector<16x16xi1>
    %275 = arith.extui %274 : vector<16x16xi1> to vector<16x16xi32>
    %cst_58 = arith.constant dense<0> : vector<16xi32>
    %276 = vector.multi_reduction <add>, %275, %cst_58 [0] : vector<16x16xi32> to vector<16xi32>
    %277 = vector.shape_cast %276 : vector<16xi32> to vector<1x16xi32>
    %c6_i32 = arith.constant 6 : i32
    %278 = vector.broadcast %c6_i32 : i32 to vector<7x1xi32>
    %279 = arith.cmpi eq, %123, %278 : vector<7x1xi32>
    %280 = arith.extui %279 : vector<7x1xi1> to vector<7x1xi32>
    %281 = vector.broadcast %280 : vector<7x1xi32> to vector<7x16xi32>
    %282 = vector.broadcast %277 : vector<1x16xi32> to vector<7x16xi32>
    %283 = arith.muli %281, %282 : vector<7x16xi32>
    %284 = arith.addi %261, %283 : vector<7x16xi32>
    %cst_59 = arith.constant 0.000000e+00 : f32
    %285 = vector.broadcast %cst_59 : f32 to vector<7x16xf32>
    %c0_i32_60 = arith.constant 0 : i32
    %286 = vector.broadcast %c0_i32_60 : i32 to vector<7x16xi32>
    %287 = arith.cmpi eq, %284, %286 : vector<7x16xi32>
    %288 = arith.extui %287 : vector<7x16xi1> to vector<7x16xi32>
    %289 = arith.sitofp %288 : vector<7x16xi32> to vector<7x16xf32>
    %290 = arith.mulf %285, %289 : vector<7x16xf32>
    %cst_61 = arith.constant dense<0.000000e+00> : vector<7xf32>
    %291 = vector.multi_reduction <add>, %290, %cst_61 [1] : vector<7x16xf32> to vector<7xf32>
    %292 = vector.shape_cast %291 : vector<7xf32> to vector<7x1xf32>
    %cst_62 = arith.constant 0.000000e+00 : f32
    %293 = vector.broadcast %cst_62 : f32 to vector<7x1xf32>
    %294 = arith.cmpf ogt, %292, %293 : vector<7x1xf32>
    %cst_63 = arith.constant 0.000000e+00 : f32
    %cst_64 = arith.constant 1.000000e+00 : f32
    %295 = vector.broadcast %cst_63 : f32 to vector<7x1xf32>
    %296 = vector.broadcast %cst_64 : f32 to vector<7x1xf32>
    %297 = arith.select %294, %295, %296 : vector<7x1xi1>, vector<7x1xf32>
    %298 = vector.broadcast %297 : vector<7x1xf32> to vector<7x16xf32>
    %299 = arith.mulf %298, %289 : vector<7x16xf32>
    %300 = arith.addf %285, %299 : vector<7x16xf32>
    %cst_65 = arith.constant dense<0.000000e+00> : vector<7x16xf32>
    %301 = tpu.matmul %289, %121, %cst_65 {dimension_numbers = #tpu.dot_dimension_numbers<[1], [0], [0], [1], [0, 0, 1, 1], [], []>} : vector<7x16xf32>, vector<16x16xf32>, vector<7x16xf32> -> vector<7x16xf32>
    %302 = vector.broadcast %297 : vector<7x1xf32> to vector<7x16xf32>
    %303 = arith.mulf %302, %301 : vector<7x16xf32>
    %304 = arith.maximumf %285, %303 : vector<7x16xf32>
    %c1_i32_66 = arith.constant 1 : i32
    %305 = vector.broadcast %c1_i32_66 : i32 to vector<7x16xi32>
    %306 = arith.cmpi eq, %284, %305 : vector<7x16xi32>
    %307 = arith.extui %306 : vector<7x16xi1> to vector<7x16xi32>
    %308 = arith.sitofp %307 : vector<7x16xi32> to vector<7x16xf32>
    %309 = arith.mulf %304, %308 : vector<7x16xf32>
    %cst_67 = arith.constant dense<0.000000e+00> : vector<7xf32>
    %310 = vector.multi_reduction <add>, %309, %cst_67 [1] : vector<7x16xf32> to vector<7xf32>
    %311 = vector.shape_cast %310 : vector<7xf32> to vector<7x1xf32>
    %cst_68 = arith.constant 0.000000e+00 : f32
    %312 = vector.broadcast %cst_68 : f32 to vector<7x1xf32>
    %313 = arith.cmpf ogt, %311, %312 : vector<7x1xf32>
    %cst_69 = arith.constant 0.000000e+00 : f32
    %cst_70 = arith.constant 1.000000e+00 : f32
    %314 = vector.broadcast %cst_69 : f32 to vector<7x1xf32>
    %315 = vector.broadcast %cst_70 : f32 to vector<7x1xf32>
    %316 = arith.select %313, %314, %315 : vector<7x1xi1>, vector<7x1xf32>
    %317 = vector.broadcast %316 : vector<7x1xf32> to vector<7x16xf32>
    %318 = arith.mulf %317, %308 : vector<7x16xf32>
    %319 = arith.addf %300, %318 : vector<7x16xf32>
    %cst_71 = arith.constant dense<0.000000e+00> : vector<7x16xf32>
    %320 = tpu.matmul %308, %121, %cst_71 {dimension_numbers = #tpu.dot_dimension_numbers<[1], [0], [0], [1], [0, 0, 1, 1], [], []>} : vector<7x16xf32>, vector<16x16xf32>, vector<7x16xf32> -> vector<7x16xf32>
    %321 = vector.broadcast %316 : vector<7x1xf32> to vector<7x16xf32>
    %322 = arith.mulf %321, %320 : vector<7x16xf32>
    %323 = arith.maximumf %304, %322 : vector<7x16xf32>
    %c2_i32_72 = arith.constant 2 : i32
    %324 = vector.broadcast %c2_i32_72 : i32 to vector<7x16xi32>
    %325 = arith.cmpi eq, %284, %324 : vector<7x16xi32>
    %326 = arith.extui %325 : vector<7x16xi1> to vector<7x16xi32>
    %327 = arith.sitofp %326 : vector<7x16xi32> to vector<7x16xf32>
    %328 = arith.mulf %323, %327 : vector<7x16xf32>
    %cst_73 = arith.constant dense<0.000000e+00> : vector<7xf32>
    %329 = vector.multi_reduction <add>, %328, %cst_73 [1] : vector<7x16xf32> to vector<7xf32>
    %330 = vector.shape_cast %329 : vector<7xf32> to vector<7x1xf32>
    %cst_74 = arith.constant 0.000000e+00 : f32
    %331 = vector.broadcast %cst_74 : f32 to vector<7x1xf32>
    %332 = arith.cmpf ogt, %330, %331 : vector<7x1xf32>
    %cst_75 = arith.constant 0.000000e+00 : f32
    %cst_76 = arith.constant 1.000000e+00 : f32
    %333 = vector.broadcast %cst_75 : f32 to vector<7x1xf32>
    %334 = vector.broadcast %cst_76 : f32 to vector<7x1xf32>
    %335 = arith.select %332, %333, %334 : vector<7x1xi1>, vector<7x1xf32>
    %336 = vector.broadcast %335 : vector<7x1xf32> to vector<7x16xf32>
    %337 = arith.mulf %336, %327 : vector<7x16xf32>
    %338 = arith.addf %319, %337 : vector<7x16xf32>
    %cst_77 = arith.constant dense<0.000000e+00> : vector<7x16xf32>
    %339 = tpu.matmul %327, %121, %cst_77 {dimension_numbers = #tpu.dot_dimension_numbers<[1], [0], [0], [1], [0, 0, 1, 1], [], []>} : vector<7x16xf32>, vector<16x16xf32>, vector<7x16xf32> -> vector<7x16xf32>
    %340 = vector.broadcast %335 : vector<7x1xf32> to vector<7x16xf32>
    %341 = arith.mulf %340, %339 : vector<7x16xf32>
    %342 = arith.maximumf %323, %341 : vector<7x16xf32>
    %c3_i32_78 = arith.constant 3 : i32
    %343 = vector.broadcast %c3_i32_78 : i32 to vector<7x16xi32>
    %344 = arith.cmpi eq, %284, %343 : vector<7x16xi32>
    %345 = arith.extui %344 : vector<7x16xi1> to vector<7x16xi32>
    %346 = arith.sitofp %345 : vector<7x16xi32> to vector<7x16xf32>
    %347 = arith.mulf %342, %346 : vector<7x16xf32>
    %cst_79 = arith.constant dense<0.000000e+00> : vector<7xf32>
    %348 = vector.multi_reduction <add>, %347, %cst_79 [1] : vector<7x16xf32> to vector<7xf32>
    %349 = vector.shape_cast %348 : vector<7xf32> to vector<7x1xf32>
    %cst_80 = arith.constant 0.000000e+00 : f32
    %350 = vector.broadcast %cst_80 : f32 to vector<7x1xf32>
    %351 = arith.cmpf ogt, %349, %350 : vector<7x1xf32>
    %cst_81 = arith.constant 0.000000e+00 : f32
    %cst_82 = arith.constant 1.000000e+00 : f32
    %352 = vector.broadcast %cst_81 : f32 to vector<7x1xf32>
    %353 = vector.broadcast %cst_82 : f32 to vector<7x1xf32>
    %354 = arith.select %351, %352, %353 : vector<7x1xi1>, vector<7x1xf32>
    %355 = vector.broadcast %354 : vector<7x1xf32> to vector<7x16xf32>
    %356 = arith.mulf %355, %346 : vector<7x16xf32>
    %357 = arith.addf %338, %356 : vector<7x16xf32>
    %cst_83 = arith.constant dense<0.000000e+00> : vector<7x16xf32>
    %358 = tpu.matmul %346, %121, %cst_83 {dimension_numbers = #tpu.dot_dimension_numbers<[1], [0], [0], [1], [0, 0, 1, 1], [], []>} : vector<7x16xf32>, vector<16x16xf32>, vector<7x16xf32> -> vector<7x16xf32>
    %359 = vector.broadcast %354 : vector<7x1xf32> to vector<7x16xf32>
    %360 = arith.mulf %359, %358 : vector<7x16xf32>
    %361 = arith.maximumf %342, %360 : vector<7x16xf32>
    %c4_i32_84 = arith.constant 4 : i32
    %362 = vector.broadcast %c4_i32_84 : i32 to vector<7x16xi32>
    %363 = arith.cmpi eq, %284, %362 : vector<7x16xi32>
    %364 = arith.extui %363 : vector<7x16xi1> to vector<7x16xi32>
    %365 = arith.sitofp %364 : vector<7x16xi32> to vector<7x16xf32>
    %366 = arith.mulf %361, %365 : vector<7x16xf32>
    %cst_85 = arith.constant dense<0.000000e+00> : vector<7xf32>
    %367 = vector.multi_reduction <add>, %366, %cst_85 [1] : vector<7x16xf32> to vector<7xf32>
    %368 = vector.shape_cast %367 : vector<7xf32> to vector<7x1xf32>
    %cst_86 = arith.constant 0.000000e+00 : f32
    %369 = vector.broadcast %cst_86 : f32 to vector<7x1xf32>
    %370 = arith.cmpf ogt, %368, %369 : vector<7x1xf32>
    %cst_87 = arith.constant 0.000000e+00 : f32
    %cst_88 = arith.constant 1.000000e+00 : f32
    %371 = vector.broadcast %cst_87 : f32 to vector<7x1xf32>
    %372 = vector.broadcast %cst_88 : f32 to vector<7x1xf32>
    %373 = arith.select %370, %371, %372 : vector<7x1xi1>, vector<7x1xf32>
    %374 = vector.broadcast %373 : vector<7x1xf32> to vector<7x16xf32>
    %375 = arith.mulf %374, %365 : vector<7x16xf32>
    %376 = arith.addf %357, %375 : vector<7x16xf32>
    %cst_89 = arith.constant dense<0.000000e+00> : vector<7x16xf32>
    %377 = tpu.matmul %365, %121, %cst_89 {dimension_numbers = #tpu.dot_dimension_numbers<[1], [0], [0], [1], [0, 0, 1, 1], [], []>} : vector<7x16xf32>, vector<16x16xf32>, vector<7x16xf32> -> vector<7x16xf32>
    %378 = vector.broadcast %373 : vector<7x1xf32> to vector<7x16xf32>
    %379 = arith.mulf %378, %377 : vector<7x16xf32>
    %380 = arith.maximumf %361, %379 : vector<7x16xf32>
    %c5_i32_90 = arith.constant 5 : i32
    %381 = vector.broadcast %c5_i32_90 : i32 to vector<7x16xi32>
    %382 = arith.cmpi eq, %284, %381 : vector<7x16xi32>
    %383 = arith.extui %382 : vector<7x16xi1> to vector<7x16xi32>
    %384 = arith.sitofp %383 : vector<7x16xi32> to vector<7x16xf32>
    %385 = arith.mulf %380, %384 : vector<7x16xf32>
    %cst_91 = arith.constant dense<0.000000e+00> : vector<7xf32>
    %386 = vector.multi_reduction <add>, %385, %cst_91 [1] : vector<7x16xf32> to vector<7xf32>
    %387 = vector.shape_cast %386 : vector<7xf32> to vector<7x1xf32>
    %cst_92 = arith.constant 0.000000e+00 : f32
    %388 = vector.broadcast %cst_92 : f32 to vector<7x1xf32>
    %389 = arith.cmpf ogt, %387, %388 : vector<7x1xf32>
    %cst_93 = arith.constant 0.000000e+00 : f32
    %cst_94 = arith.constant 1.000000e+00 : f32
    %390 = vector.broadcast %cst_93 : f32 to vector<7x1xf32>
    %391 = vector.broadcast %cst_94 : f32 to vector<7x1xf32>
    %392 = arith.select %389, %390, %391 : vector<7x1xi1>, vector<7x1xf32>
    %393 = vector.broadcast %392 : vector<7x1xf32> to vector<7x16xf32>
    %394 = arith.mulf %393, %384 : vector<7x16xf32>
    %395 = arith.addf %376, %394 : vector<7x16xf32>
    %cst_95 = arith.constant dense<0.000000e+00> : vector<7x16xf32>
    %396 = tpu.matmul %384, %121, %cst_95 {dimension_numbers = #tpu.dot_dimension_numbers<[1], [0], [0], [1], [0, 0, 1, 1], [], []>} : vector<7x16xf32>, vector<16x16xf32>, vector<7x16xf32> -> vector<7x16xf32>
    %397 = vector.broadcast %392 : vector<7x1xf32> to vector<7x16xf32>
    %398 = arith.mulf %397, %396 : vector<7x16xf32>
    %399 = arith.maximumf %380, %398 : vector<7x16xf32>
    %c6_i32_96 = arith.constant 6 : i32
    %400 = vector.broadcast %c6_i32_96 : i32 to vector<7x16xi32>
    %401 = arith.cmpi eq, %284, %400 : vector<7x16xi32>
    %402 = arith.extui %401 : vector<7x16xi1> to vector<7x16xi32>
    %403 = arith.sitofp %402 : vector<7x16xi32> to vector<7x16xf32>
    %404 = arith.mulf %399, %403 : vector<7x16xf32>
    %cst_97 = arith.constant dense<0.000000e+00> : vector<7xf32>
    %405 = vector.multi_reduction <add>, %404, %cst_97 [1] : vector<7x16xf32> to vector<7xf32>
    %406 = vector.shape_cast %405 : vector<7xf32> to vector<7x1xf32>
    %cst_98 = arith.constant 0.000000e+00 : f32
    %407 = vector.broadcast %cst_98 : f32 to vector<7x1xf32>
    %408 = arith.cmpf ogt, %406, %407 : vector<7x1xf32>
    %cst_99 = arith.constant 0.000000e+00 : f32
    %cst_100 = arith.constant 1.000000e+00 : f32
    %409 = vector.broadcast %cst_99 : f32 to vector<7x1xf32>
    %410 = vector.broadcast %cst_100 : f32 to vector<7x1xf32>
    %411 = arith.select %408, %409, %410 : vector<7x1xi1>, vector<7x1xf32>
    %412 = vector.broadcast %411 : vector<7x1xf32> to vector<7x16xf32>
    %413 = arith.mulf %412, %403 : vector<7x16xf32>
    %414 = arith.addf %395, %413 : vector<7x16xf32>
    %cst_101 = arith.constant dense<0.000000e+00> : vector<7x16xf32>
    %415 = tpu.matmul %403, %121, %cst_101 {dimension_numbers = #tpu.dot_dimension_numbers<[1], [0], [0], [1], [0, 0, 1, 1], [], []>} : vector<7x16xf32>, vector<16x16xf32>, vector<7x16xf32> -> vector<7x16xf32>
    %416 = vector.broadcast %411 : vector<7x1xf32> to vector<7x16xf32>
    %417 = arith.mulf %416, %415 : vector<7x16xf32>
    %418 = arith.maximumf %399, %417 : vector<7x16xf32>
    %c7_i32 = arith.constant 7 : i32
    %419 = vector.broadcast %c7_i32 : i32 to vector<7x16xi32>
    %420 = arith.cmpi eq, %284, %419 : vector<7x16xi32>
    %421 = arith.extui %420 : vector<7x16xi1> to vector<7x16xi32>
    %422 = arith.sitofp %421 : vector<7x16xi32> to vector<7x16xf32>
    %423 = arith.mulf %418, %422 : vector<7x16xf32>
    %cst_102 = arith.constant dense<0.000000e+00> : vector<7xf32>
    %424 = vector.multi_reduction <add>, %423, %cst_102 [1] : vector<7x16xf32> to vector<7xf32>
    %425 = vector.shape_cast %424 : vector<7xf32> to vector<7x1xf32>
    %cst_103 = arith.constant 0.000000e+00 : f32
    %426 = vector.broadcast %cst_103 : f32 to vector<7x1xf32>
    %427 = arith.cmpf ogt, %425, %426 : vector<7x1xf32>
    %cst_104 = arith.constant 0.000000e+00 : f32
    %cst_105 = arith.constant 1.000000e+00 : f32
    %428 = vector.broadcast %cst_104 : f32 to vector<7x1xf32>
    %429 = vector.broadcast %cst_105 : f32 to vector<7x1xf32>
    %430 = arith.select %427, %428, %429 : vector<7x1xi1>, vector<7x1xf32>
    %431 = vector.broadcast %430 : vector<7x1xf32> to vector<7x16xf32>
    %432 = arith.mulf %431, %422 : vector<7x16xf32>
    %433 = arith.addf %414, %432 : vector<7x16xf32>
    %cst_106 = arith.constant dense<0.000000e+00> : vector<7x16xf32>
    %434 = tpu.matmul %422, %121, %cst_106 {dimension_numbers = #tpu.dot_dimension_numbers<[1], [0], [0], [1], [0, 0, 1, 1], [], []>} : vector<7x16xf32>, vector<16x16xf32>, vector<7x16xf32> -> vector<7x16xf32>
    %435 = vector.broadcast %430 : vector<7x1xf32> to vector<7x16xf32>
    %436 = arith.mulf %435, %434 : vector<7x16xf32>
    %437 = arith.maximumf %418, %436 : vector<7x16xf32>
    %c8_i32 = arith.constant 8 : i32
    %438 = vector.broadcast %c8_i32 : i32 to vector<7x16xi32>
    %439 = arith.cmpi eq, %284, %438 : vector<7x16xi32>
    %440 = arith.extui %439 : vector<7x16xi1> to vector<7x16xi32>
    %441 = arith.sitofp %440 : vector<7x16xi32> to vector<7x16xf32>
    %442 = arith.mulf %437, %441 : vector<7x16xf32>
    %cst_107 = arith.constant dense<0.000000e+00> : vector<7xf32>
    %443 = vector.multi_reduction <add>, %442, %cst_107 [1] : vector<7x16xf32> to vector<7xf32>
    %444 = vector.shape_cast %443 : vector<7xf32> to vector<7x1xf32>
    %cst_108 = arith.constant 0.000000e+00 : f32
    %445 = vector.broadcast %cst_108 : f32 to vector<7x1xf32>
    %446 = arith.cmpf ogt, %444, %445 : vector<7x1xf32>
    %cst_109 = arith.constant 0.000000e+00 : f32
    %cst_110 = arith.constant 1.000000e+00 : f32
    %447 = vector.broadcast %cst_109 : f32 to vector<7x1xf32>
    %448 = vector.broadcast %cst_110 : f32 to vector<7x1xf32>
    %449 = arith.select %446, %447, %448 : vector<7x1xi1>, vector<7x1xf32>
    %450 = vector.broadcast %449 : vector<7x1xf32> to vector<7x16xf32>
    %451 = arith.mulf %450, %441 : vector<7x16xf32>
    %452 = arith.addf %433, %451 : vector<7x16xf32>
    %cst_111 = arith.constant dense<0.000000e+00> : vector<7x16xf32>
    %453 = tpu.matmul %441, %121, %cst_111 {dimension_numbers = #tpu.dot_dimension_numbers<[1], [0], [0], [1], [0, 0, 1, 1], [], []>} : vector<7x16xf32>, vector<16x16xf32>, vector<7x16xf32> -> vector<7x16xf32>
    %454 = vector.broadcast %449 : vector<7x1xf32> to vector<7x16xf32>
    %455 = arith.mulf %454, %453 : vector<7x16xf32>
    %456 = arith.maximumf %437, %455 : vector<7x16xf32>
    %c9_i32 = arith.constant 9 : i32
    %457 = vector.broadcast %c9_i32 : i32 to vector<7x16xi32>
    %458 = arith.cmpi eq, %284, %457 : vector<7x16xi32>
    %459 = arith.extui %458 : vector<7x16xi1> to vector<7x16xi32>
    %460 = arith.sitofp %459 : vector<7x16xi32> to vector<7x16xf32>
    %461 = arith.mulf %456, %460 : vector<7x16xf32>
    %cst_112 = arith.constant dense<0.000000e+00> : vector<7xf32>
    %462 = vector.multi_reduction <add>, %461, %cst_112 [1] : vector<7x16xf32> to vector<7xf32>
    %463 = vector.shape_cast %462 : vector<7xf32> to vector<7x1xf32>
    %cst_113 = arith.constant 0.000000e+00 : f32
    %464 = vector.broadcast %cst_113 : f32 to vector<7x1xf32>
    %465 = arith.cmpf ogt, %463, %464 : vector<7x1xf32>
    %cst_114 = arith.constant 0.000000e+00 : f32
    %cst_115 = arith.constant 1.000000e+00 : f32
    %466 = vector.broadcast %cst_114 : f32 to vector<7x1xf32>
    %467 = vector.broadcast %cst_115 : f32 to vector<7x1xf32>
    %468 = arith.select %465, %466, %467 : vector<7x1xi1>, vector<7x1xf32>
    %469 = vector.broadcast %468 : vector<7x1xf32> to vector<7x16xf32>
    %470 = arith.mulf %469, %460 : vector<7x16xf32>
    %471 = arith.addf %452, %470 : vector<7x16xf32>
    %cst_116 = arith.constant dense<0.000000e+00> : vector<7x16xf32>
    %472 = tpu.matmul %460, %121, %cst_116 {dimension_numbers = #tpu.dot_dimension_numbers<[1], [0], [0], [1], [0, 0, 1, 1], [], []>} : vector<7x16xf32>, vector<16x16xf32>, vector<7x16xf32> -> vector<7x16xf32>
    %473 = vector.broadcast %468 : vector<7x1xf32> to vector<7x16xf32>
    %474 = arith.mulf %473, %472 : vector<7x16xf32>
    %475 = arith.maximumf %456, %474 : vector<7x16xf32>
    %c10_i32 = arith.constant 10 : i32
    %476 = vector.broadcast %c10_i32 : i32 to vector<7x16xi32>
    %477 = arith.cmpi eq, %284, %476 : vector<7x16xi32>
    %478 = arith.extui %477 : vector<7x16xi1> to vector<7x16xi32>
    %479 = arith.sitofp %478 : vector<7x16xi32> to vector<7x16xf32>
    %480 = arith.mulf %475, %479 : vector<7x16xf32>
    %cst_117 = arith.constant dense<0.000000e+00> : vector<7xf32>
    %481 = vector.multi_reduction <add>, %480, %cst_117 [1] : vector<7x16xf32> to vector<7xf32>
    %482 = vector.shape_cast %481 : vector<7xf32> to vector<7x1xf32>
    %cst_118 = arith.constant 0.000000e+00 : f32
    %483 = vector.broadcast %cst_118 : f32 to vector<7x1xf32>
    %484 = arith.cmpf ogt, %482, %483 : vector<7x1xf32>
    %cst_119 = arith.constant 0.000000e+00 : f32
    %cst_120 = arith.constant 1.000000e+00 : f32
    %485 = vector.broadcast %cst_119 : f32 to vector<7x1xf32>
    %486 = vector.broadcast %cst_120 : f32 to vector<7x1xf32>
    %487 = arith.select %484, %485, %486 : vector<7x1xi1>, vector<7x1xf32>
    %488 = vector.broadcast %487 : vector<7x1xf32> to vector<7x16xf32>
    %489 = arith.mulf %488, %479 : vector<7x16xf32>
    %490 = arith.addf %471, %489 : vector<7x16xf32>
    %cst_121 = arith.constant dense<0.000000e+00> : vector<7x16xf32>
    %491 = tpu.matmul %479, %121, %cst_121 {dimension_numbers = #tpu.dot_dimension_numbers<[1], [0], [0], [1], [0, 0, 1, 1], [], []>} : vector<7x16xf32>, vector<16x16xf32>, vector<7x16xf32> -> vector<7x16xf32>
    %492 = vector.broadcast %487 : vector<7x1xf32> to vector<7x16xf32>
    %493 = arith.mulf %492, %491 : vector<7x16xf32>
    %494 = arith.maximumf %475, %493 : vector<7x16xf32>
    %c11_i32 = arith.constant 11 : i32
    %495 = vector.broadcast %c11_i32 : i32 to vector<7x16xi32>
    %496 = arith.cmpi eq, %284, %495 : vector<7x16xi32>
    %497 = arith.extui %496 : vector<7x16xi1> to vector<7x16xi32>
    %498 = arith.sitofp %497 : vector<7x16xi32> to vector<7x16xf32>
    %499 = arith.mulf %494, %498 : vector<7x16xf32>
    %cst_122 = arith.constant dense<0.000000e+00> : vector<7xf32>
    %500 = vector.multi_reduction <add>, %499, %cst_122 [1] : vector<7x16xf32> to vector<7xf32>
    %501 = vector.shape_cast %500 : vector<7xf32> to vector<7x1xf32>
    %cst_123 = arith.constant 0.000000e+00 : f32
    %502 = vector.broadcast %cst_123 : f32 to vector<7x1xf32>
    %503 = arith.cmpf ogt, %501, %502 : vector<7x1xf32>
    %cst_124 = arith.constant 0.000000e+00 : f32
    %cst_125 = arith.constant 1.000000e+00 : f32
    %504 = vector.broadcast %cst_124 : f32 to vector<7x1xf32>
    %505 = vector.broadcast %cst_125 : f32 to vector<7x1xf32>
    %506 = arith.select %503, %504, %505 : vector<7x1xi1>, vector<7x1xf32>
    %507 = vector.broadcast %506 : vector<7x1xf32> to vector<7x16xf32>
    %508 = arith.mulf %507, %498 : vector<7x16xf32>
    %509 = arith.addf %490, %508 : vector<7x16xf32>
    %cst_126 = arith.constant dense<0.000000e+00> : vector<7x16xf32>
    %510 = tpu.matmul %498, %121, %cst_126 {dimension_numbers = #tpu.dot_dimension_numbers<[1], [0], [0], [1], [0, 0, 1, 1], [], []>} : vector<7x16xf32>, vector<16x16xf32>, vector<7x16xf32> -> vector<7x16xf32>
    %511 = vector.broadcast %506 : vector<7x1xf32> to vector<7x16xf32>
    %512 = arith.mulf %511, %510 : vector<7x16xf32>
    %513 = arith.maximumf %494, %512 : vector<7x16xf32>
    %c12_i32 = arith.constant 12 : i32
    %514 = vector.broadcast %c12_i32 : i32 to vector<7x16xi32>
    %515 = arith.cmpi eq, %284, %514 : vector<7x16xi32>
    %516 = arith.extui %515 : vector<7x16xi1> to vector<7x16xi32>
    %517 = arith.sitofp %516 : vector<7x16xi32> to vector<7x16xf32>
    %518 = arith.mulf %513, %517 : vector<7x16xf32>
    %cst_127 = arith.constant dense<0.000000e+00> : vector<7xf32>
    %519 = vector.multi_reduction <add>, %518, %cst_127 [1] : vector<7x16xf32> to vector<7xf32>
    %520 = vector.shape_cast %519 : vector<7xf32> to vector<7x1xf32>
    %cst_128 = arith.constant 0.000000e+00 : f32
    %521 = vector.broadcast %cst_128 : f32 to vector<7x1xf32>
    %522 = arith.cmpf ogt, %520, %521 : vector<7x1xf32>
    %cst_129 = arith.constant 0.000000e+00 : f32
    %cst_130 = arith.constant 1.000000e+00 : f32
    %523 = vector.broadcast %cst_129 : f32 to vector<7x1xf32>
    %524 = vector.broadcast %cst_130 : f32 to vector<7x1xf32>
    %525 = arith.select %522, %523, %524 : vector<7x1xi1>, vector<7x1xf32>
    %526 = vector.broadcast %525 : vector<7x1xf32> to vector<7x16xf32>
    %527 = arith.mulf %526, %517 : vector<7x16xf32>
    %528 = arith.addf %509, %527 : vector<7x16xf32>
    %cst_131 = arith.constant dense<0.000000e+00> : vector<7x16xf32>
    %529 = tpu.matmul %517, %121, %cst_131 {dimension_numbers = #tpu.dot_dimension_numbers<[1], [0], [0], [1], [0, 0, 1, 1], [], []>} : vector<7x16xf32>, vector<16x16xf32>, vector<7x16xf32> -> vector<7x16xf32>
    %530 = vector.broadcast %525 : vector<7x1xf32> to vector<7x16xf32>
    %531 = arith.mulf %530, %529 : vector<7x16xf32>
    %532 = arith.maximumf %513, %531 : vector<7x16xf32>
    %c13_i32 = arith.constant 13 : i32
    %533 = vector.broadcast %c13_i32 : i32 to vector<7x16xi32>
    %534 = arith.cmpi eq, %284, %533 : vector<7x16xi32>
    %535 = arith.extui %534 : vector<7x16xi1> to vector<7x16xi32>
    %536 = arith.sitofp %535 : vector<7x16xi32> to vector<7x16xf32>
    %537 = arith.mulf %532, %536 : vector<7x16xf32>
    %cst_132 = arith.constant dense<0.000000e+00> : vector<7xf32>
    %538 = vector.multi_reduction <add>, %537, %cst_132 [1] : vector<7x16xf32> to vector<7xf32>
    %539 = vector.shape_cast %538 : vector<7xf32> to vector<7x1xf32>
    %cst_133 = arith.constant 0.000000e+00 : f32
    %540 = vector.broadcast %cst_133 : f32 to vector<7x1xf32>
    %541 = arith.cmpf ogt, %539, %540 : vector<7x1xf32>
    %cst_134 = arith.constant 0.000000e+00 : f32
    %cst_135 = arith.constant 1.000000e+00 : f32
    %542 = vector.broadcast %cst_134 : f32 to vector<7x1xf32>
    %543 = vector.broadcast %cst_135 : f32 to vector<7x1xf32>
    %544 = arith.select %541, %542, %543 : vector<7x1xi1>, vector<7x1xf32>
    %545 = vector.broadcast %544 : vector<7x1xf32> to vector<7x16xf32>
    %546 = arith.mulf %545, %536 : vector<7x16xf32>
    %547 = arith.addf %528, %546 : vector<7x16xf32>
    %cst_136 = arith.constant dense<0.000000e+00> : vector<7x16xf32>
    %548 = tpu.matmul %536, %121, %cst_136 {dimension_numbers = #tpu.dot_dimension_numbers<[1], [0], [0], [1], [0, 0, 1, 1], [], []>} : vector<7x16xf32>, vector<16x16xf32>, vector<7x16xf32> -> vector<7x16xf32>
    %549 = vector.broadcast %544 : vector<7x1xf32> to vector<7x16xf32>
    %550 = arith.mulf %549, %548 : vector<7x16xf32>
    %551 = arith.maximumf %532, %550 : vector<7x16xf32>
    %c14_i32 = arith.constant 14 : i32
    %552 = vector.broadcast %c14_i32 : i32 to vector<7x16xi32>
    %553 = arith.cmpi eq, %284, %552 : vector<7x16xi32>
    %554 = arith.extui %553 : vector<7x16xi1> to vector<7x16xi32>
    %555 = arith.sitofp %554 : vector<7x16xi32> to vector<7x16xf32>
    %556 = arith.mulf %551, %555 : vector<7x16xf32>
    %cst_137 = arith.constant dense<0.000000e+00> : vector<7xf32>
    %557 = vector.multi_reduction <add>, %556, %cst_137 [1] : vector<7x16xf32> to vector<7xf32>
    %558 = vector.shape_cast %557 : vector<7xf32> to vector<7x1xf32>
    %cst_138 = arith.constant 0.000000e+00 : f32
    %559 = vector.broadcast %cst_138 : f32 to vector<7x1xf32>
    %560 = arith.cmpf ogt, %558, %559 : vector<7x1xf32>
    %cst_139 = arith.constant 0.000000e+00 : f32
    %cst_140 = arith.constant 1.000000e+00 : f32
    %561 = vector.broadcast %cst_139 : f32 to vector<7x1xf32>
    %562 = vector.broadcast %cst_140 : f32 to vector<7x1xf32>
    %563 = arith.select %560, %561, %562 : vector<7x1xi1>, vector<7x1xf32>
    %564 = vector.broadcast %563 : vector<7x1xf32> to vector<7x16xf32>
    %565 = arith.mulf %564, %555 : vector<7x16xf32>
    %566 = arith.addf %547, %565 : vector<7x16xf32>
    %cst_141 = arith.constant dense<0.000000e+00> : vector<7x16xf32>
    %567 = tpu.matmul %555, %121, %cst_141 {dimension_numbers = #tpu.dot_dimension_numbers<[1], [0], [0], [1], [0, 0, 1, 1], [], []>} : vector<7x16xf32>, vector<16x16xf32>, vector<7x16xf32> -> vector<7x16xf32>
    %568 = vector.broadcast %563 : vector<7x1xf32> to vector<7x16xf32>
    %569 = arith.mulf %568, %567 : vector<7x16xf32>
    %570 = arith.maximumf %551, %569 : vector<7x16xf32>
    %c15_i32 = arith.constant 15 : i32
    %571 = vector.broadcast %c15_i32 : i32 to vector<7x16xi32>
    %572 = arith.cmpi eq, %284, %571 : vector<7x16xi32>
    %573 = arith.extui %572 : vector<7x16xi1> to vector<7x16xi32>
    %574 = arith.sitofp %573 : vector<7x16xi32> to vector<7x16xf32>
    %575 = arith.mulf %570, %574 : vector<7x16xf32>
    %cst_142 = arith.constant dense<0.000000e+00> : vector<7xf32>
    %576 = vector.multi_reduction <add>, %575, %cst_142 [1] : vector<7x16xf32> to vector<7xf32>
    %577 = vector.shape_cast %576 : vector<7xf32> to vector<7x1xf32>
    %cst_143 = arith.constant 0.000000e+00 : f32
    %578 = vector.broadcast %cst_143 : f32 to vector<7x1xf32>
    %579 = arith.cmpf ogt, %577, %578 : vector<7x1xf32>
    %cst_144 = arith.constant 0.000000e+00 : f32
    %cst_145 = arith.constant 1.000000e+00 : f32
    %580 = vector.broadcast %cst_144 : f32 to vector<7x1xf32>
    %581 = vector.broadcast %cst_145 : f32 to vector<7x1xf32>
    %582 = arith.select %579, %580, %581 : vector<7x1xi1>, vector<7x1xf32>
    %583 = vector.broadcast %582 : vector<7x1xf32> to vector<7x16xf32>
    %584 = arith.mulf %583, %574 : vector<7x16xf32>
    %585 = arith.addf %566, %584 : vector<7x16xf32>
    %cst_146 = arith.constant dense<0.000000e+00> : vector<7x16xf32>
    %586 = tpu.matmul %574, %121, %cst_146 {dimension_numbers = #tpu.dot_dimension_numbers<[1], [0], [0], [1], [0, 0, 1, 1], [], []>} : vector<7x16xf32>, vector<16x16xf32>, vector<7x16xf32> -> vector<7x16xf32>
    %587 = vector.broadcast %582 : vector<7x1xf32> to vector<7x16xf32>
    %588 = arith.mulf %587, %586 : vector<7x16xf32>
    %589 = arith.maximumf %570, %588 : vector<7x16xf32>
    %c16_i32 = arith.constant 16 : i32
    %cst_147 = arith.constant 0.000000e+00 : f32
    %590 = vector.broadcast %cst_147 : f32 to vector<7x16xf32>
    %591 = arith.cmpf ogt, %585, %590 : vector<7x16xf32>
    %cst_148 = arith.constant 0.000000e+00 : f32
    %592 = vector.broadcast %cst_148 : f32 to vector<7x16xf32>
    %593 = arith.select %591, %41, %592 : vector<7x16xi1>, vector<7x16xf32>
    %cst_149 = arith.constant dense<0xFF800000> : vector<16xf32>
    %594 = vector.multi_reduction <maximumf>, %593, %cst_149 [0] : vector<7x16xf32> to vector<16xf32>
    %595 = vector.shape_cast %594 : vector<16xf32> to vector<1x16xf32>
    %596 = vector.broadcast %595 : vector<1x16xf32> to vector<16x16xf32>
    %597 = arith.mulf %596, %52 : vector<16x16xf32>
    %cst_150 = arith.constant dense<0.000000e+00> : vector<16xf32>
    %598 = vector.multi_reduction <add>, %597, %cst_150 [1] : vector<16x16xf32> to vector<16xf32>
    %599 = vector.shape_cast %598 : vector<16xf32> to vector<16x1xf32>
    %600 = vector.broadcast %599 : vector<16x1xf32> to vector<16x16xf32>
    %601 = vector.broadcast %595 : vector<1x16xf32> to vector<16x16xf32>
    %602 = arith.cmpf ogt, %600, %601 : vector<16x16xf32>
    %603 = vector.broadcast %599 : vector<16x1xf32> to vector<16x16xf32>
    %604 = vector.broadcast %595 : vector<1x16xf32> to vector<16x16xf32>
    %605 = arith.cmpf oeq, %603, %604 : vector<16x16xf32>
    %606 = arith.andi %605, %55 : vector<16x16xi1>
    %607 = arith.ori %602, %606 : vector<16x16xi1>
    %608 = arith.extui %607 : vector<16x16xi1> to vector<16x16xi32>
    %cst_151 = arith.constant dense<0> : vector<16xi32>
    %609 = vector.multi_reduction <add>, %608, %cst_151 [0] : vector<16x16xi32> to vector<16xi32>
    %610 = vector.shape_cast %609 : vector<16xi32> to vector<1x16xi32>
    %611 = vector.shape_cast %610 : vector<1x16xi32> to vector<1x16xi32>
    %612 = vector.broadcast %611 : vector<1x16xi32> to vector<16x16xi32>
    %613 = tpu.iota {dimensions = array<i32: 0>} : vector<16x16xi32>
    %614 = arith.cmpi eq, %612, %613 : vector<16x16xi32>
    %615 = arith.extui %614 : vector<16x16xi1> to vector<16x16xi32>
    %616 = arith.sitofp %615 : vector<16x16xi32> to vector<16x16xf32>
    %cst_152 = arith.constant dense<0.000000e+00> : vector<16x64xf32>
    %617 = tpu.matmul %616, %19, %cst_152 {dimension_numbers = #tpu.dot_dimension_numbers<[1], [0], [0], [1], [0, 0, 1, 1], [], []>} : vector<16x16xf32>, vector<16x64xf32>, vector<16x64xf32> -> vector<16x64xf32>
    %c0_153 = arith.constant 0 : index
    %c0_154 = arith.constant 0 : index
    %c0_155 = arith.constant 0 : index
    %618 = vector.load %arg10[%c0_153, %c0_154, %c0_155] : memref<1x16x64xf32, #tpu.memory_space<vmem>>, vector<1x16x64xf32>
    %619 = vector.shape_cast %618 : vector<1x16x64xf32> to vector<16x64xf32>
    %620 = vector.shape_cast %617 : vector<16x64xf32> to vector<1x16x64xf32>
    tpu.vector_store %arg10[%c0_153, %c0_154, %c0_155], %620 {strides = array<i32>} : memref<1x16x64xf32, #tpu.memory_space<vmem>>, vector<1x16x64xf32>,
    return
  }
  func.func @transform_0(%arg0: i32) -> (i32, i32, i32) {
    %c0_i32 = arith.constant 0 : i32
    %c0_i32_0 = arith.constant 0 : i32
    %c0_i32_1 = arith.constant 0 : i32
    return %arg0, %c0_i32, %c0_i32_0 : i32, i32, i32
  }
  func.func @transform_1(%arg0: i32) -> (i32, i32, i32) {
    %c0_i32 = arith.constant 0 : i32
    %c0_i32_0 = arith.constant 0 : i32
    %c0_i32_1 = arith.constant 0 : i32
    return %arg0, %c0_i32, %c0_i32_0 : i32, i32, i32
  }
  func.func @transform_2(%arg0: i32) -> (i32, i32, i32) {
    %c0_i32 = arith.constant 0 : i32
    %c0_i32_0 = arith.constant 0 : i32
    %c0_i32_1 = arith.constant 0 : i32
    return %arg0, %c0_i32, %c0_i32_0 : i32, i32, i32
  }
  func.func @transform_3(%arg0: i32) -> (i32, i32) {
    %c0_i32 = arith.constant 0 : i32
    %c0_i32_0 = arith.constant 0 : i32
    %c0_i32_1 = arith.constant 0 : i32
    return %c0_i32, %c0_i32_0 : i32, i32
  }
  func.func @transform_4(%arg0: i32) -> (i32, i32) {
    %c0_i32 = arith.constant 0 : i32
    %c0_i32_0 = arith.constant 0 : i32
    %c0_i32_1 = arith.constant 0 : i32
    return %c0_i32, %c0_i32_0 : i32, i32
  }
  func.func @transform_5(%arg0: i32) -> (i32, i32) {
    %c0_i32 = arith.constant 0 : i32
    %c0_i32_0 = arith.constant 0 : i32
    %c0_i32_1 = arith.constant 0 : i32
    return %c0_i32, %c0_i32_0 : i32, i32
  }
  func.func @transform_6(%arg0: i32) -> (i32, i32) {
    %c0_i32 = arith.constant 0 : i32
    %c0_i32_0 = arith.constant 0 : i32
    %c0_i32_1 = arith.constant 0 : i32
    return %c0_i32, %c0_i32_0 : i32, i32
  }
  func.func @transform_7(%arg0: i32) -> (i32, i32) {
    %c0_i32 = arith.constant 0 : i32
    %c0_i32_0 = arith.constant 0 : i32
    %c0_i32_1 = arith.constant 0 : i32
    return %c0_i32, %c0_i32_0 : i32, i32
  }
  func.func @transform_8(%arg0: i32) -> (i32, i32) {
    %c0_i32 = arith.constant 0 : i32
    %c0_i32_0 = arith.constant 0 : i32
    %c0_i32_1 = arith.constant 0 : i32
    return %c0_i32, %c0_i32_0 : i32, i32
  }
  func.func @transform_9(%arg0: i32) -> (i32, i32, i32) {
    %c0_i32 = arith.constant 0 : i32
    %c0_i32_0 = arith.constant 0 : i32
    %c0_i32_1 = arith.constant 0 : i32
    return %arg0, %c0_i32, %c0_i32_0 : i32, i32, i32
  }
}

</mosaic_0001>

<llo_original>
// kernel: vqa_maskrcnn_forward.1
$region0: #{vqa_maskrcnn_forward.1}
  #allocation0 [shape = 'u32[]', space=smem, size = 0x4, offset = 0x4, fixed_abs, tag = 'smem constant byte address 0x4 - core index']
  #allocation1 [shape = 'u32[72,128]{1,0:T(1,128)}', space=vmem, size = 0x9000, scoped, tag = 'internal scratch']
  %s0 = inlined_call_operand.vmem [shape: f32[2,8,1024], index: 0, kind: input, shape index: {}]
  %s1 = inlined_call_operand.vmem [shape: f32[2,4,16], index: 1, kind: input, shape index: {}]
  %s2 = inlined_call_operand.vmem [shape: f32[2,1,16], index: 2, kind: input, shape index: {}]
  %s3 = inlined_call_operand.vmem [shape: f32[32,8], index: 3, kind: input, shape index: {}]
  %s4 = inlined_call_operand.vmem [shape: f32[16,32], index: 4, kind: input, shape index: {}]
  %s5 = inlined_call_operand.vmem [shape: f32[32,64], index: 5, kind: input, shape index: {}]
  %s6 = inlined_call_operand.vmem [shape: f32[1,64], index: 6, kind: input, shape index: {}]
  %s7 = inlined_call_operand.vmem [shape: f32[64,8], index: 7, kind: input, shape index: {}]
  %s8 = inlined_call_operand.vmem [shape: f32[1,8], index: 8, kind: input, shape index: {}]
  %s9 = inlined_call_operand.hbm [shape: f32[2,16,64], index: 9, kind: output, shape index: {}]
  %s10 = sld [smem:[#allocation0]]
  $region69: #{vqa_maskrcnn_forward.1} parent=0
    _
  %s12 = ssub.s32 1, %s10
  %s13 = scalar_select 0, %s12, %s10
  $region1: #{vqa_maskrcnn_forward.1} parent=0
    #allocation2 [shape = 'u8[16384]{0}', space=vmem, size = 0x4000, scoped, tag = 'output window, operand 0']
    #allocation3 [shape = 's32[2]{0}', space=sflag, size = 0x8, scoped, tag = 'scoped memory for vqa_maskrcnn_forward.1']
    %14 = vsyncpa [#allocation3], 0
    %s15 = scalar_lea.sflag [#allocation3], 1
    %16 = vsyncpa %s15, 0
    loop: start=0, step=1, limit=4
    $region2: #{vqa_maskrcnn_forward.1} parent=1 // loop_pre_header
      _
    $region3: #{vqa_maskrcnn_forward.1} parent=1 // loop_header
      %s18 = sphi 0, %s22
      %p19 = scmp.ge.s32.totalorder %s18, 4
      %s28 = sphi 0, %s30
      %s31 = sphi 0, %s28
      %s32 = sphi 0, %s31
      %s48 = sphi 0, %s32
      %s54 = sphi 0, %s56
      %s57 = sphi 0, %s54
      %s58 = sphi 0, %s57
      %s74 = sphi 0, %s58
      %s80 = sphi 0, %s82
      %s83 = sphi 0, %s80
      %s84 = sphi 0, %s83
      %s100 = sphi 0, %s84
      %s104 = sphi 0, %s104
      %s106 = sphi 0, %s104
      %s107 = sphi 0, %s106
      %s121 = sphi 0, %s107
      %s125 = sphi 0, %s125
      %s127 = sphi 0, %s125
      %s128 = sphi 0, %s127
      %s142 = sphi 0, %s128
      %s146 = sphi 0, %s146
      %s148 = sphi 0, %s146
      %s149 = sphi 0, %s148
      %s163 = sphi 0, %s149
      %s167 = sphi 0, %s167
      %s169 = sphi 0, %s167
      %s170 = sphi 0, %s169
      %s184 = sphi 0, %s170
      %s188 = sphi 0, %s188
      %s190 = sphi 0, %s188
      %s191 = sphi 0, %s190
      %s205 = sphi 0, %s191
      %s209 = sphi 0, %s209
      %s211 = sphi 0, %s209
      %s212 = sphi 0, %s211
      %s226 = sphi 0, %s212
      %s232 = sphi 0, %s234
      %s235 = sphi 0, %s232
      %s236 = sphi 0, %s235
      %s252 = sphi 0, %s236
    $region4: #{vqa_maskrcnn_forward.1} parent=1 // loop_header_branch
      %21 = sbr.rel (%p19) target = $region8
    $region5: #{vqa_maskrcnn_forward.1} parent=1 // loop_body
      %s23 = ssub.s32 %s18, 1
      %s24 = ssub.s32 %s18, 2
      %s25 = sadd.s32 %s18, 1
      %s26 = ssub.s32 %s18, %s25
      %p27 = scmp.eq.s32.totalorder %s26, 0
      %s29 = sadd.s32 %s28, 1
      %s30 = scalar_select %p27, %s28, %s29
      %p33 = pneg %p27
      %p34 = scmp.eq.s32.totalorder %s18, 1
      %p35 = por %p33, %p34
      %p36 = scmp.ne.s32.totalorder %s28, %s31
      %p37 = scmp.eq.s32.totalorder %s18, 0
      %p38 = por %p36, %p37
      %p39 = scmp.ne.s32.totalorder %s28, %s31
      %p40 = scmp.eq.s32.totalorder %s23, 1
      %p41 = por %p39, %p40
      %p42 = scmp.ne.s32.totalorder %s31, %s32
      %p43 = scmp.eq.s32.totalorder %s23, 0
      %p44 = por %p42, %p43
      %p45 = scmp.ne.s32.totalorder %s31, %s32
      %p46 = scmp.eq.s32.totalorder %s24, 1
      %p47 = por %p45, %p46
      %p49 = scmp.ne.s32.totalorder %s32, %s48
      %p50 = scmp.eq.s32.totalorder %s24, 0
      %p51 = por %p49, %p50
      %s52 = ssub.s32 %s18, %s25
      %p53 = scmp.eq.s32.totalorder %s52, 0
      %s55 = sadd.s32 %s54, 1
      %s56 = scalar_select %p53, %s54, %s55
      %p59 = pneg %p53
      %p60 = scmp.eq.s32.totalorder %s18, 1
      %p61 = por %p59, %p60
      %p62 = scmp.ne.s32.totalorder %s54, %s57
      %p63 = scmp.eq.s32.totalorder %s18, 0
      %p64 = por %p62, %p63
      %p65 = scmp.ne.s32.totalorder %s54, %s57
      %p66 = scmp.eq.s32.totalorder %s23, 1
      %p67 = por %p65, %p66
      %p68 = scmp.ne.s32.totalorder %s57, %s58
      %p69 = scmp.eq.s32.totalorder %s23, 0
      %p70 = por %p68, %p69
      %p71 = scmp.ne.s32.totalorder %s57, %s58
      %p72 = scmp.eq.s32.totalorder %s24, 1
      %p73 = por %p71, %p72
      %p75 = scmp.ne.s32.totalorder %s58, %s74
      %p76 = scmp.eq.s32.totalorder %s24, 0
      %p77 = por %p75, %p76
      %s78 = ssub.s32 %s18, %s25
      %p79 = scmp.eq.s32.totalorder %s78, 0
      %s81 = sadd.s32 %s80, 1
      %s82 = scalar_select %p79, %s80, %s81
      %p85 = pneg %p79
      %p86 = scmp.eq.s32.totalorder %s18, 1
      %p87 = por %p85, %p86
      %p88 = scmp.ne.s32.totalorder %s80, %s83
      %p89 = scmp.eq.s32.totalorder %s18, 0
      %p90 = por %p88, %p89
      %p91 = scmp.ne.s32.totalorder %s80, %s83
      %p92 = scmp.eq.s32.totalorder %s23, 1
      %p93 = por %p91, %p92
      %p94 = scmp.ne.s32.totalorder %s83, %s84
      %p95 = scmp.eq.s32.totalorder %s23, 0
      %p96 = por %p94, %p95
      %p97 = scmp.ne.s32.totalorder %s83, %s84
      %p98 = scmp.eq.s32.totalorder %s24, 1
      %p99 = por %p97, %p98
      %p101 = scmp.ne.s32.totalorder %s84, %s100
      %p102 = scmp.eq.s32.totalorder %s24, 0
      %p103 = por %p101, %p102
      %s105 = sadd.s32 %s104, 1
      %p108 = scmp.eq.s32.totalorder %s18, 1
      %p109 = scmp.ne.s32.totalorder %s104, %s106
      %p110 = scmp.eq.s32.totalorder %s18, 0
      %p111 = por %p109, %p110
      %p112 = scmp.ne.s32.totalorder %s104, %s106
      %p113 = scmp.eq.s32.totalorder %s23, 1
      %p114 = por %p112, %p113
      %p115 = scmp.ne.s32.totalorder %s106, %s107
      %p116 = scmp.eq.s32.totalorder %s23, 0
      %p117 = por %p115, %p116
      %p118 = scmp.ne.s32.totalorder %s106, %s107
      %p119 = scmp.eq.s32.totalorder %s24, 1
      %p120 = por %p118, %p119
      %p122 = scmp.ne.s32.totalorder %s107, %s121
      %p123 = scmp.eq.s32.totalorder %s24, 0
      %p124 = por %p122, %p123
      %s126 = sadd.s32 %s125, 1
      %p129 = scmp.eq.s32.totalorder %s18, 1
      %p130 = scmp.ne.s32.totalorder %s125, %s127
      %p131 = scmp.eq.s32.totalorder %s18, 0
      %p132 = por %p130, %p131
      %p133 = scmp.ne.s32.totalorder %s125, %s127
      %p134 = scmp.eq.s32.totalorder %s23, 1
      %p135 = por %p133, %p134
      %p136 = scmp.ne.s32.totalorder %s127, %s128
      %p137 = scmp.eq.s32.totalorder %s23, 0
      %p138 = por %p136, %p137
      %p139 = scmp.ne.s32.totalorder %s127, %s128
      %p140 = scmp.eq.s32.totalorder %s24, 1
      %p141 = por %p139, %p140
      %p143 = scmp.ne.s32.totalorder %s128, %s142
      %p144 = scmp.eq.s32.totalorder %s24, 0
      %p145 = por %p143, %p144
      %s147 = sadd.s32 %s146, 1
      %p150 = scmp.eq.s32.totalorder %s18, 1
      %p151 = scmp.ne.s32.totalorder %s146, %s148
      %p152 = scmp.eq.s32.totalorder %s18, 0
      %p153 = por %p151, %p152
      %p154 = scmp.ne.s32.totalorder %s146, %s148
      %p155 = scmp.eq.s32.totalorder %s23, 1
      %p156 = por %p154, %p155
      %p157 = scmp.ne.s32.totalorder %s148, %s149
      %p158 = scmp.eq.s32.totalorder %s23, 0
      %p159 = por %p157, %p158
      %p160 = scmp.ne.s32.totalorder %s148, %s149
      %p161 = scmp.eq.s32.totalorder %s24, 1
      %p162 = por %p160, %p161
      %p164 = scmp.ne.s32.totalorder %s149, %s163
      %p165 = scmp.eq.s32.totalorder %s24, 0
      %p166 = por %p164, %p165
      %s168 = sadd.s32 %s167, 1
      %p171 = scmp.eq.s32.totalorder %s18, 1
      %p172 = scmp.ne.s32.totalorder %s167, %s169
      %p173 = scmp.eq.s32.totalorder %s18, 0
      %p174 = por %p172, %p173
      %p175 = scmp.ne.s32.totalorder %s167, %s169
      %p176 = scmp.eq.s32.totalorder %s23, 1
      %p177 = por %p175, %p176
      %p178 = scmp.ne.s32.totalorder %s169, %s170
      %p179 = scmp.eq.s32.totalorder %s23, 0
      %p180 = por %p178, %p179
      %p181 = scmp.ne.s32.totalorder %s169, %s170
      %p182 = scmp.eq.s32.totalorder %s24, 1
      %p183 = por %p181, %p182
      %p185 = scmp.ne.s32.totalorder %s170, %s184
      %p186 = scmp.eq.s32.totalorder %s24, 0
      %p187 = por %p185, %p186
      %s189 = sadd.s32 %s188, 1
      %p192 = scmp.eq.s32.totalorder %s18, 1
      %p193 = scmp.ne.s32.totalorder %s188, %s190
      %p194 = scmp.eq.s32.totalorder %s18, 0
      %p195 = por %p193, %p194
      %p196 = scmp.ne.s32.totalorder %s188, %s190
      %p197 = scmp.eq.s32.totalorder %s23, 1
      %p198 = por %p196, %p197
      %p199 = scmp.ne.s32.totalorder %s190, %s191
      %p200 = scmp.eq.s32.totalorder %s23, 0
      %p201 = por %p199, %p200
      %p202 = scmp.ne.s32.totalorder %s190, %s191
      %p203 = scmp.eq.s32.totalorder %s24, 1
      %p204 = por %p202, %p203
      %p206 = scmp.ne.s32.totalorder %s191, %s205
      %p207 = scmp.eq.s32.totalorder %s24, 0
      %p208 = por %p206, %p207
      %s210 = sadd.s32 %s209, 1
      %p213 = scmp.eq.s32.totalorder %s18, 1
      %p214 = scmp.ne.s32.totalorder %s209, %s211
      %p215 = scmp.eq.s32.totalorder %s18, 0
      %p216 = por %p214, %p215
      %p217 = scmp.ne.s32.totalorder %s209, %s211
      %p218 = scmp.eq.s32.totalorder %s23, 1
      %p219 = por %p217, %p218
      %p220 = scmp.ne.s32.totalorder %s211, %s212
      %p221 = scmp.eq.s32.totalorder %s23, 0
      %p222 = por %p220, %p221
      %p223 = scmp.ne.s32.totalorder %s211, %s212
      %p224 = scmp.eq.s32.totalorder %s24, 1
      %p225 = por %p223, %p224
      %p227 = scmp.ne.s32.totalorder %s212, %s226
      %p228 = scmp.eq.s32.totalorder %s24, 0
      %p229 = por %p227, %p228
      %s230 = ssub.s32 %s18, %s25
      %p231 = scmp.eq.s32.totalorder %s230, 0
      %s233 = sadd.s32 %s232, 1
      %s234 = scalar_select %p231, %s232, %s233
      %p237 = pneg %p231
      %p238 = scmp.eq.s32.totalorder %s18, 1
      %p239 = por %p237, %p238
      %p240 = scmp.ne.s32.totalorder %s232, %s235
      %p241 = scmp.eq.s32.totalorder %s18, 0
      %p242 = por %p240, %p241
      %p243 = scmp.ne.s32.totalorder %s232, %s235
      %p244 = scmp.eq.s32.totalorder %s23, 1
      %p245 = por %p243, %p244
      %p246 = scmp.ne.s32.totalorder %s235, %s236
      %p247 = scmp.eq.s32.totalorder %s23, 0
      %p248 = por %p246, %p247
      %p249 = scmp.ne.s32.totalorder %s235, %s236
      %p250 = scmp.eq.s32.totalorder %s24, 1
      %p251 = por %p249, %p250
      %p253 = scmp.ne.s32.totalorder %s236, %s252
      %p254 = scmp.eq.s32.totalorder %s24, 0
      %p255 = por %p253, %p254
      %p256 = scmp.le.s32.totalorder 1, %s18
      %p257 = scmp.lt.s32.totalorder %s18, 3
      %p258 = pnand %p256, %p257
      %p259 = pneg %p258
      // Predicated region
      $region9: #{vqa_maskrcnn_forward.1} parent=5 // pred_check
        _
      $region10: #{vqa_maskrcnn_forward.1} parent=5 // pred_check_branch
        %261 = sbr.rel (%p258) target = $region12
      $region11: #{vqa_maskrcnn_forward.1} parent=5 // pred_region
        %s262 = ssub.s32 %s18, 1
        // Predicated region
        $region13: #{vqa_maskrcnn_forward.1} parent=11 // pred_check
          %p263 = pneg %p117
        $region14: #{vqa_maskrcnn_forward.1} parent=11 // pred_check_branch
          %265 = sbr.rel (%p263) target = $region16
        $region15: #{vqa_maskrcnn_forward.1} parent=11 // pred_region
          _
        $region16: #{vqa_maskrcnn_forward.1} parent=11 // pred_fallthru
          _
        // Predicated region
        $region17: #{vqa_maskrcnn_forward.1} parent=11 // pred_check
          %p266 = pneg %p138
        $region18: #{vqa_maskrcnn_forward.1} parent=11 // pred_check_branch
          %268 = sbr.rel (%p266) target = $region20
        $region19: #{vqa_maskrcnn_forward.1} parent=11 // pred_region
          _
        $region20: #{vqa_maskrcnn_forward.1} parent=11 // pred_fallthru
          _
        // Predicated region
        $region21: #{vqa_maskrcnn_forward.1} parent=11 // pred_check
          %p269 = pneg %p159
        $region22: #{vqa_maskrcnn_forward.1} parent=11 // pred_check_branch
          %271 = sbr.rel (%p269) target = $region24
        $region23: #{vqa_maskrcnn_forward.1} parent=11 // pred_region
          _
        $region24: #{vqa_maskrcnn_forward.1} parent=11 // pred_fallthru
          _
        // Predicated region
        $region25: #{vqa_maskrcnn_forward.1} parent=11 // pred_check
          %p272 = pneg %p180
        $region26: #{vqa_maskrcnn_forward.1} parent=11 // pred_check_branch
          %274 = sbr.rel (%p272) target = $region28
        $region27: #{vqa_maskrcnn_forward.1} parent=11 // pred_region
          _
        $region28: #{vqa_maskrcnn_forward.1} parent=11 // pred_fallthru
          _
        // Predicated region
        $region29: #{vqa_maskrcnn_forward.1} parent=11 // pred_check
          %p275 = pneg %p201
        $region30: #{vqa_maskrcnn_forward.1} parent=11 // pred_check_branch
          %277 = sbr.rel (%p275) target = $region32
        $region31: #{vqa_maskrcnn_forward.1} parent=11 // pred_region
          _
        $region32: #{vqa_maskrcnn_forward.1} parent=11 // pred_fallthru
          _
        // Predicated region
        $region33: #{vqa_maskrcnn_forward.1} parent=11 // pred_check
          %p278 = pneg %p222
        $region34: #{vqa_maskrcnn_forward.1} parent=11 // pred_check_branch
          %280 = sbr.rel (%p278) target = $region36
        $region35: #{vqa_maskrcnn_forward.1} parent=11 // pred_region
          _
        $region36: #{vqa_maskrcnn_forward.1} parent=11 // pred_fallthru
          _
      $region12: #{vqa_maskrcnn_forward.1} parent=5 // pred_fallthru
        _
      %p281 = scmp.lt.s32.totalorder %s18, 2
      // Predicated region
      $region37: #{vqa_maskrcnn_forward.1} parent=5 // pred_check
        %p282 = pneg %p281
      $region38: #{vqa_maskrcnn_forward.1} parent=5 // pred_check_branch
        %284 = sbr.rel (%p282) target = $region40
      $region39: #{vqa_maskrcnn_forward.1} parent=5 // pred_region
        // Predicated region
        $region41: #{vqa_maskrcnn_forward.1} parent=39 // pred_check
          %p285 = pneg %p38
        $region42: #{vqa_maskrcnn_forward.1} parent=39 // pred_check_branch
          %287 = sbr.rel (%p285) target = $region44
        $region43: #{vqa_maskrcnn_forward.1} parent=39 // pred_region
          %p288 = scmp.lt.s32.totalorder %s18, 1
          %s289 = scalar_select %p288, %s18, 1
          %s290 = smul.addr %s289, 8
          %s291 = smul.addr %s290, 8
          %s292 = scalar_lea.vmem %s0, %s291
        $region44: #{vqa_maskrcnn_forward.1} parent=39 // pred_fallthru
          _
        // Predicated region
        $region45: #{vqa_maskrcnn_forward.1} parent=39 // pred_check
          %p293 = pneg %p64
        $region46: #{vqa_maskrcnn_forward.1} parent=39 // pred_check_branch
          %295 = sbr.rel (%p293) target = $region48
        $region47: #{vqa_maskrcnn_forward.1} parent=39 // pred_region
          %p296 = scmp.lt.s32.totalorder %s18, 1
          %s297 = scalar_select %p296, %s18, 1
          %s298 = smul.addr %s297, 4
          %s299 = scalar_lea.vmem %s1, %s298
        $region48: #{vqa_maskrcnn_forward.1} parent=39 // pred_fallthru
          _
        // Predicated region
        $region49: #{vqa_maskrcnn_forward.1} parent=39 // pred_check
          %p300 = pneg %p90
        $region50: #{vqa_maskrcnn_forward.1} parent=39 // pred_check_branch
          %302 = sbr.rel (%p300) target = $region52
        $region51: #{vqa_maskrcnn_forward.1} parent=39 // pred_region
          %p303 = scmp.lt.s32.totalorder %s18, 1
          %s304 = scalar_select %p303, %s18, 1
          %s305 = scalar_lea.vmem %s2, %s304
        $region52: #{vqa_maskrcnn_forward.1} parent=39 // pred_fallthru
          _
      $region40: #{vqa_maskrcnn_forward.1} parent=5 // pred_fallthru
        _
      %p306 = scmp.le.s32.totalorder 1, %s18
      %p307 = scmp.lt.s32.totalorder %s18, 3
      %p308 = pnand %p306, %p307
      %p309 = pneg %p308
      // Predicated region
      $region53: #{vqa_maskrcnn_forward.1} parent=5 // pred_check
        _
      $region54: #{vqa_maskrcnn_forward.1} parent=5 // pred_check_branch
        %311 = sbr.rel (%p308) target = $region56
      $region55: #{vqa_maskrcnn_forward.1} parent=5 // pred_region
        %s312 = ssub.s32 %s18, 1
        %p313 = scmp.lt.s32.totalorder %s23, 1
        %s314 = scalar_select %p313, %s23, 1
        %s315 = smul.addr %s314, 8
        %s316 = smul.addr %s315, 8
        %s317 = scalar_lea.vmem %s0, %s316
        %p318 = pneg %p44
        %p319 = pneg %p41
        %p320 = scmp.lt.s32.totalorder %s23, 1
        %s321 = scalar_select %p320, %s23, 1
        %s322 = smul.addr %s321, 4
        %s323 = scalar_lea.vmem %s1, %s322
        %p324 = pneg %p70
        %p325 = pneg %p67
        %p326 = scmp.lt.s32.totalorder %s23, 1
        %s327 = scalar_select %p326, %s23, 1
        %s328 = scalar_lea.vmem %s2, %s327
        %p329 = pneg %p96
        %p330 = pneg %p93
        %p331 = pneg %p117
        %p332 = pneg %p114
        %p333 = pneg %p138
        %p334 = pneg %p135
        %p335 = pneg %p159
        %p336 = pneg %p156
        %p337 = pneg %p180
        %p338 = pneg %p177
        %p339 = pneg %p201
        %p340 = pneg %p198
        %p341 = pneg %p222
        %p342 = pneg %p219
        %p343 = pneg %p248
        %p344 = pneg %p245
        %s345 = sand.u32 %s235, 1
        %s346 = scalar_lea.sflag [#allocation3], %s345
        %s347 = sand.u32 %s235, 1
        %s348 = smul.addr %s347, 16
        %s349 = scalar_lea.vmem [#allocation2], %s348
        %p350 = scmp.lt.s32.totalorder %s23, 1
        %s351 = scalar_select %p350, %s23, 1
        %s352 = smul.addr %s351, 8
        %s353 = smul.addr %s352, 8
        %s354 = scalar_lea.vmem %s0, %s353
        %p355 = scmp.lt.s32.totalorder %s23, 1
        %s356 = scalar_select %p355, %s23, 1
        %s357 = smul.addr %s356, 4
        %s358 = scalar_lea.vmem %s1, %s357
        %p359 = scmp.lt.s32.totalorder %s23, 1
        %s360 = scalar_select %p359, %s23, 1
        %s361 = scalar_lea.vmem %s2, %s360
        %v362 = vld [vmem:[%s354] sm:$0xff]
        %v363 = vld [vmem:[%s354 + $0x8] sm:$0xff]
        %v364 = vld [vmem:[%s354 + $0x10] sm:$0xff]
        %v365 = vld [vmem:[%s354 + $0x18] sm:$0xff]
        %v366 = vld [vmem:[%s354 + $0x20] sm:$0xff]
        %v367 = vld [vmem:[%s354 + $0x28] sm:$0xff]
        %v368 = vld [vmem:[%s354 + $0x30] sm:$0xff]
        %v369 = vld [vmem:[%s354 + $0x38] sm:$0xff]
        %v370 = vld [vmem:[%s3] sm:$0xff]
        %v371 = vld [vmem:[%s3 + $0x8] sm:$0xff]
        %v372 = vld [vmem:[%s3 + $0x10] sm:$0xff]
        %v373 = vld [vmem:[%s3 + $0x18] sm:$0xff]
        %vm374 = vcmask 64512
        %v376 = vsel %vm374, %v370, 0
        %v379 = vsel %vm374, %v371, 0
        %v382 = vsel %vm374, %v372, 0
        %v385 = vsel %vm374, %v373, 0
        %387 = vmatpush.msra.mxu0 0.0
        %388 = vmatpush.msra.mxu0 0.0
        %389 = vmatpush.msra.mxu0 0.0
        %390 = vmatpush.msra.mxu0 0.0
        %391 = vmatpush.msra.mxu0 0.0
        %392 = vmatpush.msra.mxu0 0.0
        %393 = vmatpush.msra.mxu0 0.0
        %394 = vmatpush.msra.mxu0 0.0
        %395 = vmatpush.msra.mxu0 0.0
        %396 = vmatpush.msra.mxu0 0.0
        %397 = vmatpush.msra.mxu0 0.0
        %398 = vmatpush.msra.mxu0 0.0
        %399 = vmatpush.msra.mxu0 0.0
        %400 = vmatpush.msra.mxu0 0.0
        %401 = vmatpush.msra.mxu0 0.0
        %402 = vmatpush.msra.mxu0 %v362
        %403 = vmatmul.f32.gmra.mxu0 %v376
        %v404 = vpop.f32.mrf.mxu0
        %v405 = vadd.f32 0.0, %v404
        %406 = vmatmul.f32.gmra.mxu0 %v379
        %v407 = vpop.f32.mrf.mxu0
        %v408 = vadd.f32 0.0, %v407
        %409 = vmatmul.f32.gmra.mxu0 %v382
        %v410 = vpop.f32.mrf.mxu0
        %v411 = vadd.f32 0.0, %v410
        %412 = vmatmul.f32.gmra.mxu0 %v385
        %v413 = vpop.f32.mrf.mxu0
        %v414 = vadd.f32 0.0, %v413
        %415 = vdwg.mxu0
        %416 = vmatpush.msra.mxu0 0.0
        %417 = vmatpush.msra.mxu0 0.0
        %418 = vmatpush.msra.mxu0 0.0
        %419 = vmatpush.msra.mxu0 0.0
        %420 = vmatpush.msra.mxu0 0.0
        %421 = vmatpush.msra.mxu0 0.0
        %422 = vmatpush.msra.mxu0 0.0
        %423 = vmatpush.msra.mxu0 0.0
        %424 = vmatpush.msra.mxu0 0.0
        %425 = vmatpush.msra.mxu0 0.0
        %426 = vmatpush.msra.mxu0 0.0
        %427 = vmatpush.msra.mxu0 0.0
        %428 = vmatpush.msra.mxu0 0.0
        %429 = vmatpush.msra.mxu0 0.0
        %430 = vmatpush.msra.mxu0 0.0
        %431 = vmatpush.msra.mxu0 %v363
        %432 = vmatmul.f32.gmra.mxu0 %v376
        %v433 = vpop.f32.mrf.mxu0
        %v434 = vadd.f32 0.0, %v433
        %435 = vmatmul.f32.gmra.mxu0 %v379
        %v436 = vpop.f32.mrf.mxu0
        %v437 = vadd.f32 0.0, %v436
        %438 = vmatmul.f32.gmra.mxu0 %v382
        %v439 = vpop.f32.mrf.mxu0
        %v440 = vadd.f32 0.0, %v439
        %441 = vmatmul.f32.gmra.mxu0 %v385
        %v442 = vpop.f32.mrf.mxu0
        %v443 = vadd.f32 0.0, %v442
        %444 = vdwg.mxu0
        %445 = vmatpush.msra.mxu0 0.0
        %446 = vmatpush.msra.mxu0 0.0
        %447 = vmatpush.msra.mxu0 0.0
        %448 = vmatpush.msra.mxu0 0.0
        %449 = vmatpush.msra.mxu0 0.0
        %450 = vmatpush.msra.mxu0 0.0
        %451 = vmatpush.msra.mxu0 0.0
        %452 = vmatpush.msra.mxu0 0.0
        %453 = vmatpush.msra.mxu0 0.0
        %454 = vmatpush.msra.mxu0 0.0
        %455 = vmatpush.msra.mxu0 0.0
        %456 = vmatpush.msra.mxu0 0.0
        %457 = vmatpush.msra.mxu0 0.0
        %458 = vmatpush.msra.mxu0 0.0
        %459 = vmatpush.msra.mxu0 0.0
        %460 = vmatpush.msra.mxu0 %v364
        %461 = vmatmul.f32.gmra.mxu0 %v376
        %v462 = vpop.f32.mrf.mxu0
        %v463 = vadd.f32 0.0, %v462
        %464 = vmatmul.f32.gmra.mxu0 %v379
        %v465 = vpop.f32.mrf.mxu0
        %v466 = vadd.f32 0.0, %v465
        %467 = vmatmul.f32.gmra.mxu0 %v382
        %v468 = vpop.f32.mrf.mxu0
        %v469 = vadd.f32 0.0, %v468
        %470 = vmatmul.f32.gmra.mxu0 %v385
        %v471 = vpop.f32.mrf.mxu0
        %v472 = vadd.f32 0.0, %v471
        %473 = vdwg.mxu0
        %474 = vmatpush.msra.mxu0 0.0
        %475 = vmatpush.msra.mxu0 0.0
        %476 = vmatpush.msra.mxu0 0.0
        %477 = vmatpush.msra.mxu0 0.0
        %478 = vmatpush.msra.mxu0 0.0
        %479 = vmatpush.msra.mxu0 0.0
        %480 = vmatpush.msra.mxu0 0.0
        %481 = vmatpush.msra.mxu0 0.0
        %482 = vmatpush.msra.mxu0 0.0
        %483 = vmatpush.msra.mxu0 0.0
        %484 = vmatpush.msra.mxu0 0.0
        %485 = vmatpush.msra.mxu0 0.0
        %486 = vmatpush.msra.mxu0 0.0
        %487 = vmatpush.msra.mxu0 0.0
        %488 = vmatpush.msra.mxu0 0.0
        %489 = vmatpush.msra.mxu0 %v365
        %490 = vmatmul.f32.gmra.mxu0 %v376
        %v491 = vpop.f32.mrf.mxu0
        %v492 = vadd.f32 0.0, %v491
        %493 = vmatmul.f32.gmra.mxu0 %v379
        %v494 = vpop.f32.mrf.mxu0
        %v495 = vadd.f32 0.0, %v494
        %496 = vmatmul.f32.gmra.mxu0 %v382
        %v497 = vpop.f32.mrf.mxu0
        %v498 = vadd.f32 0.0, %v497
        %499 = vmatmul.f32.gmra.mxu0 %v385
        %v500 = vpop.f32.mrf.mxu0
        %v501 = vadd.f32 0.0, %v500
        %502 = vdwg.mxu0
        %503 = vmatpush.msra.mxu0 0.0
        %504 = vmatpush.msra.mxu0 0.0
        %505 = vmatpush.msra.mxu0 0.0
        %506 = vmatpush.msra.mxu0 0.0
        %507 = vmatpush.msra.mxu0 0.0
        %508 = vmatpush.msra.mxu0 0.0
        %509 = vmatpush.msra.mxu0 0.0
        %510 = vmatpush.msra.mxu0 0.0
        %511 = vmatpush.msra.mxu0 0.0
        %512 = vmatpush.msra.mxu0 0.0
        %513 = vmatpush.msra.mxu0 0.0
        %514 = vmatpush.msra.mxu0 0.0
        %515 = vmatpush.msra.mxu0 0.0
        %516 = vmatpush.msra.mxu0 0.0
        %517 = vmatpush.msra.mxu0 0.0
        %518 = vmatpush.msra.mxu0 %v366
        %519 = vmatmul.f32.gmra.mxu0 %v376
        %v520 = vpop.f32.mrf.mxu0
        %v521 = vadd.f32 0.0, %v520
        %522 = vmatmul.f32.gmra.mxu0 %v379
        %v523 = vpop.f32.mrf.mxu0
        %v524 = vadd.f32 0.0, %v523
        %525 = vmatmul.f32.gmra.mxu0 %v382
        %v526 = vpop.f32.mrf.mxu0
        %v527 = vadd.f32 0.0, %v526
        %528 = vmatmul.f32.gmra.mxu0 %v385
        %v529 = vpop.f32.mrf.mxu0
        %v530 = vadd.f32 0.0, %v529
        %531 = vdwg.mxu0
        %532 = vmatpush.msra.mxu0 0.0
        %533 = vmatpush.msra.mxu0 0.0
        %534 = vmatpush.msra.mxu0 0.0
        %535 = vmatpush.msra.mxu0 0.0
        %536 = vmatpush.msra.mxu0 0.0
        %537 = vmatpush.msra.mxu0 0.0
        %538 = vmatpush.msra.mxu0 0.0
        %539 = vmatpush.msra.mxu0 0.0
        %540 = vmatpush.msra.mxu0 0.0
        %541 = vmatpush.msra.mxu0 0.0
        %542 = vmatpush.msra.mxu0 0.0
        %543 = vmatpush.msra.mxu0 0.0
        %544 = vmatpush.msra.mxu0 0.0
        %545 = vmatpush.msra.mxu0 0.0
        %546 = vmatpush.msra.mxu0 0.0
        %547 = vmatpush.msra.mxu0 %v367
        %548 = vmatmul.f32.gmra.mxu0 %v376
        %v549 = vpop.f32.mrf.mxu0
        %v550 = vadd.f32 0.0, %v549
        %551 = vmatmul.f32.gmra.mxu0 %v379
        %v552 = vpop.f32.mrf.mxu0
        %v553 = vadd.f32 0.0, %v552
        %554 = vmatmul.f32.gmra.mxu0 %v382
        %v555 = vpop.f32.mrf.mxu0
        %v556 = vadd.f32 0.0, %v555
        %557 = vmatmul.f32.gmra.mxu0 %v385
        %v558 = vpop.f32.mrf.mxu0
        %v559 = vadd.f32 0.0, %v558
        %560 = vdwg.mxu0
        %561 = vmatpush.msra.mxu0 0.0
        %562 = vmatpush.msra.mxu0 0.0
        %563 = vmatpush.msra.mxu0 0.0
        %564 = vmatpush.msra.mxu0 0.0
        %565 = vmatpush.msra.mxu0 0.0
        %566 = vmatpush.msra.mxu0 0.0
        %567 = vmatpush.msra.mxu0 0.0
        %568 = vmatpush.msra.mxu0 0.0
        %569 = vmatpush.msra.mxu0 0.0
        %570 = vmatpush.msra.mxu0 0.0
        %571 = vmatpush.msra.mxu0 0.0
        %572 = vmatpush.msra.mxu0 0.0
        %573 = vmatpush.msra.mxu0 0.0
        %574 = vmatpush.msra.mxu0 0.0
        %575 = vmatpush.msra.mxu0 0.0
        %576 = vmatpush.msra.mxu0 %v368
        %577 = vmatmul.f32.gmra.mxu0 %v376
        %v578 = vpop.f32.mrf.mxu0
        %v579 = vadd.f32 0.0, %v578
        %580 = vmatmul.f32.gmra.mxu0 %v379
        %v581 = vpop.f32.mrf.mxu0
        %v582 = vadd.f32 0.0, %v581
        %583 = vmatmul.f32.gmra.mxu0 %v382
        %v584 = vpop.f32.mrf.mxu0
        %v585 = vadd.f32 0.0, %v584
        %586 = vmatmul.f32.gmra.mxu0 %v385
        %v587 = vpop.f32.mrf.mxu0
        %v588 = vadd.f32 0.0, %v587
        %589 = vdwg.mxu0
        %590 = vmatpush.msra.mxu0 0.0
        %591 = vmatpush.msra.mxu0 0.0
        %592 = vmatpush.msra.mxu0 0.0
        %593 = vmatpush.msra.mxu0 0.0
        %594 = vmatpush.msra.mxu0 0.0
        %595 = vmatpush.msra.mxu0 0.0
        %596 = vmatpush.msra.mxu0 0.0
        %597 = vmatpush.msra.mxu0 0.0
        %598 = vmatpush.msra.mxu0 0.0
        %599 = vmatpush.msra.mxu0 0.0
        %600 = vmatpush.msra.mxu0 0.0
        %601 = vmatpush.msra.mxu0 0.0
        %602 = vmatpush.msra.mxu0 0.0
        %603 = vmatpush.msra.mxu0 0.0
        %604 = vmatpush.msra.mxu0 0.0
        %605 = vmatpush.msra.mxu0 %v369
        %606 = vmatmul.f32.gmra.mxu0 %v376
        %v607 = vpop.f32.mrf.mxu0
        %v608 = vadd.f32 0.0, %v607
        %609 = vmatmul.f32.gmra.mxu0 %v379
        %v610 = vpop.f32.mrf.mxu0
        %v611 = vadd.f32 0.0, %v610
        %612 = vmatmul.f32.gmra.mxu0 %v382
        %v613 = vpop.f32.mrf.mxu0
        %v614 = vadd.f32 0.0, %v613
        %615 = vmatmul.f32.gmra.mxu0 %v385
        %v616 = vpop.f32.mrf.mxu0
        %v617 = vadd.f32 0.0, %v616
        %618 = vdwg.mxu0
        %v619 = vmax.f32 %v405, 0.0
        %v620 = vmax.f32 %v434, 0.0
        %v621 = vmax.f32 %v463, 0.0
        %v622 = vmax.f32 %v492, 0.0
        %v623 = vmax.f32 %v521, 0.0
        %v624 = vmax.f32 %v550, 0.0
        %v625 = vmax.f32 %v579, 0.0
        %v626 = vmax.f32 %v608, 0.0
        %v627 = vmax.f32 %v408, 0.0
        %v628 = vmax.f32 %v437, 0.0
        %v629 = vmax.f32 %v466, 0.0
        %v630 = vmax.f32 %v495, 0.0
        %v631 = vmax.f32 %v524, 0.0
        %v632 = vmax.f32 %v553, 0.0
        %v633 = vmax.f32 %v582, 0.0
        %v634 = vmax.f32 %v611, 0.0
        %v635 = vmax.f32 %v411, 0.0
        %v636 = vmax.f32 %v440, 0.0
        %v637 = vmax.f32 %v469, 0.0
        %v638 = vmax.f32 %v498, 0.0
        %v639 = vmax.f32 %v527, 0.0
        %v640 = vmax.f32 %v556, 0.0
        %v641 = vmax.f32 %v585, 0.0
        %v642 = vmax.f32 %v614, 0.0
        %v643 = vmax.f32 %v414, 0.0
        %v644 = vmax.f32 %v443, 0.0
        %v645 = vmax.f32 %v472, 0.0
        %v646 = vmax.f32 %v501, 0.0
        %v647 = vmax.f32 %v530, 0.0
        %v648 = vmax.f32 %v559, 0.0
        %v649 = vmax.f32 %v588, 0.0
        %v650 = vmax.f32 %v617, 0.0
        %651 = vmatpush.xpose.msra.mxu0 0.0
        %652 = vmatpush.xpose.msra.mxu0 0.0
        %653 = vmatpush.xpose.msra.mxu0 0.0
        %654 = vmatpush.xpose.msra.mxu0 0.0
        %655 = vmatpush.xpose.msra.mxu0 0.0
        %656 = vmatpush.xpose.msra.mxu0 0.0
        %657 = vmatpush.xpose.msra.mxu0 0.0
        %658 = vmatpush.xpose.msra.mxu0 0.0
        %659 = vmatpush.xpose.msra.mxu0 0.0
        %660 = vmatpush.xpose.msra.mxu0 0.0
        %661 = vmatpush.xpose.msra.mxu0 0.0
        %662 = vmatpush.xpose.msra.mxu0 0.0
        %663 = vmatpush.xpose.msra.mxu0 %v643
        %664 = vmatpush.xpose.msra.mxu0 %v635
        %665 = vmatpush.xpose.msra.mxu0 %v627
        %666 = vmatpush.xpose.msra.mxu0 %v619
        %667 = vmatmul.f32.gmra.mxu0 1.0
        %v668 = vpop.f32.mrf.mxu0
        %v669 = vadd.f32 0.0, %v668
        %670 = vdwg.mxu0
        %671 = vmatpush.xpose.msra.mxu0 0.0
        %672 = vmatpush.xpose.msra.mxu0 0.0
        %673 = vmatpush.xpose.msra.mxu0 0.0
        %674 = vmatpush.xpose.msra.mxu0 0.0
        %675 = vmatpush.xpose.msra.mxu0 0.0
        %676 = vmatpush.xpose.msra.mxu0 0.0
        %677 = vmatpush.xpose.msra.mxu0 0.0
        %678 = vmatpush.xpose.msra.mxu0 0.0
        %679 = vmatpush.xpose.msra.mxu0 0.0
        %680 = vmatpush.xpose.msra.mxu0 0.0
        %681 = vmatpush.xpose.msra.mxu0 0.0
        %682 = vmatpush.xpose.msra.mxu0 0.0
        %683 = vmatpush.xpose.msra.mxu0 %v644
        %684 = vmatpush.xpose.msra.mxu0 %v636
        %685 = vmatpush.xpose.msra.mxu0 %v628
        %686 = vmatpush.xpose.msra.mxu0 %v620
        %687 = vmatmul.f32.gmra.mxu0 1.0
        %v688 = vpop.f32.mrf.mxu0
        %v689 = vadd.f32 %v669, %v688
        %690 = vdwg.mxu0
        %691 = vmatpush.xpose.msra.mxu0 0.0
        %692 = vmatpush.xpose.msra.mxu0 0.0
        %693 = vmatpush.xpose.msra.mxu0 0.0
        %694 = vmatpush.xpose.msra.mxu0 0.0
        %695 = vmatpush.xpose.msra.mxu0 0.0
        %696 = vmatpush.xpose.msra.mxu0 0.0
        %697 = vmatpush.xpose.msra.mxu0 0.0
        %698 = vmatpush.xpose.msra.mxu0 0.0
        %699 = vmatpush.xpose.msra.mxu0 0.0
        %700 = vmatpush.xpose.msra.mxu0 0.0
        %701 = vmatpush.xpose.msra.mxu0 0.0
        %702 = vmatpush.xpose.msra.mxu0 0.0
        %703 = vmatpush.xpose.msra.mxu0 %v645
        %704 = vmatpush.xpose.msra.mxu0 %v637
        %705 = vmatpush.xpose.msra.mxu0 %v629
        %706 = vmatpush.xpose.msra.mxu0 %v621
        %707 = vmatmul.f32.gmra.mxu0 1.0
        %v708 = vpop.f32.mrf.mxu0
        %v709 = vadd.f32 %v689, %v708
        %710 = vdwg.mxu0
        %711 = vmatpush.xpose.msra.mxu0 0.0
        %712 = vmatpush.xpose.msra.mxu0 0.0
        %713 = vmatpush.xpose.msra.mxu0 0.0
        %714 = vmatpush.xpose.msra.mxu0 0.0
        %715 = vmatpush.xpose.msra.mxu0 0.0
        %716 = vmatpush.xpose.msra.mxu0 0.0
        %717 = vmatpush.xpose.msra.mxu0 0.0
        %718 = vmatpush.xpose.msra.mxu0 0.0
        %719 = vmatpush.xpose.msra.mxu0 0.0
        %720 = vmatpush.xpose.msra.mxu0 0.0
        %721 = vmatpush.xpose.msra.mxu0 0.0
        %722 = vmatpush.xpose.msra.mxu0 0.0
        %723 = vmatpush.xpose.msra.mxu0 %v646
        %724 = vmatpush.xpose.msra.mxu0 %v638
        %725 = vmatpush.xpose.msra.mxu0 %v630
        %726 = vmatpush.xpose.msra.mxu0 %v622
        %727 = vmatmul.f32.gmra.mxu0 1.0
        %v728 = vpop.f32.mrf.mxu0
        %v729 = vadd.f32 %v709, %v728
        %730 = vdwg.mxu0
        %731 = vmatpush.xpose.msra.mxu0 0.0
        %732 = vmatpush.xpose.msra.mxu0 0.0
        %733 = vmatpush.xpose.msra.mxu0 0.0
        %734 = vmatpush.xpose.msra.mxu0 0.0
        %735 = vmatpush.xpose.msra.mxu0 0.0
        %736 = vmatpush.xpose.msra.mxu0 0.0
        %737 = vmatpush.xpose.msra.mxu0 0.0
        %738 = vmatpush.xpose.msra.mxu0 0.0
        %739 = vmatpush.xpose.msra.mxu0 0.0
        %740 = vmatpush.xpose.msra.mxu0 0.0
        %741 = vmatpush.xpose.msra.mxu0 0.0
        %742 = vmatpush.xpose.msra.mxu0 0.0
        %743 = vmatpush.xpose.msra.mxu0 %v647
        %744 = vmatpush.xpose.msra.mxu0 %v639
        %745 = vmatpush.xpose.msra.mxu0 %v631
        %746 = vmatpush.xpose.msra.mxu0 %v623
        %747 = vmatmul.f32.gmra.mxu0 1.0
        %v748 = vpop.f32.mrf.mxu0
        %v749 = vadd.f32 %v729, %v748
        %750 = vdwg.mxu0
        %751 = vmatpush.xpose.msra.mxu0 0.0
        %752 = vmatpush.xpose.msra.mxu0 0.0
        %753 = vmatpush.xpose.msra.mxu0 0.0
        %754 = vmatpush.xpose.msra.mxu0 0.0
        %755 = vmatpush.xpose.msra.mxu0 0.0
        %756 = vmatpush.xpose.msra.mxu0 0.0
        %757 = vmatpush.xpose.msra.mxu0 0.0
        %758 = vmatpush.xpose.msra.mxu0 0.0
        %759 = vmatpush.xpose.msra.mxu0 0.0
        %760 = vmatpush.xpose.msra.mxu0 0.0
        %761 = vmatpush.xpose.msra.mxu0 0.0
        %762 = vmatpush.xpose.msra.mxu0 0.0
        %763 = vmatpush.xpose.msra.mxu0 %v648
        %764 = vmatpush.xpose.msra.mxu0 %v640
        %765 = vmatpush.xpose.msra.mxu0 %v632
        %766 = vmatpush.xpose.msra.mxu0 %v624
        %767 = vmatmul.f32.gmra.mxu0 1.0
        %v768 = vpop.f32.mrf.mxu0
        %v769 = vadd.f32 %v749, %v768
        %770 = vdwg.mxu0
        %771 = vmatpush.xpose.msra.mxu0 0.0
        %772 = vmatpush.xpose.msra.mxu0 0.0
        %773 = vmatpush.xpose.msra.mxu0 0.0
        %774 = vmatpush.xpose.msra.mxu0 0.0
        %775 = vmatpush.xpose.msra.mxu0 0.0
        %776 = vmatpush.xpose.msra.mxu0 0.0
        %777 = vmatpush.xpose.msra.mxu0 0.0
        %778 = vmatpush.xpose.msra.mxu0 0.0
        %779 = vmatpush.xpose.msra.mxu0 0.0
        %780 = vmatpush.xpose.msra.mxu0 0.0
        %781 = vmatpush.xpose.msra.mxu0 0.0
        %782 = vmatpush.xpose.msra.mxu0 0.0
        %783 = vmatpush.xpose.msra.mxu0 %v649
        %784 = vmatpush.xpose.msra.mxu0 %v641
        %785 = vmatpush.xpose.msra.mxu0 %v633
        %786 = vmatpush.xpose.msra.mxu0 %v625
        %787 = vmatmul.f32.gmra.mxu0 1.0
        %v788 = vpop.f32.mrf.mxu0
        %v789 = vadd.f32 %v769, %v788
        %790 = vdwg.mxu0
        %791 = vmatpush.xpose.msra.mxu0 0.0
        %792 = vmatpush.xpose.msra.mxu0 0.0
        %793 = vmatpush.xpose.msra.mxu0 0.0
        %794 = vmatpush.xpose.msra.mxu0 0.0
        %795 = vmatpush.xpose.msra.mxu0 0.0
        %796 = vmatpush.xpose.msra.mxu0 0.0
        %797 = vmatpush.xpose.msra.mxu0 0.0
        %798 = vmatpush.xpose.msra.mxu0 0.0
        %799 = vmatpush.xpose.msra.mxu0 0.0
        %800 = vmatpush.xpose.msra.mxu0 0.0
        %801 = vmatpush.xpose.msra.mxu0 0.0
        %802 = vmatpush.xpose.msra.mxu0 0.0
        %803 = vmatpush.xpose.msra.mxu0 %v650
        %804 = vmatpush.xpose.msra.mxu0 %v642
        %805 = vmatpush.xpose.msra.mxu0 %v634
        %806 = vmatpush.xpose.msra.mxu0 %v626
        %807 = vmatmul.f32.gmra.mxu0 1.0
        %v808 = vpop.f32.mrf.mxu0
        %v809 = vadd.f32 %v789, %v808
        %810 = vdwg.mxu0
        %v811 = vmul.f32 %v809, 0.0011111111
        %v812 = vld [vmem:[%s4] sm:$0xff]
        %v813 = vld [vmem:[%s4 + $0x8] sm:$0xff]
        %v814 = vperm.slane %v811, 0
        %v815 = vadd.f32 %v814, %v812
        %v816 = vadd.f32 %v814, %v813
        %v817 = vld [vmem:[%s5] sm:$0xff]
        %v818 = vld [vmem:[%s5 + $0x8] sm:$0xff]
        %v819 = vld [vmem:[%s5 + $0x10] sm:$0xff]
        %v820 = vld [vmem:[%s5 + $0x18] sm:$0xff]
        %v821 = vld [vmem:[%s6] sm:$0x1]
        %v823 = vperm.slane %v821, 0
        %vm825 = vcmask 261120
        %v827 = vsel %vm825, %v815, 0
        %v830 = vsel %vm825, %v816, 0
        %832 = vmatpush.msra.mxu0 0.0
        %833 = vmatpush.msra.mxu0 0.0
        %834 = vmatpush.msra.mxu0 0.0
        %835 = vmatpush.msra.mxu0 0.0
        %836 = vmatpush.msra.mxu0 0.0
        %837 = vmatpush.msra.mxu0 0.0
        %838 = vmatpush.msra.mxu0 0.0
        %839 = vmatpush.msra.mxu0 0.0
        %840 = vmatpush.msra.mxu0 0.0
        %841 = vmatpush.msra.mxu0 0.0
        %842 = vmatpush.msra.mxu0 0.0
        %843 = vmatpush.msra.mxu0 0.0
        %844 = vmatpush.msra.mxu0 %v820
        %845 = vmatpush.msra.mxu0 %v819
        %846 = vmatpush.msra.mxu0 %v818
        %847 = vmatpush.msra.mxu0 %v817
        %848 = vmatmul.f32.gmra.mxu0 %v827
        %v849 = vpop.f32.mrf.mxu0
        %v850 = vadd.f32 %v823, %v849
        %851 = vmatmul.f32.gmra.mxu0 %v830
        %v852 = vpop.f32.mrf.mxu0
        %v853 = vadd.f32 %v823, %v852
        %854 = vdwg.mxu0
        %v855 = vmax.f32 %v850, 0.0
        %v856 = vmax.f32 %v853, 0.0
        %v857 = vld [vmem:[%s7] sm:$0xff]
        %v858 = vld [vmem:[%s7 + $0x8] sm:$0xff]
        %v859 = vld [vmem:[%s7 + $0x10] sm:$0xff]
        %v860 = vld [vmem:[%s7 + $0x18] sm:$0xff]
        %v861 = vld [vmem:[%s7 + $0x20] sm:$0xff]
        %v862 = vld [vmem:[%s7 + $0x28] sm:$0xff]
        %v863 = vld [vmem:[%s7 + $0x30] sm:$0xff]
        %v864 = vld [vmem:[%s7 + $0x38] sm:$0xff]
        %v865 = vld [vmem:[%s8] sm:$0x1]
        %v867 = vperm.slane %v865, 0
        %vm869 = vcmask 523264
        %v871 = vsel %vm869, %v855, 0
        %v874 = vsel %vm869, %v856, 0
        %876 = vmatpush.msra.mxu0 0.0
        %877 = vmatpush.msra.mxu0 0.0
        %878 = vmatpush.msra.mxu0 0.0
        %879 = vmatpush.msra.mxu0 0.0
        %880 = vmatpush.msra.mxu0 0.0
        %881 = vmatpush.msra.mxu0 0.0
        %882 = vmatpush.msra.mxu0 0.0
        %883 = vmatpush.msra.mxu0 0.0
        %884 = vmatpush.msra.mxu0 %v864
        %885 = vmatpush.msra.mxu0 %v863
        %886 = vmatpush.msra.mxu0 %v862
        %887 = vmatpush.msra.mxu0 %v861
        %888 = vmatpush.msra.mxu0 %v860
        %889 = vmatpush.msra.mxu0 %v859
        %890 = vmatpush.msra.mxu0 %v858
        %891 = vmatpush.msra.mxu0 %v857
        %892 = vmatmul.f32.gmra.mxu0 %v871
        %v893 = vpop.f32.mrf.mxu0
        %v894 = vadd.f32 %v867, %v893
        %895 = vmatmul.f32.gmra.mxu0 %v874
        %v896 = vpop.f32.mrf.mxu0
        %v897 = vadd.f32 %v867, %v896
        %898 = vdwg.mxu0
        %v899 = vsel %vm374, %v894, -inf
        %900 = vmax.xlane.f32.xlu0 %v899
        %v901 = vpop.xlane.xlu0 %900
        %v902 = vsel %vm374, %v897, -inf
        %903 = vmax.xlane.f32.xlu0 %v902
        %v904 = vpop.xlane.xlu0 %903
        %v905 = vsub.f32 %v894, %v901
        %v906 = vsub.f32 %v897, %v904
        %v907 = vmul.f32 %v905, 1.442695
        %v908 = vpow.pop %v907
        %v909 = vmul.f32 %v906, 1.442695
        %v910 = vpow.pop %v909
        %v911 = vsel %vm374, %v908, 0.0
        %912 = vadd.xlane.f32.xlu0 %v911
        %v913 = vpop.xlane.xlu0 %912
        %v914 = vsel %vm374, %v910, 0.0
        %915 = vadd.xlane.f32.xlu0 %v914
        %v916 = vpop.xlane.xlu0 %915
        %v917 = vrcp.pop %v913
        %v918 = vmul.f32 %v913, %v917
        %v919 = vsub.f32 1.0, %v918
        %v920 = vmul.f32 %v917, %v919
        %v921 = vadd.f32 %v917, %v920
        %vm922 = vweird.f32 %v913
        %vm923 = vweird.f32 %v917
        %vm924 = vmor %vm922, %vm923
        %v925 = vsel %vm924, %v917, %v921
        %v926 = vand.u32 2147483647, %v913
        %vm927 = vcmp.eq.f32.partialorder %v926, 8.507059e+37
        %v928 = vand.u32 %v913, 2147483648
        %v929 = vor.u32 1.1754944e-38, %v928
        %v930 = vsel %vm927, %v929, %v925
        %v931 = vmul.f32 %v908, %v930
        %v932 = vrcp.pop %v916
        %v933 = vmul.f32 %v916, %v932
        %v934 = vsub.f32 1.0, %v933
        %v935 = vmul.f32 %v932, %v934
        %v936 = vadd.f32 %v932, %v935
        %vm937 = vweird.f32 %v916
        %vm938 = vweird.f32 %v932
        %vm939 = vmor %vm937, %vm938
        %v940 = vsel %vm939, %v932, %v936
        %v941 = vand.u32 2147483647, %v916
        %vm942 = vcmp.eq.f32.partialorder %v941, 8.507059e+37
        %v943 = vand.u32 %v916, 2147483648
        %v944 = vor.u32 1.1754944e-38, %v943
        %v945 = vsel %vm942, %v944, %v940
        %v946 = vmul.f32 %v910, %v945
        %v947 = vlaneseq
        %v948 = vand.u32 %v947, 127
        %v949 = vlaneseq
        %v950 = vshrl.u32 %v949, 7
        %v951 = vadd.s32 %v950, 1
        %vm952 = vcmp.eq.s32.totalorder %v948, %v951
        %v953 = vsel %vm952, 1, 0
        %v954 = vcvt.s32.f32 %v953
        %v956 = vsel %vm374, %v954, 0
        %v959 = vsel %vm374, %v931, 0
        %v962 = vsel %vm374, %v946, 0
        %964 = vmatpush.xpose.msra.mxu0 0.0
        %965 = vmatpush.xpose.msra.mxu0 0.0
        %966 = vmatpush.xpose.msra.mxu0 0.0
        %967 = vmatpush.xpose.msra.mxu0 0.0
        %968 = vmatpush.xpose.msra.mxu0 0.0
        %969 = vmatpush.xpose.msra.mxu0 0.0
        %970 = vmatpush.xpose.msra.mxu0 0.0
        %971 = vmatpush.xpose.msra.mxu0 0.0
        %972 = vmatpush.xpose.msra.mxu0 0.0
        %973 = vmatpush.xpose.msra.mxu0 0.0
        %974 = vmatpush.xpose.msra.mxu0 0.0
        %975 = vmatpush.xpose.msra.mxu0 0.0
        %976 = vmatpush.xpose.msra.mxu0 0.0
        %977 = vmatpush.xpose.msra.mxu0 0.0
        %978 = vmatpush.xpose.msra.mxu0 %v962
        %979 = vmatpush.xpose.msra.mxu0 %v959
        %980 = vmatmul.f32.gmra.mxu0 %v956
        %v981 = vpop.f32.mrf.mxu0
        %v982 = vadd.f32 0.0, %v981
        %983 = vdwg.mxu0
        %v984 = vld [vmem:[%s358] sm:$0xf]
        %v985 = vld [vmem:[%s361] sm:$0x1]
        %v987 = vperm.slane %v985, 0
        %v989 = vrcp.pop %v987
        %v990 = vmul.f32 %v987, %v989
        %v991 = vsub.f32 1.0, %v990
        %v992 = vmul.f32 %v989, %v991
        %v993 = vadd.f32 %v989, %v992
        %vm994 = vweird.f32 %v987
        %vm995 = vweird.f32 %v989
        %vm996 = vmor %vm994, %vm995
        %v997 = vsel %vm996, %v989, %v993
        %v998 = vand.u32 2147483647, %v987
        %vm999 = vcmp.eq.f32.partialorder %v998, 8.507059e+37
        %v1000 = vand.u32 %v987, 2147483648
        %v1001 = vor.u32 1.1754944e-38, %v1000
        %v1002 = vsel %vm999, %v1001, %v997
        %v1003 = vmul.f32 %v984, %v1002
        %v1004 = vadd.s32 %v950, 8
        %vm1005 = vcmp.eq.s32.totalorder %v950, %v948
        %vm1006 = vcmp.eq.s32.totalorder %v1004, %v948
        %v1007 = vsel %vm1005, 1, 0
        %v1008 = vsel %vm1006, 1, 0
        %v1009 = vcvt.s32.f32 %v1007
        %v1010 = vcvt.s32.f32 %v1008
        %vm1011 = vcmp.lt.s32.totalorder %v950, %v948
        %vm1012 = vcmp.lt.s32.totalorder %v1004, %v948
        %v1013 = vperm.slane %v1003, 0
        %v1014 = vmul.f32 %v1013, %v1009
        %v1015 = vmul.f32 %v1013, %v1010
        %vm1016 = vcmask 130048
        %v1017 = vsel %vm1016, %v1014, 0.0
        %1018 = vadd.xlane.f32.xlu0 %v1017
        %v1019 = vpop.xlane.xlu0 %1018
        %v1020 = vsel %vm1016, %v1015, 0.0
        %1021 = vadd.xlane.f32.xlu0 %v1020
        %v1022 = vpop.xlane.xlu0 %1021
        %v1023 = vperm.slane %v1003, 1
        %v1024 = vmul.f32 %v1023, %v1009
        %v1025 = vmul.f32 %v1023, %v1010
        %v1026 = vsel %vm1016, %v1024, 0.0
        %1027 = vadd.xlane.f32.xlu0 %v1026
        %v1028 = vpop.xlane.xlu0 %1027
        %v1029 = vsel %vm1016, %v1025, 0.0
        %1030 = vadd.xlane.f32.xlu0 %v1029
        %v1031 = vpop.xlane.xlu0 %1030
        %v1032 = vperm.slane %v1003, 2
        %v1033 = vmul.f32 %v1032, %v1009
        %v1034 = vmul.f32 %v1032, %v1010
        %v1035 = vsel %vm1016, %v1033, 0.0
        %1036 = vadd.xlane.f32.xlu0 %v1035
        %v1037 = vpop.xlane.xlu0 %1036
        %v1038 = vsel %vm1016, %v1034, 0.0
        %1039 = vadd.xlane.f32.xlu0 %v1038
        %v1040 = vpop.xlane.xlu0 %1039
        %v1041 = vperm.slane %v1003, 3
        %v1042 = vmul.f32 %v1041, %v1009
        %v1043 = vmul.f32 %v1041, %v1010
        %v1044 = vsel %vm1016, %v1042, 0.0
        %1045 = vadd.xlane.f32.xlu0 %v1044
        %v1046 = vpop.xlane.xlu0 %1045
        %v1047 = vsel %vm1016, %v1043, 0.0
        %1048 = vadd.xlane.f32.xlu0 %v1047
        %v1049 = vpop.xlane.xlu0 %1048
        %v1051 = vrot.slane %v1003, 6
        %v1053 = vsub.f32 %v1003, %v1051
        %v1054 = vadd.f32 %v1053, 1.0
        %v1056 = vrot.slane %v1054, 1
        %v1058 = vmul.f32 %v1054, %v1056
        %v1059 = vsub.f32 %v1037, %v1019
        %v1060 = vsub.f32 %v1040, %v1022
        %v1061 = vadd.f32 %v1059, 1.0
        %v1062 = vadd.f32 %v1060, 1.0
        %v1063 = vsub.f32 %v1046, %v1028
        %v1064 = vsub.f32 %v1049, %v1031
        %v1065 = vadd.f32 %v1063, 1.0
        %v1066 = vadd.f32 %v1064, 1.0
        %v1067 = vmul.f32 %v1061, %v1065
        %v1068 = vmul.f32 %v1062, %v1066
        %v1069 = vmin.f32 %v1037, %v1032
        %v1070 = vmin.f32 %v1040, %v1032
        %v1071 = vmax.f32 %v1019, %v1013
        %v1072 = vmax.f32 %v1022, %v1013
        %v1073 = vsub.f32 %v1069, %v1071
        %v1074 = vsub.f32 %v1070, %v1072
        %v1075 = vadd.f32 %v1073, 1.0
        %v1076 = vadd.f32 %v1074, 1.0
        %v1077 = vmax.f32 %v1075, 0.0
        %v1078 = vmax.f32 %v1076, 0.0
        %v1079 = vmin.f32 %v1046, %v1041
        %v1080 = vmin.f32 %v1049, %v1041
        %v1081 = vmax.f32 %v1028, %v1023
        %v1082 = vmax.f32 %v1031, %v1023
        %v1083 = vsub.f32 %v1079, %v1081
        %v1084 = vsub.f32 %v1080, %v1082
        %v1085 = vadd.f32 %v1083, 1.0
        %v1086 = vadd.f32 %v1084, 1.0
        %v1087 = vmax.f32 %v1085, 0.0
        %v1088 = vmax.f32 %v1086, 0.0
        %v1089 = vmul.f32 %v1077, %v1087
        %v1090 = vmul.f32 %v1078, %v1088
        %v1091 = vperm.slane %v1058, 2
        %v1092 = vadd.f32 %v1067, %v1091
        %v1093 = vadd.f32 %v1068, %v1091
        %v1094 = vsub.f32 %v1092, %v1089
        %v1095 = vsub.f32 %v1093, %v1090
        %v1096 = vrcp.pop %v1094
        %v1097 = vmul.f32 %v1094, %v1096
        %v1098 = vsub.f32 1.0, %v1097
        %v1099 = vmul.f32 %v1096, %v1098
        %v1100 = vadd.f32 %v1096, %v1099
        %vm1101 = vweird.f32 %v1094
        %vm1102 = vweird.f32 %v1096
        %vm1103 = vmor %vm1101, %vm1102
        %v1104 = vsel %vm1103, %v1096, %v1100
        %v1105 = vand.u32 2147483647, %v1094
        %vm1106 = vcmp.eq.f32.partialorder %v1105, 8.507059e+37
        %v1107 = vand.u32 %v1094, 2147483648
        %v1108 = vor.u32 1.1754944e-38, %v1107
        %v1109 = vsel %vm1106, %v1108, %v1104
        %v1110 = vmul.f32 %v1089, %v1109
        %v1111 = vrcp.pop %v1095
        %v1112 = vmul.f32 %v1095, %v1111
        %v1113 = vsub.f32 1.0, %v1112
        %v1114 = vmul.f32 %v1111, %v1113
        %v1115 = vadd.f32 %v1111, %v1114
        %vm1116 = vweird.f32 %v1095
        %vm1117 = vweird.f32 %v1111
        %vm1118 = vmor %vm1116, %vm1117
        %v1119 = vsel %vm1118, %v1111, %v1115
        %v1120 = vand.u32 2147483647, %v1095
        %vm1121 = vcmp.eq.f32.partialorder %v1120, 8.507059e+37
        %v1122 = vand.u32 %v1095, 2147483648
        %v1123 = vor.u32 1.1754944e-38, %v1122
        %v1124 = vsel %vm1121, %v1123, %v1119
        %v1125 = vmul.f32 %v1090, %v1124
        %vm1126 = vcmp.gt.f32.partialorder %v1110, 0.5
        %vm1127 = vcmp.gt.f32.partialorder %v1125, 0.5
        %v1128 = vsel %vm1126, 1, 0
        %v1129 = vsel %vm1127, 1, 0
        %v1130 = vcvt.s32.f32 %v1128
        %v1131 = vcvt.s32.f32 %v1129
        %v1132 = vperm.slane %v982, 0
        %v1133 = vmul.f32 %v1132, %v1009
        %v1134 = vmul.f32 %v1132, %v1010
        %v1135 = vsel %vm1016, %v1133, 0.0
        %1136 = vadd.xlane.f32.xlu0 %v1135
        %v1137 = vpop.xlane.xlu0 %1136
        %v1138 = vsel %vm1016, %v1134, 0.0
        %1139 = vadd.xlane.f32.xlu0 %v1138
        %v1140 = vpop.xlane.xlu0 %1139
        %vm1141 = vcmp.gt.f32.partialorder %v1137, %v1132
        %vm1142 = vcmp.gt.f32.partialorder %v1140, %v1132
        %vm1143 = vcmp.eq.f32.partialorder %v1137, %v1132
        %vm1144 = vcmp.eq.f32.partialorder %v1140, %v1132
        %vm1145 = vmand %vm1143, %vm1011
        %vm1146 = vmand %vm1144, %vm1012
        %vm1147 = vmor %vm1141, %vm1145
        %vm1148 = vmor %vm1142, %vm1146
        %v1149 = vsel %vm1147, 1, 0
        %v1150 = vsel %vm1148, 1, 0
        %v1151 = vsel %vm1016, %v1149, 0
        %v1152 = vsel %vm1016, %v1150, 0
        %v1153 = vadd.s32 %v1151, %v1152
        %v1154 = vrot.slane %v1153, 4
        %v1155 = vadd.s32 %v1153, %v1154
        %v1156 = vrot.slane %v1155, 2
        %v1157 = vadd.s32 %v1155, %v1156
        %v1158 = vrot.slane %v1157, 1
        %v1159 = vadd.s32 %v1157, %v1158
        %vm1160 = vcmp.eq.s32.totalorder %v950, 0
        %v1161 = vsel %vm1160, 1, 0
        %v1162 = vmul.u32 %v1161, %v1159
        %v1163 = vperm.slane %v982, 1
        %v1164 = vmul.f32 %v1163, %v1009
        %v1165 = vmul.f32 %v1163, %v1010
        %v1166 = vsel %vm1016, %v1164, 0.0
        %1167 = vadd.xlane.f32.xlu0 %v1166
        %v1168 = vpop.xlane.xlu0 %1167
        %v1169 = vsel %vm1016, %v1165, 0.0
        %1170 = vadd.xlane.f32.xlu0 %v1169
        %v1171 = vpop.xlane.xlu0 %1170
        %vm1172 = vcmp.gt.f32.partialorder %v1168, %v1163
        %vm1173 = vcmp.gt.f32.partialorder %v1171, %v1163
        %vm1174 = vcmp.eq.f32.partialorder %v1168, %v1163
        %vm1175 = vcmp.eq.f32.partialorder %v1171, %v1163
        %vm1176 = vmand %vm1174, %vm1011
        %vm1177 = vmand %vm1175, %vm1012
        %vm1178 = vmor %vm1172, %vm1176
        %vm1179 = vmor %vm1173, %vm1177
        %v1180 = vsel %vm1178, 1, 0
        %v1181 = vsel %vm1179, 1, 0
        %v1182 = vsel %vm1016, %v1180, 0
        %v1183 = vsel %vm1016, %v1181, 0
        %v1184 = vadd.s32 %v1182, %v1183
        %v1185 = vrot.slane %v1184, 4
        %v1186 = vadd.s32 %v1184, %v1185
        %v1187 = vrot.slane %v1186, 2
        %v1188 = vadd.s32 %v1186, %v1187
        %v1189 = vrot.slane %v1188, 1
        %v1190 = vadd.s32 %v1188, %v1189
        %vm1191 = vcmp.eq.s32.totalorder %v950, 1
        %v1192 = vsel %vm1191, 1, 0
        %v1193 = vmul.u32 %v1192, %v1190
        %v1194 = vadd.s32 %v1162, %v1193
        %v1195 = vperm.slane %v982, 2
        %v1196 = vmul.f32 %v1195, %v1009
        %v1197 = vmul.f32 %v1195, %v1010
        %v1198 = vsel %vm1016, %v1196, 0.0
        %1199 = vadd.xlane.f32.xlu0 %v1198
        %v1200 = vpop.xlane.xlu0 %1199
        %v1201 = vsel %vm1016, %v1197, 0.0
        %1202 = vadd.xlane.f32.xlu0 %v1201
        %v1203 = vpop.xlane.xlu0 %1202
        %vm1204 = vcmp.gt.f32.partialorder %v1200, %v1195
        %vm1205 = vcmp.gt.f32.partialorder %v1203, %v1195
        %vm1206 = vcmp.eq.f32.partialorder %v1200, %v1195
        %vm1207 = vcmp.eq.f32.partialorder %v1203, %v1195
        %vm1208 = vmand %vm1206, %vm1011
        %vm1209 = vmand %vm1207, %vm1012
        %vm1210 = vmor %vm1204, %vm1208
        %vm1211 = vmor %vm1205, %vm1209
        %v1212 = vsel %vm1210, 1, 0
        %v1213 = vsel %vm1211, 1, 0
        %v1214 = vsel %vm1016, %v1212, 0
        %v1215 = vsel %vm1016, %v1213, 0
        %v1216 = vadd.s32 %v1214, %v1215
        %v1217 = vrot.slane %v1216, 4
        %v1218 = vadd.s32 %v1216, %v1217
        %v1219 = vrot.slane %v1218, 2
        %v1220 = vadd.s32 %v1218, %v1219
        %v1221 = vrot.slane %v1220, 1
        %v1222 = vadd.s32 %v1220, %v1221
        %vm1223 = vcmp.eq.s32.totalorder %v950, 2
        %v1224 = vsel %vm1223, 1, 0
        %v1225 = vmul.u32 %v1224, %v1222
        %v1226 = vadd.s32 %v1194, %v1225
        %v1227 = vperm.slane %v982, 3
        %v1228 = vmul.f32 %v1227, %v1009
        %v1229 = vmul.f32 %v1227, %v1010
        %v1230 = vsel %vm1016, %v1228, 0.0
        %1231 = vadd.xlane.f32.xlu0 %v1230
        %v1232 = vpop.xlane.xlu0 %1231
        %v1233 = vsel %vm1016, %v1229, 0.0
        %1234 = vadd.xlane.f32.xlu0 %v1233
        %v1235 = vpop.xlane.xlu0 %1234
        %vm1236 = vcmp.gt.f32.partialorder %v1232, %v1227
        %vm1237 = vcmp.gt.f32.partialorder %v1235, %v1227
        %vm1238 = vcmp.eq.f32.partialorder %v1232, %v1227
        %vm1239 = vcmp.eq.f32.partialorder %v1235, %v1227
        %vm1240 = vmand %vm1238, %vm1011
        %vm1241 = vmand %vm1239, %vm1012
        %vm1242 = vmor %vm1236, %vm1240
        %vm1243 = vmor %vm1237, %vm1241
        %v1244 = vsel %vm1242, 1, 0
        %v1245 = vsel %vm1243, 1, 0
        %v1246 = vsel %vm1016, %v1244, 0
        %v1247 = vsel %vm1016, %v1245, 0
        %v1248 = vadd.s32 %v1246, %v1247
        %v1249 = vrot.slane %v1248, 4
        %v1250 = vadd.s32 %v1248, %v1249
        %v1251 = vrot.slane %v1250, 2
        %v1252 = vadd.s32 %v1250, %v1251
        %v1253 = vrot.slane %v1252, 1
        %v1254 = vadd.s32 %v1252, %v1253
        %vm1255 = vcmp.eq.s32.totalorder %v950, 3
        %v1256 = vsel %vm1255, 1, 0
        %v1257 = vmul.u32 %v1256, %v1254
        %v1258 = vadd.s32 %v1226, %v1257
        %v1259 = vperm.slane %v982, 4
        %v1260 = vmul.f32 %v1259, %v1009
        %v1261 = vmul.f32 %v1259, %v1010
        %v1262 = vsel %vm1016, %v1260, 0.0
        %1263 = vadd.xlane.f32.xlu0 %v1262
        %v1264 = vpop.xlane.xlu0 %1263
        %v1265 = vsel %vm1016, %v1261, 0.0
        %1266 = vadd.xlane.f32.xlu0 %v1265
        %v1267 = vpop.xlane.xlu0 %1266
        %vm1268 = vcmp.gt.f32.partialorder %v1264, %v1259
        %vm1269 = vcmp.gt.f32.partialorder %v1267, %v1259
        %vm1270 = vcmp.eq.f32.partialorder %v1264, %v1259
        %vm1271 = vcmp.eq.f32.partialorder %v1267, %v1259
        %vm1272 = vmand %vm1270, %vm1011
        %vm1273 = vmand %vm1271, %vm1012
        %vm1274 = vmor %vm1268, %vm1272
        %vm1275 = vmor %vm1269, %vm1273
        %v1276 = vsel %vm1274, 1, 0
        %v1277 = vsel %vm1275, 1, 0
        %v1278 = vsel %vm1016, %v1276, 0
        %v1279 = vsel %vm1016, %v1277, 0
        %v1280 = vadd.s32 %v1278, %v1279
        %v1281 = vrot.slane %v1280, 4
        %v1282 = vadd.s32 %v1280, %v1281
        %v1283 = vrot.slane %v1282, 2
        %v1284 = vadd.s32 %v1282, %v1283
        %v1285 = vrot.slane %v1284, 1
        %v1286 = vadd.s32 %v1284, %v1285
        %vm1287 = vcmp.eq.s32.totalorder %v950, 4
        %v1288 = vsel %vm1287, 1, 0
        %v1289 = vmul.u32 %v1288, %v1286
        %v1290 = vadd.s32 %v1258, %v1289
        %v1291 = vperm.slane %v982, 5
        %v1292 = vmul.f32 %v1291, %v1009
        %v1293 = vmul.f32 %v1291, %v1010
        %v1294 = vsel %vm1016, %v1292, 0.0
        %1295 = vadd.xlane.f32.xlu0 %v1294
        %v1296 = vpop.xlane.xlu0 %1295
        %v1297 = vsel %vm1016, %v1293, 0.0
        %1298 = vadd.xlane.f32.xlu0 %v1297
        %v1299 = vpop.xlane.xlu0 %1298
        %vm1300 = vcmp.gt.f32.partialorder %v1296, %v1291
        %vm1301 = vcmp.gt.f32.partialorder %v1299, %v1291
        %vm1302 = vcmp.eq.f32.partialorder %v1296, %v1291
        %vm1303 = vcmp.eq.f32.partialorder %v1299, %v1291
        %vm1304 = vmand %vm1302, %vm1011
        %vm1305 = vmand %vm1303, %vm1012
        %vm1306 = vmor %vm1300, %vm1304
        %vm1307 = vmor %vm1301, %vm1305
        %v1308 = vsel %vm1306, 1, 0
        %v1309 = vsel %vm1307, 1, 0
        %v1310 = vsel %vm1016, %v1308, 0
        %v1311 = vsel %vm1016, %v1309, 0
        %v1312 = vadd.s32 %v1310, %v1311
        %v1313 = vrot.slane %v1312, 4
        %v1314 = vadd.s32 %v1312, %v1313
        %v1315 = vrot.slane %v1314, 2
        %v1316 = vadd.s32 %v1314, %v1315
        %v1317 = vrot.slane %v1316, 1
        %v1318 = vadd.s32 %v1316, %v1317
        %vm1319 = vcmp.eq.s32.totalorder %v950, 5
        %v1320 = vsel %vm1319, 1, 0
        %v1321 = vmul.u32 %v1320, %v1318
        %v1322 = vadd.s32 %v1290, %v1321
        %v1323 = vperm.slane %v982, 6
        %v1324 = vmul.f32 %v1323, %v1009
        %v1325 = vmul.f32 %v1323, %v1010
        %v1326 = vsel %vm1016, %v1324, 0.0
        %1327 = vadd.xlane.f32.xlu0 %v1326
        %v1328 = vpop.xlane.xlu0 %1327
        %v1329 = vsel %vm1016, %v1325, 0.0
        %1330 = vadd.xlane.f32.xlu0 %v1329
        %v1331 = vpop.xlane.xlu0 %1330
        %vm1332 = vcmp.gt.f32.partialorder %v1328, %v1323
        %vm1333 = vcmp.gt.f32.partialorder %v1331, %v1323
        %vm1334 = vcmp.eq.f32.partialorder %v1328, %v1323
        %vm1335 = vcmp.eq.f32.partialorder %v1331, %v1323
        %vm1336 = vmand %vm1334, %vm1011
        %vm1337 = vmand %vm1335, %vm1012
        %vm1338 = vmor %vm1332, %vm1336
        %vm1339 = vmor %vm1333, %vm1337
        %v1340 = vsel %vm1338, 1, 0
        %v1341 = vsel %vm1339, 1, 0
        %v1342 = vsel %vm1016, %v1340, 0
        %v1343 = vsel %vm1016, %v1341, 0
        %v1344 = vadd.s32 %v1342, %v1343
        %v1345 = vrot.slane %v1344, 4
        %v1346 = vadd.s32 %v1344, %v1345
        %v1347 = vrot.slane %v1346, 2
        %v1348 = vadd.s32 %v1346, %v1347
        %v1349 = vrot.slane %v1348, 1
        %v1350 = vadd.s32 %v1348, %v1349
        %vm1351 = vcmp.eq.s32.totalorder %v950, 6
        %v1352 = vsel %vm1351, 1, 0
        %v1353 = vmul.u32 %v1352, %v1350
        %v1354 = vadd.s32 %v1322, %v1353
        %vm1355 = vcmp.eq.s32.totalorder %v1354, 0
        %v1356 = vsel %vm1355, 1, 0
        %v1357 = vcvt.s32.f32 %v1356
        %v1358 = vmul.f32 %v1357, 0.0
        %vm1359 = vcmask 129024
        %v1360 = vsel %vm1359, %v1358, 0.0
        %1361 = vadd.xlane.f32.xlu0 %v1360
        %v1362 = vpop.xlane.xlu0 %1361
        %vm1363 = vcmp.gt.f32.partialorder %v1362, 0.0
        %v1364 = vsel %vm1363, 0.0, 1.0
        %v1365 = vmul.f32 %v1364, %v1357
        %v1366 = vadd.f32 %v1365, 0.0
        %v1368 = vsel %vm1016, %v1357, 0
        %1370 = vmatpush.msra.mxu0 0.0
        %1371 = vmatpush.msra.mxu0 0.0
        %1372 = vmatpush.msra.mxu0 0.0
        %1373 = vmatpush.msra.mxu0 0.0
        %1374 = vmatpush.msra.mxu0 0.0
        %1375 = vmatpush.msra.mxu0 0.0
        %1376 = vmatpush.msra.mxu0 0.0
        %1377 = vmatpush.msra.mxu0 0.0
        %1378 = vmatpush.msra.mxu0 0.0
        %1379 = vmatpush.msra.mxu0 0.0
        %1380 = vmatpush.msra.mxu0 0.0
        %1381 = vmatpush.msra.mxu0 0.0
        %1382 = vmatpush.msra.mxu0 0.0
        %1383 = vmatpush.msra.mxu0 0.0
        %1384 = vmatpush.msra.mxu0 %v1131
        %1385 = vmatpush.msra.mxu0 %v1130
        %1386 = vmatmul.f32.gmra.mxu0 %v1368
        %v1387 = vpop.f32.mrf.mxu0
        %v1388 = vadd.f32 0.0, %v1387
        %1389 = vdwg.mxu0
        %v1390 = vmul.f32 %v1364, %v1388
        %v1391 = vmax.f32 %v1390, 0.0
        %vm1392 = vcmp.eq.s32.totalorder %v1354, 1
        %v1393 = vsel %vm1392, 1, 0
        %v1394 = vcvt.s32.f32 %v1393
        %v1395 = vmul.f32 %v1391, %v1394
        %v1396 = vsel %vm1359, %v1395, 0.0
        %1397 = vadd.xlane.f32.xlu0 %v1396
        %v1398 = vpop.xlane.xlu0 %1397
        %vm1399 = vcmp.gt.f32.partialorder %v1398, 0.0
        %v1400 = vsel %vm1399, 0.0, 1.0
        %v1401 = vmul.f32 %v1400, %v1394
        %v1402 = vadd.f32 %v1366, %v1401
        %v1404 = vsel %vm1016, %v1394, 0
        %1406 = vmatpush.msra.mxu0 0.0
        %1407 = vmatpush.msra.mxu0 0.0
        %1408 = vmatpush.msra.mxu0 0.0
        %1409 = vmatpush.msra.mxu0 0.0
        %1410 = vmatpush.msra.mxu0 0.0
        %1411 = vmatpush.msra.mxu0 0.0
        %1412 = vmatpush.msra.mxu0 0.0
        %1413 = vmatpush.msra.mxu0 0.0
        %1414 = vmatpush.msra.mxu0 0.0
        %1415 = vmatpush.msra.mxu0 0.0
        %1416 = vmatpush.msra.mxu0 0.0
        %1417 = vmatpush.msra.mxu0 0.0
        %1418 = vmatpush.msra.mxu0 0.0
        %1419 = vmatpush.msra.mxu0 0.0
        %1420 = vmatpush.msra.mxu0 %v1131
        %1421 = vmatpush.msra.mxu0 %v1130
        %1422 = vmatmul.f32.gmra.mxu0 %v1404
        %v1423 = vpop.f32.mrf.mxu0
        %v1424 = vadd.f32 0.0, %v1423
        %1425 = vdwg.mxu0
        %v1426 = vmul.f32 %v1400, %v1424
        %v1427 = vmax.f32 %v1391, %v1426
        %vm1428 = vcmp.eq.s32.totalorder %v1354, 2
        %v1429 = vsel %vm1428, 1, 0
        %v1430 = vcvt.s32.f32 %v1429
        %v1431 = vmul.f32 %v1427, %v1430
        %v1432 = vsel %vm1359, %v1431, 0.0
        %1433 = vadd.xlane.f32.xlu0 %v1432
        %v1434 = vpop.xlane.xlu0 %1433
        %vm1435 = vcmp.gt.f32.partialorder %v1434, 0.0
        %v1436 = vsel %vm1435, 0.0, 1.0
        %v1437 = vmul.f32 %v1436, %v1430
        %v1438 = vadd.f32 %v1402, %v1437
        %v1440 = vsel %vm1016, %v1430, 0
        %1442 = vmatpush.msra.mxu0 0.0
        %1443 = vmatpush.msra.mxu0 0.0
        %1444 = vmatpush.msra.mxu0 0.0
        %1445 = vmatpush.msra.mxu0 0.0
        %1446 = vmatpush.msra.mxu0 0.0
        %1447 = vmatpush.msra.mxu0 0.0
        %1448 = vmatpush.msra.mxu0 0.0
        %1449 = vmatpush.msra.mxu0 0.0
        %1450 = vmatpush.msra.mxu0 0.0
        %1451 = vmatpush.msra.mxu0 0.0
        %1452 = vmatpush.msra.mxu0 0.0
        %1453 = vmatpush.msra.mxu0 0.0
        %1454 = vmatpush.msra.mxu0 0.0
        %1455 = vmatpush.msra.mxu0 0.0
        %1456 = vmatpush.msra.mxu0 %v1131
        %1457 = vmatpush.msra.mxu0 %v1130
        %1458 = vmatmul.f32.gmra.mxu0 %v1440
        %v1459 = vpop.f32.mrf.mxu0
        %v1460 = vadd.f32 0.0, %v1459
        %1461 = vdwg.mxu0
        %v1462 = vmul.f32 %v1436, %v1460
        %v1463 = vmax.f32 %v1427, %v1462
        %vm1464 = vcmp.eq.s32.totalorder %v1354, 3
        %v1465 = vsel %vm1464, 1, 0
        %v1466 = vcvt.s32.f32 %v1465
        %v1467 = vmul.f32 %v1463, %v1466
        %v1468 = vsel %vm1359, %v1467, 0.0
        %1469 = vadd.xlane.f32.xlu0 %v1468
        %v1470 = vpop.xlane.xlu0 %1469
        %vm1471 = vcmp.gt.f32.partialorder %v1470, 0.0
        %v1472 = vsel %vm1471, 0.0, 1.0
        %v1473 = vmul.f32 %v1472, %v1466
        %v1474 = vadd.f32 %v1438, %v1473
        %v1476 = vsel %vm1016, %v1466, 0
        %1478 = vmatpush.msra.mxu0 0.0
        %1479 = vmatpush.msra.mxu0 0.0
        %1480 = vmatpush.msra.mxu0 0.0
        %1481 = vmatpush.msra.mxu0 0.0
        %1482 = vmatpush.msra.mxu0 0.0
        %1483 = vmatpush.msra.mxu0 0.0
        %1484 = vmatpush.msra.mxu0 0.0
        %1485 = vmatpush.msra.mxu0 0.0
        %1486 = vmatpush.msra.mxu0 0.0
        %1487 = vmatpush.msra.mxu0 0.0
        %1488 = vmatpush.msra.mxu0 0.0
        %1489 = vmatpush.msra.mxu0 0.0
        %1490 = vmatpush.msra.mxu0 0.0
        %1491 = vmatpush.msra.mxu0 0.0
        %1492 = vmatpush.msra.mxu0 %v1131
        %1493 = vmatpush.msra.mxu0 %v1130
        %1494 = vmatmul.f32.gmra.mxu0 %v1476
        %v1495 = vpop.f32.mrf.mxu0
        %v1496 = vadd.f32 0.0, %v1495
        %1497 = vdwg.mxu0
        %v1498 = vmul.f32 %v1472, %v1496
        %v1499 = vmax.f32 %v1463, %v1498
        %vm1500 = vcmp.eq.s32.totalorder %v1354, 4
        %v1501 = vsel %vm1500, 1, 0
        %v1502 = vcvt.s32.f32 %v1501
        %v1503 = vmul.f32 %v1499, %v1502
        %v1504 = vsel %vm1359, %v1503, 0.0
        %1505 = vadd.xlane.f32.xlu0 %v1504
        %v1506 = vpop.xlane.xlu0 %1505
        %vm1507 = vcmp.gt.f32.partialorder %v1506, 0.0
        %v1508 = vsel %vm1507, 0.0, 1.0
        %v1509 = vmul.f32 %v1508, %v1502
        %v1510 = vadd.f32 %v1474, %v1509
        %v1512 = vsel %vm1016, %v1502, 0
        %1514 = vmatpush.msra.mxu0 0.0
        %1515 = vmatpush.msra.mxu0 0.0
        %1516 = vmatpush.msra.mxu0 0.0
        %1517 = vmatpush.msra.mxu0 0.0
        %1518 = vmatpush.msra.mxu0 0.0
        %1519 = vmatpush.msra.mxu0 0.0
        %1520 = vmatpush.msra.mxu0 0.0
        %1521 = vmatpush.msra.mxu0 0.0
        %1522 = vmatpush.msra.mxu0 0.0
        %1523 = vmatpush.msra.mxu0 0.0
        %1524 = vmatpush.msra.mxu0 0.0
        %1525 = vmatpush.msra.mxu0 0.0
        %1526 = vmatpush.msra.mxu0 0.0
        %1527 = vmatpush.msra.mxu0 0.0
        %1528 = vmatpush.msra.mxu0 %v1131
        %1529 = vmatpush.msra.mxu0 %v1130
        %1530 = vmatmul.f32.gmra.mxu0 %v1512
        %v1531 = vpop.f32.mrf.mxu0
        %v1532 = vadd.f32 0.0, %v1531
        %1533 = vdwg.mxu0
        %v1534 = vmul.f32 %v1508, %v1532
        %v1535 = vmax.f32 %v1499, %v1534
        %vm1536 = vcmp.eq.s32.totalorder %v1354, 5
        %v1537 = vsel %vm1536, 1, 0
        %v1538 = vcvt.s32.f32 %v1537
        %v1539 = vmul.f32 %v1535, %v1538
        %v1540 = vsel %vm1359, %v1539, 0.0
        %1541 = vadd.xlane.f32.xlu0 %v1540
        %v1542 = vpop.xlane.xlu0 %1541
        %vm1543 = vcmp.gt.f32.partialorder %v1542, 0.0
        %v1544 = vsel %vm1543, 0.0, 1.0
        %v1545 = vmul.f32 %v1544, %v1538
        %v1546 = vadd.f32 %v1510, %v1545
        %v1548 = vsel %vm1016, %v1538, 0
        %1550 = vmatpush.msra.mxu0 0.0
        %1551 = vmatpush.msra.mxu0 0.0
        %1552 = vmatpush.msra.mxu0 0.0
        %1553 = vmatpush.msra.mxu0 0.0
        %1554 = vmatpush.msra.mxu0 0.0
        %1555 = vmatpush.msra.mxu0 0.0
        %1556 = vmatpush.msra.mxu0 0.0
        %1557 = vmatpush.msra.mxu0 0.0
        %1558 = vmatpush.msra.mxu0 0.0
        %1559 = vmatpush.msra.mxu0 0.0
        %1560 = vmatpush.msra.mxu0 0.0
        %1561 = vmatpush.msra.mxu0 0.0
        %1562 = vmatpush.msra.mxu0 0.0
        %1563 = vmatpush.msra.mxu0 0.0
        %1564 = vmatpush.msra.mxu0 %v1131
        %1565 = vmatpush.msra.mxu0 %v1130
        %1566 = vmatmul.f32.gmra.mxu0 %v1548
        %v1567 = vpop.f32.mrf.mxu0
        %v1568 = vadd.f32 0.0, %v1567
        %1569 = vdwg.mxu0
        %v1570 = vmul.f32 %v1544, %v1568
        %v1571 = vmax.f32 %v1535, %v1570
        %vm1572 = vcmp.eq.s32.totalorder %v1354, 6
        %v1573 = vsel %vm1572, 1, 0
        %v1574 = vcvt.s32.f32 %v1573
        %v1575 = vmul.f32 %v1571, %v1574
        %v1576 = vsel %vm1359, %v1575, 0.0
        %1577 = vadd.xlane.f32.xlu0 %v1576
        %v1578 = vpop.xlane.xlu0 %1577
        %vm1579 = vcmp.gt.f32.partialorder %v1578, 0.0
        %v1580 = vsel %vm1579, 0.0, 1.0
        %v1581 = vmul.f32 %v1580, %v1574
        %v1582 = vadd.f32 %v1546, %v1581
        %v1584 = vsel %vm1016, %v1574, 0
        %1586 = vmatpush.msra.mxu0 0.0
        %1587 = vmatpush.msra.mxu0 0.0
        %1588 = vmatpush.msra.mxu0 0.0
        %1589 = vmatpush.msra.mxu0 0.0
        %1590 = vmatpush.msra.mxu0 0.0
        %1591 = vmatpush.msra.mxu0 0.0
        %1592 = vmatpush.msra.mxu0 0.0
        %1593 = vmatpush.msra.mxu0 0.0
        %1594 = vmatpush.msra.mxu0 0.0
        %1595 = vmatpush.msra.mxu0 0.0
        %1596 = vmatpush.msra.mxu0 0.0
        %1597 = vmatpush.msra.mxu0 0.0
        %1598 = vmatpush.msra.mxu0 0.0
        %1599 = vmatpush.msra.mxu0 0.0
        %1600 = vmatpush.msra.mxu0 %v1131
        %1601 = vmatpush.msra.mxu0 %v1130
        %1602 = vmatmul.f32.gmra.mxu0 %v1584
        %v1603 = vpop.f32.mrf.mxu0
        %v1604 = vadd.f32 0.0, %v1603
        %1605 = vdwg.mxu0
        %v1606 = vmul.f32 %v1580, %v1604
        %v1607 = vmax.f32 %v1571, %v1606
        %vm1608 = vcmp.eq.s32.totalorder %v1354, 7
        %v1609 = vsel %vm1608, 1, 0
        %v1610 = vcvt.s32.f32 %v1609
        %v1611 = vmul.f32 %v1607, %v1610
        %v1612 = vsel %vm1359, %v1611, 0.0
        %1613 = vadd.xlane.f32.xlu0 %v1612
        %v1614 = vpop.xlane.xlu0 %1613
        %vm1615 = vcmp.gt.f32.partialorder %v1614, 0.0
        %v1616 = vsel %vm1615, 0.0, 1.0
        %v1617 = vmul.f32 %v1616, %v1610
        %v1618 = vadd.f32 %v1582, %v1617
        %v1620 = vsel %vm1016, %v1610, 0
        %1622 = vmatpush.msra.mxu0 0.0
        %1623 = vmatpush.msra.mxu0 0.0
        %1624 = vmatpush.msra.mxu0 0.0
        %1625 = vmatpush.msra.mxu0 0.0
        %1626 = vmatpush.msra.mxu0 0.0
        %1627 = vmatpush.msra.mxu0 0.0
        %1628 = vmatpush.msra.mxu0 0.0
        %1629 = vmatpush.msra.mxu0 0.0
        %1630 = vmatpush.msra.mxu0 0.0
        %1631 = vmatpush.msra.mxu0 0.0
        %1632 = vmatpush.msra.mxu0 0.0
        %1633 = vmatpush.msra.mxu0 0.0
        %1634 = vmatpush.msra.mxu0 0.0
        %1635 = vmatpush.msra.mxu0 0.0
        %1636 = vmatpush.msra.mxu0 %v1131
        %1637 = vmatpush.msra.mxu0 %v1130
        %1638 = vmatmul.f32.gmra.mxu0 %v1620
        %v1639 = vpop.f32.mrf.mxu0
        %v1640 = vadd.f32 0.0, %v1639
        %1641 = vdwg.mxu0
        %v1642 = vmul.f32 %v1616, %v1640
        %v1643 = vmax.f32 %v1607, %v1642
        %vm1644 = vcmp.eq.s32.totalorder %v1354, 8
        %v1645 = vsel %vm1644, 1, 0
        %v1646 = vcvt.s32.f32 %v1645
        %v1647 = vmul.f32 %v1643, %v1646
        %v1648 = vsel %vm1359, %v1647, 0.0
        %1649 = vadd.xlane.f32.xlu0 %v1648
        %v1650 = vpop.xlane.xlu0 %1649
        %vm1651 = vcmp.gt.f32.partialorder %v1650, 0.0
        %v1652 = vsel %vm1651, 0.0, 1.0
        %v1653 = vmul.f32 %v1652, %v1646
        %v1654 = vadd.f32 %v1618, %v1653
        %v1656 = vsel %vm1016, %v1646, 0
        %1658 = vmatpush.msra.mxu0 0.0
        %1659 = vmatpush.msra.mxu0 0.0
        %1660 = vmatpush.msra.mxu0 0.0
        %1661 = vmatpush.msra.mxu0 0.0
        %1662 = vmatpush.msra.mxu0 0.0
        %1663 = vmatpush.msra.mxu0 0.0
        %1664 = vmatpush.msra.mxu0 0.0
        %1665 = vmatpush.msra.mxu0 0.0
        %1666 = vmatpush.msra.mxu0 0.0
        %1667 = vmatpush.msra.mxu0 0.0
        %1668 = vmatpush.msra.mxu0 0.0
        %1669 = vmatpush.msra.mxu0 0.0
        %1670 = vmatpush.msra.mxu0 0.0
        %1671 = vmatpush.msra.mxu0 0.0
        %1672 = vmatpush.msra.mxu0 %v1131
        %1673 = vmatpush.msra.mxu0 %v1130
        %1674 = vmatmul.f32.gmra.mxu0 %v1656
        %v1675 = vpop.f32.mrf.mxu0
        %v1676 = vadd.f32 0.0, %v1675
        %1677 = vdwg.mxu0
        %v1678 = vmul.f32 %v1652, %v1676
        %v1679 = vmax.f32 %v1643, %v1678
        %vm1680 = vcmp.eq.s32.totalorder %v1354, 9
        %v1681 = vsel %vm1680, 1, 0
        %v1682 = vcvt.s32.f32 %v1681
        %v1683 = vmul.f32 %v1679, %v1682
        %v1684 = vsel %vm1359, %v1683, 0.0
        %1685 = vadd.xlane.f32.xlu0 %v1684
        %v1686 = vpop.xlane.xlu0 %1685
        %vm1687 = vcmp.gt.f32.partialorder %v1686, 0.0
        %v1688 = vsel %vm1687, 0.0, 1.0
        %v1689 = vmul.f32 %v1688, %v1682
        %v1690 = vadd.f32 %v1654, %v1689
        %v1692 = vsel %vm1016, %v1682, 0
        %1694 = vmatpush.msra.mxu0 0.0
        %1695 = vmatpush.msra.mxu0 0.0
        %1696 = vmatpush.msra.mxu0 0.0
        %1697 = vmatpush.msra.mxu0 0.0
        %1698 = vmatpush.msra.mxu0 0.0
        %1699 = vmatpush.msra.mxu0 0.0
        %1700 = vmatpush.msra.mxu0 0.0
        %1701 = vmatpush.msra.mxu0 0.0
        %1702 = vmatpush.msra.mxu0 0.0
        %1703 = vmatpush.msra.mxu0 0.0
        %1704 = vmatpush.msra.mxu0 0.0
        %1705 = vmatpush.msra.mxu0 0.0
        %1706 = vmatpush.msra.mxu0 0.0
        %1707 = vmatpush.msra.mxu0 0.0
        %1708 = vmatpush.msra.mxu0 %v1131
        %1709 = vmatpush.msra.mxu0 %v1130
        %1710 = vmatmul.f32.gmra.mxu0 %v1692
        %v1711 = vpop.f32.mrf.mxu0
        %v1712 = vadd.f32 0.0, %v1711
        %1713 = vdwg.mxu0
        %v1714 = vmul.f32 %v1688, %v1712
        %v1715 = vmax.f32 %v1679, %v1714
        %vm1716 = vcmp.eq.s32.totalorder %v1354, 10
        %v1717 = vsel %vm1716, 1, 0
        %v1718 = vcvt.s32.f32 %v1717
        %v1719 = vmul.f32 %v1715, %v1718
        %v1720 = vsel %vm1359, %v1719, 0.0
        %1721 = vadd.xlane.f32.xlu0 %v1720
        %v1722 = vpop.xlane.xlu0 %1721
        %vm1723 = vcmp.gt.f32.partialorder %v1722, 0.0
        %v1724 = vsel %vm1723, 0.0, 1.0
        %v1725 = vmul.f32 %v1724, %v1718
        %v1726 = vadd.f32 %v1690, %v1725
        %v1728 = vsel %vm1016, %v1718, 0
        %1730 = vmatpush.msra.mxu0 0.0
        %1731 = vmatpush.msra.mxu0 0.0
        %1732 = vmatpush.msra.mxu0 0.0
        %1733 = vmatpush.msra.mxu0 0.0
        %1734 = vmatpush.msra.mxu0 0.0
        %1735 = vmatpush.msra.mxu0 0.0
        %1736 = vmatpush.msra.mxu0 0.0
        %1737 = vmatpush.msra.mxu0 0.0
        %1738 = vmatpush.msra.mxu0 0.0
        %1739 = vmatpush.msra.mxu0 0.0
        %1740 = vmatpush.msra.mxu0 0.0
        %1741 = vmatpush.msra.mxu0 0.0
        %1742 = vmatpush.msra.mxu0 0.0
        %1743 = vmatpush.msra.mxu0 0.0
        %1744 = vmatpush.msra.mxu0 %v1131
        %1745 = vmatpush.msra.mxu0 %v1130
        %1746 = vmatmul.f32.gmra.mxu0 %v1728
        %v1747 = vpop.f32.mrf.mxu0
        %v1748 = vadd.f32 0.0, %v1747
        %1749 = vdwg.mxu0
        %v1750 = vmul.f32 %v1724, %v1748
        %v1751 = vmax.f32 %v1715, %v1750
        %vm1752 = vcmp.eq.s32.totalorder %v1354, 11
        %v1753 = vsel %vm1752, 1, 0
        %v1754 = vcvt.s32.f32 %v1753
        %v1755 = vmul.f32 %v1751, %v1754
        %v1756 = vsel %vm1359, %v1755, 0.0
        %1757 = vadd.xlane.f32.xlu0 %v1756
        %v1758 = vpop.xlane.xlu0 %1757
        %vm1759 = vcmp.gt.f32.partialorder %v1758, 0.0
        %v1760 = vsel %vm1759, 0.0, 1.0
        %v1761 = vmul.f32 %v1760, %v1754
        %v1762 = vadd.f32 %v1726, %v1761
        %v1764 = vsel %vm1016, %v1754, 0
        %1766 = vmatpush.msra.mxu0 0.0
        %1767 = vmatpush.msra.mxu0 0.0
        %1768 = vmatpush.msra.mxu0 0.0
        %1769 = vmatpush.msra.mxu0 0.0
        %1770 = vmatpush.msra.mxu0 0.0
        %1771 = vmatpush.msra.mxu0 0.0
        %1772 = vmatpush.msra.mxu0 0.0
        %1773 = vmatpush.msra.mxu0 0.0
        %1774 = vmatpush.msra.mxu0 0.0
        %1775 = vmatpush.msra.mxu0 0.0
        %1776 = vmatpush.msra.mxu0 0.0
        %1777 = vmatpush.msra.mxu0 0.0
        %1778 = vmatpush.msra.mxu0 0.0
        %1779 = vmatpush.msra.mxu0 0.0
        %1780 = vmatpush.msra.mxu0 %v1131
        %1781 = vmatpush.msra.mxu0 %v1130
        %1782 = vmatmul.f32.gmra.mxu0 %v1764
        %v1783 = vpop.f32.mrf.mxu0
        %v1784 = vadd.f32 0.0, %v1783
        %1785 = vdwg.mxu0
        %v1786 = vmul.f32 %v1760, %v1784
        %v1787 = vmax.f32 %v1751, %v1786
        %vm1788 = vcmp.eq.s32.totalorder %v1354, 12
        %v1789 = vsel %vm1788, 1, 0
        %v1790 = vcvt.s32.f32 %v1789
        %v1791 = vmul.f32 %v1787, %v1790
        %v1792 = vsel %vm1359, %v1791, 0.0
        %1793 = vadd.xlane.f32.xlu0 %v1792
        %v1794 = vpop.xlane.xlu0 %1793
        %vm1795 = vcmp.gt.f32.partialorder %v1794, 0.0
        %v1796 = vsel %vm1795, 0.0, 1.0
        %v1797 = vmul.f32 %v1796, %v1790
        %v1798 = vadd.f32 %v1762, %v1797
        %v1800 = vsel %vm1016, %v1790, 0
        %1802 = vmatpush.msra.mxu0 0.0
        %1803 = vmatpush.msra.mxu0 0.0
        %1804 = vmatpush.msra.mxu0 0.0
        %1805 = vmatpush.msra.mxu0 0.0
        %1806 = vmatpush.msra.mxu0 0.0
        %1807 = vmatpush.msra.mxu0 0.0
        %1808 = vmatpush.msra.mxu0 0.0
        %1809 = vmatpush.msra.mxu0 0.0
        %1810 = vmatpush.msra.mxu0 0.0
        %1811 = vmatpush.msra.mxu0 0.0
        %1812 = vmatpush.msra.mxu0 0.0
        %1813 = vmatpush.msra.mxu0 0.0
        %1814 = vmatpush.msra.mxu0 0.0
        %1815 = vmatpush.msra.mxu0 0.0
        %1816 = vmatpush.msra.mxu0 %v1131
        %1817 = vmatpush.msra.mxu0 %v1130
        %1818 = vmatmul.f32.gmra.mxu0 %v1800
        %v1819 = vpop.f32.mrf.mxu0
        %v1820 = vadd.f32 0.0, %v1819
        %1821 = vdwg.mxu0
        %v1822 = vmul.f32 %v1796, %v1820
        %v1823 = vmax.f32 %v1787, %v1822
        %vm1824 = vcmp.eq.s32.totalorder %v1354, 13
        %v1825 = vsel %vm1824, 1, 0
        %v1826 = vcvt.s32.f32 %v1825
        %v1827 = vmul.f32 %v1823, %v1826
        %v1828 = vsel %vm1359, %v1827, 0.0
        %1829 = vadd.xlane.f32.xlu0 %v1828
        %v1830 = vpop.xlane.xlu0 %1829
        %vm1831 = vcmp.gt.f32.partialorder %v1830, 0.0
        %v1832 = vsel %vm1831, 0.0, 1.0
        %v1833 = vmul.f32 %v1832, %v1826
        %v1834 = vadd.f32 %v1798, %v1833
        %v1836 = vsel %vm1016, %v1826, 0
        %1838 = vmatpush.msra.mxu0 0.0
        %1839 = vmatpush.msra.mxu0 0.0
        %1840 = vmatpush.msra.mxu0 0.0
        %1841 = vmatpush.msra.mxu0 0.0
        %1842 = vmatpush.msra.mxu0 0.0
        %1843 = vmatpush.msra.mxu0 0.0
        %1844 = vmatpush.msra.mxu0 0.0
        %1845 = vmatpush.msra.mxu0 0.0
        %1846 = vmatpush.msra.mxu0 0.0
        %1847 = vmatpush.msra.mxu0 0.0
        %1848 = vmatpush.msra.mxu0 0.0
        %1849 = vmatpush.msra.mxu0 0.0
        %1850 = vmatpush.msra.mxu0 0.0
        %1851 = vmatpush.msra.mxu0 0.0
        %1852 = vmatpush.msra.mxu0 %v1131
        %1853 = vmatpush.msra.mxu0 %v1130
        %1854 = vmatmul.f32.gmra.mxu0 %v1836
        %v1855 = vpop.f32.mrf.mxu0
        %v1856 = vadd.f32 0.0, %v1855
        %1857 = vdwg.mxu0
        %v1858 = vmul.f32 %v1832, %v1856
        %v1859 = vmax.f32 %v1823, %v1858
        %vm1860 = vcmp.eq.s32.totalorder %v1354, 14
        %v1861 = vsel %vm1860, 1, 0
        %v1862 = vcvt.s32.f32 %v1861
        %v1863 = vmul.f32 %v1859, %v1862
        %v1864 = vsel %vm1359, %v1863, 0.0
        %1865 = vadd.xlane.f32.xlu0 %v1864
        %v1866 = vpop.xlane.xlu0 %1865
        %vm1867 = vcmp.gt.f32.partialorder %v1866, 0.0
        %v1868 = vsel %vm1867, 0.0, 1.0
        %v1869 = vmul.f32 %v1868, %v1862
        %v1870 = vadd.f32 %v1834, %v1869
        %v1872 = vsel %vm1016, %v1862, 0
        %1874 = vmatpush.msra.mxu0 0.0
        %1875 = vmatpush.msra.mxu0 0.0
        %1876 = vmatpush.msra.mxu0 0.0
        %1877 = vmatpush.msra.mxu0 0.0
        %1878 = vmatpush.msra.mxu0 0.0
        %1879 = vmatpush.msra.mxu0 0.0
        %1880 = vmatpush.msra.mxu0 0.0
        %1881 = vmatpush.msra.mxu0 0.0
        %1882 = vmatpush.msra.mxu0 0.0
        %1883 = vmatpush.msra.mxu0 0.0
        %1884 = vmatpush.msra.mxu0 0.0
        %1885 = vmatpush.msra.mxu0 0.0
        %1886 = vmatpush.msra.mxu0 0.0
        %1887 = vmatpush.msra.mxu0 0.0
        %1888 = vmatpush.msra.mxu0 %v1131
        %1889 = vmatpush.msra.mxu0 %v1130
        %1890 = vmatmul.f32.gmra.mxu0 %v1872
        %v1891 = vpop.f32.mrf.mxu0
        %v1892 = vadd.f32 0.0, %v1891
        %1893 = vdwg.mxu0
        %v1894 = vmul.f32 %v1868, %v1892
        %v1895 = vmax.f32 %v1859, %v1894
        %vm1896 = vcmp.eq.s32.totalorder %v1354, 15
        %v1897 = vsel %vm1896, 1, 0
        %v1898 = vcvt.s32.f32 %v1897
        %v1899 = vmul.f32 %v1895, %v1898
        %v1900 = vsel %vm1359, %v1899, 0.0
        %1901 = vadd.xlane.f32.xlu0 %v1900
        %v1902 = vpop.xlane.xlu0 %1901
        %vm1903 = vcmp.gt.f32.partialorder %v1902, 0.0
        %v1904 = vsel %vm1903, 0.0, 1.0
        %v1905 = vmul.f32 %v1904, %v1898
        %v1906 = vadd.f32 %v1870, %v1905
        %vm1907 = vcmp.gt.f32.partialorder %v1906, 0.0
        %v1908 = vsel %vm1907, %v982, 0.0
        %v1909 = vsel %vm1359, %v1908, -inf
        %v1910 = vrot.slane %v1909, 4
        %v1911 = vmax.f32 %v1909, %v1910
        %v1912 = vrot.slane %v1911, 2
        %v1913 = vmax.f32 %v1911, %v1912
        %v1914 = vrot.slane %v1913, 1
        %v1915 = vmax.f32 %v1913, %v1914
        %v1916 = vmul.f32 %v1915, %v1009
        %v1917 = vmul.f32 %v1915, %v1010
        %v1918 = vsel %vm1016, %v1916, 0.0
        %1919 = vadd.xlane.f32.xlu0 %v1918
        %v1920 = vpop.xlane.xlu0 %1919
        %v1921 = vsel %vm1016, %v1917, 0.0
        %1922 = vadd.xlane.f32.xlu0 %v1921
        %v1923 = vpop.xlane.xlu0 %1922
        %vm1924 = vcmp.gt.f32.partialorder %v1920, %v1915
        %vm1925 = vcmp.gt.f32.partialorder %v1923, %v1915
        %vm1926 = vcmp.eq.f32.partialorder %v1920, %v1915
        %vm1927 = vcmp.eq.f32.partialorder %v1923, %v1915
        %vm1928 = vmand %vm1926, %vm1011
        %vm1929 = vmand %vm1927, %vm1012
        %vm1930 = vmor %vm1924, %vm1928
        %vm1931 = vmor %vm1925, %vm1929
        %v1932 = vsel %vm1930, 1, 0
        %v1933 = vsel %vm1931, 1, 0
        %v1934 = vsel %vm1016, %v1932, 0
        %v1935 = vsel %vm1016, %v1933, 0
        %v1936 = vadd.s32 %v1934, %v1935
        %v1937 = vrot.slane %v1936, 4
        %v1938 = vadd.s32 %v1936, %v1937
        %v1939 = vrot.slane %v1938, 2
        %v1940 = vadd.s32 %v1938, %v1939
        %v1941 = vrot.slane %v1940, 1
        %v1942 = vadd.s32 %v1940, %v1941
        %vm1943 = vcmp.eq.s32.totalorder %v1942, %v950
        %vm1944 = vcmp.eq.s32.totalorder %v1942, %v1004
        %v1945 = vsel %vm1943, 1, 0
        %v1946 = vsel %vm1944, 1, 0
        %v1947 = vcvt.s32.f32 %v1945
        %v1948 = vcvt.s32.f32 %v1946
        %v1950 = vsel %vm1016, %v1947, 0
        %v1953 = vsel %vm1016, %v1948, 0
        %1955 = vmatpush.msra.mxu0 0.0
        %1956 = vmatpush.msra.mxu0 0.0
        %1957 = vmatpush.msra.mxu0 0.0
        %1958 = vmatpush.msra.mxu0 0.0
        %1959 = vmatpush.msra.mxu0 0.0
        %1960 = vmatpush.msra.mxu0 0.0
        %1961 = vmatpush.msra.mxu0 0.0
        %1962 = vmatpush.msra.mxu0 0.0
        %1963 = vmatpush.msra.mxu0 0.0
        %1964 = vmatpush.msra.mxu0 0.0
        %1965 = vmatpush.msra.mxu0 0.0
        %1966 = vmatpush.msra.mxu0 0.0
        %1967 = vmatpush.msra.mxu0 0.0
        %1968 = vmatpush.msra.mxu0 0.0
        %1969 = vmatpush.msra.mxu0 %v856
        %1970 = vmatpush.msra.mxu0 %v855
        %1971 = vmatmul.f32.gmra.mxu0 %v1950
        %v1972 = vpop.f32.mrf.mxu0
        %v1973 = vadd.f32 0.0, %v1972
        %1974 = vmatmul.f32.gmra.mxu0 %v1953
        %v1975 = vpop.f32.mrf.mxu0
        %v1976 = vadd.f32 0.0, %v1975
        %1977 = vdwg.mxu0
        %1978 = vst.msk [vmem:[%s349] sm:$0xff] %vm869, %v1973
        %1979 = vst.msk [vmem:[%s349 + $0x8] sm:$0xff] %vm869, %v1976
        %s1980 = sand.u32 %s235, 1
        %s1981 = scalar_lea.sflag [#allocation3], %s1980
        %s1982 = sand.u32 %s235, 1
        %s1983 = smul.addr %s1982, 16
        %s1984 = scalar_lea.vmem [#allocation2], %s1983
        // Predicated region
        $region57: #{vqa_maskrcnn_forward.1} parent=55 // pred_check
          %p1985 = pneg %p245
        $region58: #{vqa_maskrcnn_forward.1} parent=55 // pred_check_branch
          %1987 = sbr.rel (%p1985) target = $region60
        $region59: #{vqa_maskrcnn_forward.1} parent=55 // pred_region
          %1989 = vsyncadd %s1981, 0
          %s1990 = smul.addr %s23, 2
          %s1991 = smul.addr %s1990, 8
          %s1992 = scalar_lea.hbm %s9, %s1991
          %s1993 = sshll.u32 %s1984, 4
          %s1994 = int_to_ptr.vmem [resolvable:$true] %s1993
          %s1995 = sshll.u32 %s1992, 4
          %s1996 = int_to_ptr.hbm [resolvable:$true] %s1995
          %2001 = dma.vmem_to_hbm [thread:$0]  %s1994, 256, %s1996, %s1981, 128, 128, 8
        $region60: #{vqa_maskrcnn_forward.1} parent=55 // pred_fallthru
          _
      $region56: #{vqa_maskrcnn_forward.1} parent=5 // pred_fallthru
        _
      %p2002 = scmp.le.s32.totalorder 2, %s18
      // Predicated region
      $region61: #{vqa_maskrcnn_forward.1} parent=5 // pred_check
        %p2003 = pneg %p2002
      $region62: #{vqa_maskrcnn_forward.1} parent=5 // pred_check_branch
        %2005 = sbr.rel (%p2003) target = $region64
      $region63: #{vqa_maskrcnn_forward.1} parent=5 // pred_region
        %s2006 = ssub.s32 %s18, 2
        // Predicated region
        $region65: #{vqa_maskrcnn_forward.1} parent=63 // pred_check
          %p2007 = pneg %p251
        $region66: #{vqa_maskrcnn_forward.1} parent=63 // pred_check_branch
          %2009 = sbr.rel (%p2007) target = $region68
        $region67: #{vqa_maskrcnn_forward.1} parent=63 // pred_region
          %s2010 = sand.u32 %s236, 1
          %s2011 = scalar_lea.sflag [#allocation3], %s2010
          %s2012 = sand.u32 %s236, 1
          %s2013 = smul.addr %s2012, 16
          %s2014 = scalar_lea.vmem [#allocation2], %s2013
          %2016 = dma.done %s2011, 256
        $region68: #{vqa_maskrcnn_forward.1} parent=63 // pred_fallthru
          _
      $region64: #{vqa_maskrcnn_forward.1} parent=5 // pred_fallthru
        _
    $region6: #{vqa_maskrcnn_forward.1} parent=1 // loop_footer
      %s22 = sadd.s32 1, %s18
    $region7: #{vqa_maskrcnn_forward.1} parent=1 // loop_footer_branch
      %17 = sbr.rel target = $region3
    $region8: #{vqa_maskrcnn_forward.1} parent=1 // loop_exit
      _
    %2017 = vsyncpa [#allocation3], 1
    %s2018 = scalar_lea.sflag [#allocation3], 1
    %2019 = vsyncpa %s2018, 1

</llo_original>
